<compile_context>
chip_gen: v7x
topology: tpu7x:2x2x1
jax: 0.10.0
libtpu: 0.0.40
codegen_flags: <defaults>
</compile_context>

<pallas_src>
import functools
import math

import jax
import jax.numpy as jnp
from jax.experimental import pallas as pl
from jax.experimental.pallas import tpu as pltpu


CLS_PAD = 128     # lane-dense classifier width (num_labels padded up to 128 lanes)
NEG_INF = -1e9


# ---------------------------------------------------------------------------
# Fused encoder + classifier head + masked-CE kernel (single grid step)
# ---------------------------------------------------------------------------
def _fused_forward_kernel(emb_ref, maska_ref, labels_ref, maskt_ref,
                          lng_ref, lnb_ref, wqkv_ref, bqkv_ref,
                          wo_ref, bo_ref, wff1_ref, bff1_ref,
                          wff2_ref, bff2_ref, wcls_ref, bcls_ref,
                          logits_ref, loss_ref, *, n_heads, eps):
    BS, H = emb_ref.shape                 # [B*S, H] token slab
    B = maska_ref.shape[0]
    S = maska_ref.shape[2]
    Dh = H // n_heads
    scale = 1.0 / math.sqrt(Dh)

    def ln(x, idx):
        g = lng_ref[idx:idx + 1, :]       # [1, H]
        b = lnb_ref[idx:idx + 1, :]       # [1, H]
        mu = jnp.mean(x, axis=-1, keepdims=True)
        var = jnp.mean((x - mu) ** 2, axis=-1, keepdims=True)
        return (x - mu) * jax.lax.rsqrt(var + eps) * g + b

    def mm(x, w_ref, b_ref):
        # bf16 operands on the MXU, f32 accumulation, f32 bias epilogue.
        return (jnp.dot(x.astype(jnp.bfloat16), w_ref[...],
                        preferred_element_type=jnp.float32) + b_ref[...])

    x = emb_ref[...]                      # [BS, H] f32
    h0 = ln(x, 0)                         # embedding layernorm

    # fused QKV projection on the full token slab: one MXU pass, M = B*S
    qkv = mm(h0, wqkv_ref, bqkv_ref)      # [BS, 3H] f32
    qkv3 = qkv.reshape(B, S, 3 * H)       # tile-aligned leading split (S == 8)

    # head-major stacking along a leading batch axis: Dh-wide lane extracts,
    # then leading-dim concatenation (no lane merges); index = h*B + b.
    def stack_heads(base):
        return jnp.concatenate(
            [qkv3[:, :, base + h * Dh: base + (h + 1) * Dh]
             for h in range(n_heads)], axis=0)          # [nH*B, S, Dh]

    q = stack_heads(0)
    k = stack_heads(H)
    v = stack_heads(2 * H)

    # additive mask bias built in-kernel from the raw mask, replicated per head
    bias = (1.0 - maska_ref[...]) * NEG_INF             # [B, 1, S]
    bias = jnp.concatenate([bias] * n_heads, axis=0)    # [nH*B, 1, S]

    # batched attention over all B*n_heads heads: 2 einsums + 1 softmax
    s = jnp.einsum('bqd,bkd->bqk', q, k,
                   preferred_element_type=jnp.float32) * scale + bias
    s = s - jnp.max(s, axis=-1, keepdims=True)
    p = jnp.exp(s)
    p = p * pl.reciprocal(jnp.sum(p, axis=-1, keepdims=True), approx=True)
    ctx = jnp.einsum('bqk,bkd->bqd', p, v,
                     preferred_element_type=jnp.float32)  # [nH*B, S, Dh]

    # merge heads back along lanes, then fold batch back into the row dim
    ctx = jnp.concatenate([ctx[h * B:(h + 1) * B] for h in range(n_heads)],
                          axis=-1)                        # [B, S, H]
    ctx = ctx.reshape(BS, H)

    # attention out-projection + residual + LN1
    h1 = ln(h0 + mm(ctx, wo_ref, bo_ref), 1)

    # feed-forward with fused bias + GELU epilogue
    # TODO(synk): PyTorch BERT-style encoders default to exact erf GELU; tanh
    # approximation used here (EUP-friendly, synthetic backbone anyway).
    ff = jax.nn.gelu(mm(h1, wff1_ref, bff1_ref), approximate=True)
    h2 = ln(h1 + mm(ff, wff2_ref, bff2_ref), 2)           # sequence_output

    # dropout(sequence_output) is identity in eval mode; lane-dense classifier
    logits = mm(h2, wcls_ref, bcls_ref)                   # [BS, CLS_PAD]
    logits_ref[...] = logits

    # fused masked cross-entropy (mean over tokens where attention_mask == 1);
    # padded classes carry bias -1e9 so they vanish in the log-sum-exp.
    m = jnp.max(logits, axis=-1, keepdims=True)
    z = logits - m
    lse = jnp.log(jnp.sum(jnp.exp(z), axis=-1, keepdims=True))
    cls = jax.lax.broadcasted_iota(jnp.int32, logits.shape, 1)
    picked = jnp.sum(jnp.where(cls == labels_ref[...], z, 0.0),
                     axis=-1, keepdims=True)
    nll = lse - picked                                    # [BS, 1]
    mt = maskt_ref[...]                                   # [BS, 1] (1.0 = active)
    total = jnp.sum(nll * mt, keepdims=True)              # [1, 1]
    count = jnp.sum(mt, keepdims=True)                    # [1, 1]
    # NOTE: zero active tokens -> NaN, same as torch CrossEntropyLoss on empty.
    loss_ref[...] = total / count


def fused_forward(emb2d, mask_att, labels, mask_tok,
                  lng, lnb, wqkv, bqkv, wo, bo, wff1, bff1, wff2, bff2,
                  wcls, bcls, *, n_heads):
    BS, _ = emb2d.shape

    def full(arr):
        nd = arr.ndim
        return pl.BlockSpec(arr.shape, lambda i, _n=nd: (0,) * _n)

    kernel = functools.partial(_fused_forward_kernel, n_heads=n_heads, eps=1e-12)
    args = (emb2d, mask_att, labels, mask_tok, lng, lnb, wqkv, bqkv,
            wo, bo, wff1, bff1, wff2, bff2, wcls, bcls)
    return pl.pallas_call(
        kernel,
        out_shape=(jax.ShapeDtypeStruct((BS, CLS_PAD), jnp.float32),
                   jax.ShapeDtypeStruct((1, 1), jnp.float32)),
        grid=(1,),
        in_specs=[full(a) for a in args],
        out_specs=(pl.BlockSpec((BS, CLS_PAD), lambda i: (0, 0)),
                   pl.BlockSpec((1, 1), lambda i: (0, 0))),
    )(*args)


# ---------------------------------------------------------------------------
# Deterministic synthetic parameters (stand-in for the pretrained DFM)
# ---------------------------------------------------------------------------
def init_params(key, vocab, max_seq, hidden, ffn, n1, n2):
    ks = jax.random.split(key, 16)
    s = 0.02

    def nrm(k, shape):
        return (s * jax.random.normal(k, shape)).astype(jnp.float32)

    return {
        "word_emb": nrm(ks[0], (vocab, hidden)),
        "pos_emb": nrm(ks[1], (max_seq, hidden)),
        "ln_emb_g": jnp.ones((hidden,), jnp.float32),
        "ln_emb_b": jnp.zeros((hidden,), jnp.float32),
        "wq": nrm(ks[2], (hidden, hidden)), "bq": jnp.zeros((hidden,), jnp.float32),
        "wk": nrm(ks[3], (hidden, hidden)), "bk": jnp.zeros((hidden,), jnp.float32),
        "wv": nrm(ks[4], (hidden, hidden)), "bv": jnp.zeros((hidden,), jnp.float32),
        "wo": nrm(ks[5], (hidden, hidden)), "bo": jnp.zeros((hidden,), jnp.float32),
        "ln1_g": jnp.ones((hidden,), jnp.float32),
        "ln1_b": jnp.zeros((hidden,), jnp.float32),
        "w_ff1": nrm(ks[6], (hidden, ffn)), "b_ff1": jnp.zeros((ffn,), jnp.float32),
        "w_ff2": nrm(ks[7], (ffn, hidden)), "b_ff2": jnp.zeros((hidden,), jnp.float32),
        "ln2_g": jnp.ones((hidden,), jnp.float32),
        "ln2_b": jnp.zeros((hidden,), jnp.float32),
        # classifier_task1 / classifier_task2 (nn.Linear(hidden, num_labels))
        "w_cls1": nrm(ks[8], (hidden, n1)), "b_cls1": jnp.zeros((n1,), jnp.float32),
        "w_cls2": nrm(ks[9], (hidden, n2)), "b_cls2": jnp.zeros((n2,), jnp.float32),
    }


def prepare_params(params):
    """One-time weight plumbing: fused QKV, stacked LN params, lane-padded
    classifiers, bf16 casts of all MXU operands.  Run once, not per forward."""
    H = params["wq"].shape[0]
    bf16 = jnp.bfloat16
    prepped = {
        "word_emb": params["word_emb"],
        "pos_emb": params["pos_emb"],
        "lng": jnp.stack([params["ln_emb_g"], params["ln1_g"], params["ln2_g"]]),
        "lnb": jnp.stack([params["ln_emb_b"], params["ln1_b"], params["ln2_b"]]),
        "wqkv": jnp.concatenate([params["wq"], params["wk"], params["wv"]],
                                axis=1).astype(bf16),            # [H, 3H]
        "bqkv": jnp.concatenate([params["bq"], params["bk"],
                                 params["bv"]]).reshape(1, 3 * H),
        "wo": params["wo"].astype(bf16), "bo": params["bo"].reshape(1, H),
        "wff1": params["w_ff1"].astype(bf16), "bff1": params["b_ff1"].reshape(1, -1),
        "wff2": params["w_ff2"].astype(bf16), "bff2": params["b_ff2"].reshape(1, H),
    }
    for t in (1, 2):
        w, b = params[f"w_cls{t}"], params[f"b_cls{t}"]
        nl = w.shape[1]
        prepped[f"wcls{t}"] = (jnp.zeros((H, CLS_PAD), bf16)
                               .at[:, :nl].set(w.astype(bf16)))
        prepped[f"bcls{t}"] = (jnp.full((1, CLS_PAD), NEG_INF, jnp.float32)
                               .at[0, :nl].set(b))
        prepped[f"num_labels{t}"] = nl
    return prepped


# ---------------------------------------------------------------------------
# Forward pass (matches DFMForMultiTaskLearning.forward)
# ---------------------------------------------------------------------------
def dfm_multitask_forward(prepped, input_ids, attention_mask, task_id,
                          labels=None, *, n_heads=4):
    if task_id == 1:
        wcls, bcls, nl = prepped["wcls1"], prepped["bcls1"], prepped["num_labels1"]
    elif task_id == 2:
        wcls, bcls, nl = prepped["wcls2"], prepped["bcls2"], prepped["num_labels2"]
    else:
        raise ValueError("Invalid task_id")

    B, S = input_ids.shape
    H = prepped["word_emb"].shape[1]

    # TODO(synk): pretrained 'dfm-sentence-encoder-large' weights are not
    # reproducible in-script; deterministic 1-layer encoder used instead.
    # Embedding gather + position add stay in XLA (no clean tiny-vocab Pallas
    # gather); everything downstream is one fused Pallas kernel.
    emb = (jnp.take(prepped["word_emb"], input_ids, axis=0)
           + prepped["pos_emb"][:S][None]).astype(jnp.float32)   # [B, S, H]
    emb2d = emb.reshape(B * S, H)
    mask_f = attention_mask.astype(jnp.float32)
    mask_att = mask_f.reshape(B, 1, S)
    mask_tok = mask_f.reshape(B * S, 1)
    lbl = labels if labels is not None else jnp.zeros((B, S), jnp.int32)
    lbl = lbl.reshape(B * S, 1).astype(jnp.int32)

    logits_pad, loss = fused_forward(
        emb2d, mask_att, lbl, mask_tok,
        prepped["lng"], prepped["lnb"], prepped["wqkv"], prepped["bqkv"],
        prepped["wo"], prepped["bo"], prepped["wff1"], prepped["bff1"],
        prepped["wff2"], prepped["bff2"], wcls, bcls, n_heads=n_heads)

    logits = logits_pad.reshape(B, S, CLS_PAD)[..., :nl]          # [B, S, nl]
    return {"loss": (loss[0, 0] if labels is not None else None),
            "logits": logits}


# ---------------------------------------------------------------------------
if __name__ == "__main__":
    B, S, H, NH, VOCAB = 2, 8, 128, 4, 100
    FFN = 4 * H
    NUM_LABELS_T1, NUM_LABELS_T2 = 3, 5

    key = jax.random.PRNGKey(0)
    kp, kid, klb = jax.random.split(key, 3)

    params = init_params(kp, VOCAB, S, H, FFN, NUM_LABELS_T1, NUM_LABELS_T2)
    prepped = prepare_params(params)      # one-time weight prep (hoisted)

    input_ids = jax.random.randint(kid, (B, S), 0, VOCAB, dtype=jnp.int32)
    # sequence lengths 8 and 5 (rest padded)
    lengths = jnp.array([[8], [5]], dtype=jnp.int32)
    attention_mask = (jnp.arange(S, dtype=jnp.int32)[None, :] < lengths).astype(jnp.int32)
    labels = jax.random.randint(klb, (B, S), 0, NUM_LABELS_T1, dtype=jnp.int32)

    out1 = dfm_multitask_forward(prepped, input_ids, attention_mask,
                                 task_id=1, labels=labels, n_heads=NH)
    out2 = dfm_multitask_forward(prepped, input_ids, attention_mask,
                                 task_id=2, labels=None, n_heads=NH)

    jax.block_until_ready(out1["loss"])
    jax.block_until_ready(out1["logits"])
    jax.block_until_ready(out2["logits"])

    assert out1["logits"].shape == (B, S, NUM_LABELS_T1)
    assert out2["logits"].shape == (B, S, NUM_LABELS_T2)
    assert out2["loss"] is None
    assert bool(jnp.isfinite(out1["loss"]))

    print("KERNEL_OK")
</pallas_src>

<mosaic_0001>
module attributes {stable_mosaic.version = 11 : i64} {
  func.func @_fused_forward_kernel(%arg0: i32, %arg1: memref<16x128xf32, #tpu.memory_space<vmem>>, %arg2: memref<2x1x8xf32, #tpu.memory_space<vmem>>, %arg3: memref<16x1xi32, #tpu.memory_space<vmem>>, %arg4: memref<16x1xf32, #tpu.memory_space<vmem>>, %arg5: memref<3x128xf32, #tpu.memory_space<vmem>>, %arg6: memref<3x128xf32, #tpu.memory_space<vmem>>, %arg7: memref<128x384xbf16, #tpu.memory_space<vmem>>, %arg8: memref<1x384xf32, #tpu.memory_space<vmem>>, %arg9: memref<128x128xbf16, #tpu.memory_space<vmem>>, %arg10: memref<1x128xf32, #tpu.memory_space<vmem>>, %arg11: memref<128x512xbf16, #tpu.memory_space<vmem>>, %arg12: memref<1x512xf32, #tpu.memory_space<vmem>>, %arg13: memref<512x128xbf16, #tpu.memory_space<vmem>>, %arg14: memref<1x128xf32, #tpu.memory_space<vmem>>, %arg15: memref<128x128xbf16, #tpu.memory_space<vmem>>, %arg16: memref<1x128xf32, #tpu.memory_space<vmem>>, %arg17: memref<16x128xf32, #tpu.memory_space<vmem>>, %arg18: memref<1x1xf32, #tpu.memory_space<vmem>>) attributes {dimension_semantics = [#tpu.dimension_semantics<arbitrary>], iteration_bounds = array<i64: 1>, scalar_prefetch = 0 : i64, scratch_operands = 0 : i64, tpu.core_type = #tpu.core_type<tc>, window_params = [{pipeline_mode = #tpu.pipeline_mode<synchronous>, transform_indices = @transform_0, window_bounds = array<i64: 16, 128>}, {pipeline_mode = #tpu.pipeline_mode<synchronous>, transform_indices = @transform_1, window_bounds = array<i64: 2, 1, 8>}, {pipeline_mode = #tpu.pipeline_mode<synchronous>, transform_indices = @transform_2, window_bounds = array<i64: 16, 1>}, {pipeline_mode = #tpu.pipeline_mode<synchronous>, transform_indices = @transform_3, window_bounds = array<i64: 16, 1>}, {pipeline_mode = #tpu.pipeline_mode<synchronous>, transform_indices = @transform_4, window_bounds = array<i64: 3, 128>}, {pipeline_mode = #tpu.pipeline_mode<synchronous>, transform_indices = @transform_5, window_bounds = array<i64: 3, 128>}, {pipeline_mode = #tpu.pipeline_mode<synchronous>, transform_indices = @transform_6, window_bounds = array<i64: 128, 384>}, {pipeline_mode = #tpu.pipeline_mode<synchronous>, transform_indices = @transform_7, window_bounds = array<i64: 1, 384>}, {pipeline_mode = #tpu.pipeline_mode<synchronous>, transform_indices = @transform_8, window_bounds = array<i64: 128, 128>}, {pipeline_mode = #tpu.pipeline_mode<synchronous>, transform_indices = @transform_9, window_bounds = array<i64: 1, 128>}, {pipeline_mode = #tpu.pipeline_mode<synchronous>, transform_indices = @transform_10, window_bounds = array<i64: 128, 512>}, {pipeline_mode = #tpu.pipeline_mode<synchronous>, transform_indices = @transform_11, window_bounds = array<i64: 1, 512>}, {pipeline_mode = #tpu.pipeline_mode<synchronous>, transform_indices = @transform_12, window_bounds = array<i64: 512, 128>}, {pipeline_mode = #tpu.pipeline_mode<synchronous>, transform_indices = @transform_13, window_bounds = array<i64: 1, 128>}, {pipeline_mode = #tpu.pipeline_mode<synchronous>, transform_indices = @transform_14, window_bounds = array<i64: 128, 128>}, {pipeline_mode = #tpu.pipeline_mode<synchronous>, transform_indices = @transform_15, window_bounds = array<i64: 1, 128>}, {pipeline_mode = #tpu.pipeline_mode<synchronous>, transform_indices = @transform_16, window_bounds = array<i64: 16, 128>}, {pipeline_mode = #tpu.pipeline_mode<synchronous>, transform_indices = @transform_17, window_bounds = array<i64: 1, 1>}]} {
    %c0 = arith.constant 0 : index
    %c0_0 = arith.constant 0 : index
    %0 = vector.load %arg1[%c0, %c0_0] : memref<16x128xf32, #tpu.memory_space<vmem>>, vector<16x128xf32>
    %c0_1 = arith.constant 0 : index
    %c0_2 = arith.constant 0 : index
    %1 = vector.load %arg5[%c0_1, %c0_2] : memref<3x128xf32, #tpu.memory_space<vmem>>, vector<1x128xf32>
    %c0_3 = arith.constant 0 : index
    %c0_4 = arith.constant 0 : index
    %2 = vector.load %arg6[%c0_3, %c0_4] : memref<3x128xf32, #tpu.memory_space<vmem>>, vector<1x128xf32>
    %cst = arith.constant dense<0.000000e+00> : vector<16xf32>
    %3 = vector.multi_reduction <add>, %0, %cst [1] : vector<16x128xf32> to vector<16xf32>
    %4 = vector.shape_cast %3 : vector<16xf32> to vector<16x1xf32>
    %cst_5 = arith.constant 1.280000e+02 : f32
    %5 = vector.broadcast %cst_5 : f32 to vector<16x1xf32>
    %6 = arith.divf %4, %5 : vector<16x1xf32>
    %7 = vector.broadcast %6 : vector<16x1xf32> to vector<16x128xf32>
    %8 = arith.subf %0, %7 : vector<16x128xf32>
    %9 = arith.mulf %8, %8 : vector<16x128xf32>
    %cst_6 = arith.constant dense<0.000000e+00> : vector<16xf32>
    %10 = vector.multi_reduction <add>, %9, %cst_6 [1] : vector<16x128xf32> to vector<16xf32>
    %11 = vector.shape_cast %10 : vector<16xf32> to vector<16x1xf32>
    %cst_7 = arith.constant 1.280000e+02 : f32
    %12 = vector.broadcast %cst_7 : f32 to vector<16x1xf32>
    %13 = arith.divf %11, %12 : vector<16x1xf32>
    %14 = vector.broadcast %6 : vector<16x1xf32> to vector<16x128xf32>
    %15 = arith.subf %0, %14 : vector<16x128xf32>
    %cst_8 = arith.constant 9.99999996E-13 : f32
    %16 = vector.broadcast %cst_8 : f32 to vector<16x1xf32>
    %17 = arith.addf %13, %16 : vector<16x1xf32>
    %18 = math.rsqrt %17 : vector<16x1xf32>
    %19 = vector.broadcast %18 : vector<16x1xf32> to vector<16x128xf32>
    %20 = arith.mulf %15, %19 : vector<16x128xf32>
    %21 = vector.broadcast %1 : vector<1x128xf32> to vector<16x128xf32>
    %22 = arith.mulf %20, %21 : vector<16x128xf32>
    %23 = vector.broadcast %2 : vector<1x128xf32> to vector<16x128xf32>
    %24 = arith.addf %22, %23 : vector<16x128xf32>
    %25 = arith.truncf %24 : vector<16x128xf32> to vector<16x128xbf16>
    %c0_9 = arith.constant 0 : index
    %c0_10 = arith.constant 0 : index
    %26 = vector.load %arg7[%c0_9, %c0_10] : memref<128x384xbf16, #tpu.memory_space<vmem>>, vector<128x384xbf16>
    %cst_11 = arith.constant dense<0.000000e+00> : vector<16x384xf32>
    %27 = tpu.matmul %25, %26, %cst_11 {dimension_numbers = #tpu.dot_dimension_numbers<[1], [0], [0], [1], [0, 0, 1, 1], [], []>} : vector<16x128xbf16>, vector<128x384xbf16>, vector<16x384xf32> -> vector<16x384xf32>
    %c0_12 = arith.constant 0 : index
    %c0_13 = arith.constant 0 : index
    %28 = vector.load %arg8[%c0_12, %c0_13] : memref<1x384xf32, #tpu.memory_space<vmem>>, vector<1x384xf32>
    %29 = vector.broadcast %28 : vector<1x384xf32> to vector<16x384xf32>
    %30 = arith.addf %27, %29 : vector<16x384xf32>
    %31 = vector.shape_cast %30 : vector<16x384xf32> to vector<2x8x384xf32>
    %32 = vector.extract_strided_slice %31 {offsets = [0, 0, 0], sizes = [2, 8, 32], strides = [1, 1, 1]} : vector<2x8x384xf32> to vector<2x8x32xf32>
    %33 = vector.extract_strided_slice %31 {offsets = [0, 0, 32], sizes = [2, 8, 32], strides = [1, 1, 1]} : vector<2x8x384xf32> to vector<2x8x32xf32>
    %34 = vector.extract_strided_slice %31 {offsets = [0, 0, 64], sizes = [2, 8, 32], strides = [1, 1, 1]} : vector<2x8x384xf32> to vector<2x8x32xf32>
    %35 = vector.extract_strided_slice %31 {offsets = [0, 0, 96], sizes = [2, 8, 32], strides = [1, 1, 1]} : vector<2x8x384xf32> to vector<2x8x32xf32>
    %36 = tpu.concatenate %32, %33, %34, %35 in 0 : vector<2x8x32xf32>, vector<2x8x32xf32>, vector<2x8x32xf32>, vector<2x8x32xf32> -> vector<8x8x32xf32>
    %37 = vector.extract_strided_slice %31 {offsets = [0, 0, 128], sizes = [2, 8, 32], strides = [1, 1, 1]} : vector<2x8x384xf32> to vector<2x8x32xf32>
    %38 = vector.extract_strided_slice %31 {offsets = [0, 0, 160], sizes = [2, 8, 32], strides = [1, 1, 1]} : vector<2x8x384xf32> to vector<2x8x32xf32>
    %39 = vector.extract_strided_slice %31 {offsets = [0, 0, 192], sizes = [2, 8, 32], strides = [1, 1, 1]} : vector<2x8x384xf32> to vector<2x8x32xf32>
    %40 = vector.extract_strided_slice %31 {offsets = [0, 0, 224], sizes = [2, 8, 32], strides = [1, 1, 1]} : vector<2x8x384xf32> to vector<2x8x32xf32>
    %41 = tpu.concatenate %37, %38, %39, %40 in 0 : vector<2x8x32xf32>, vector<2x8x32xf32>, vector<2x8x32xf32>, vector<2x8x32xf32> -> vector<8x8x32xf32>
    %42 = vector.extract_strided_slice %31 {offsets = [0, 0, 256], sizes = [2, 8, 32], strides = [1, 1, 1]} : vector<2x8x384xf32> to vector<2x8x32xf32>
    %43 = vector.extract_strided_slice %31 {offsets = [0, 0, 288], sizes = [2, 8, 32], strides = [1, 1, 1]} : vector<2x8x384xf32> to vector<2x8x32xf32>
    %44 = vector.extract_strided_slice %31 {offsets = [0, 0, 320], sizes = [2, 8, 32], strides = [1, 1, 1]} : vector<2x8x384xf32> to vector<2x8x32xf32>
    %45 = vector.extract_strided_slice %31 {offsets = [0, 0, 352], sizes = [2, 8, 32], strides = [1, 1, 1]} : vector<2x8x384xf32> to vector<2x8x32xf32>
    %46 = tpu.concatenate %42, %43, %44, %45 in 0 : vector<2x8x32xf32>, vector<2x8x32xf32>, vector<2x8x32xf32>, vector<2x8x32xf32> -> vector<8x8x32xf32>
    %c0_14 = arith.constant 0 : index
    %c0_15 = arith.constant 0 : index
    %c0_16 = arith.constant 0 : index
    %47 = vector.load %arg2[%c0_14, %c0_15, %c0_16] : memref<2x1x8xf32, #tpu.memory_space<vmem>>, vector<2x1x8xf32>
    %cst_17 = arith.constant 1.000000e+00 : f32
    %48 = vector.broadcast %cst_17 : f32 to vector<2x1x8xf32>
    %49 = arith.subf %48, %47 : vector<2x1x8xf32>
    %cst_18 = arith.constant -1.000000e+09 : f32
    %50 = vector.broadcast %cst_18 : f32 to vector<2x1x8xf32>
    %51 = arith.mulf %49, %50 : vector<2x1x8xf32>
    %52 = tpu.concatenate %51, %51, %51, %51 in 0 : vector<2x1x8xf32>, vector<2x1x8xf32>, vector<2x1x8xf32>, vector<2x1x8xf32> -> vector<8x1x8xf32>
    "tpu.trace_start"() <{level = 10 : i32, message = "bqd,bkd->bqk"}> : () -> ()
    %cst_19 = arith.constant dense<0.000000e+00> : vector<8x8x8xf32>
    %53 = tpu.matmul %36, %41, %cst_19 {dimension_numbers = #tpu.dot_dimension_numbers<[2], [2], [1], [1], [0, 0, 0, 1, 1, 1], [0], [0]>} : vector<8x8x32xf32>, vector<8x8x32xf32>, vector<8x8x8xf32> -> vector<8x8x8xf32>
    "tpu.trace_stop"() : () -> ()
    %cst_20 = arith.constant 0.176776692 : f32
    %54 = vector.broadcast %cst_20 : f32 to vector<8x8x8xf32>
    %55 = arith.mulf %53, %54 : vector<8x8x8xf32>
    %56 = vector.broadcast %52 : vector<8x1x8xf32> to vector<8x8x8xf32>
    %57 = arith.addf %55, %56 : vector<8x8x8xf32>
    %cst_21 = arith.constant dense<0xFF800000> : vector<8x8xf32>
    %58 = vector.multi_reduction <maximumf>, %57, %cst_21 [2] : vector<8x8x8xf32> to vector<8x8xf32>
    %59 = vector.shape_cast %58 : vector<8x8xf32> to vector<8x8x1xf32>
    %60 = vector.broadcast %59 : vector<8x8x1xf32> to vector<8x8x8xf32>
    %61 = arith.subf %57, %60 : vector<8x8x8xf32>
    %62 = math.exp %61 : vector<8x8x8xf32>
    %cst_22 = arith.constant dense<0.000000e+00> : vector<8x8xf32>
    %63 = vector.multi_reduction <add>, %62, %cst_22 [2] : vector<8x8x8xf32> to vector<8x8xf32>
    %64 = vector.shape_cast %63 : vector<8x8xf32> to vector<8x8x1xf32>
    %65 = tpu.reciprocal %64 {approx = true} : vector<8x8x1xf32> -> vector<8x8x1xf32>
    %66 = vector.broadcast %65 : vector<8x8x1xf32> to vector<8x8x8xf32>
    %67 = arith.mulf %62, %66 : vector<8x8x8xf32>
    "tpu.trace_start"() <{level = 10 : i32, message = "bqk,bkd->bqd"}> : () -> ()
    %cst_23 = arith.constant dense<0.000000e+00> : vector<8x8x32xf32>
    %68 = tpu.matmul %67, %46, %cst_23 {dimension_numbers = #tpu.dot_dimension_numbers<[2], [1], [1], [2], [0, 0, 0, 1, 1, 2], [0], [0]>} : vector<8x8x8xf32>, vector<8x8x32xf32>, vector<8x8x32xf32> -> vector<8x8x32xf32>
    "tpu.trace_stop"() : () -> ()
    %69 = vector.extract_strided_slice %68 {offsets = [0, 0, 0], sizes = [2, 8, 32], strides = [1, 1, 1]} : vector<8x8x32xf32> to vector<2x8x32xf32>
    %70 = vector.extract_strided_slice %68 {offsets = [2, 0, 0], sizes = [2, 8, 32], strides = [1, 1, 1]} : vector<8x8x32xf32> to vector<2x8x32xf32>
    %71 = vector.extract_strided_slice %68 {offsets = [4, 0, 0], sizes = [2, 8, 32], strides = [1, 1, 1]} : vector<8x8x32xf32> to vector<2x8x32xf32>
    %72 = vector.extract_strided_slice %68 {offsets = [6, 0, 0], sizes = [2, 8, 32], strides = [1, 1, 1]} : vector<8x8x32xf32> to vector<2x8x32xf32>
    %73 = tpu.concatenate %69, %70, %71, %72 in 2 : vector<2x8x32xf32>, vector<2x8x32xf32>, vector<2x8x32xf32>, vector<2x8x32xf32> -> vector<2x8x128xf32>
    %74 = vector.shape_cast %73 : vector<2x8x128xf32> to vector<16x128xf32>
    %75 = arith.truncf %74 : vector<16x128xf32> to vector<16x128xbf16>
    %c0_24 = arith.constant 0 : index
    %c0_25 = arith.constant 0 : index
    %76 = vector.load %arg9[%c0_24, %c0_25] : memref<128x128xbf16, #tpu.memory_space<vmem>>, vector<128x128xbf16>
    %cst_26 = arith.constant dense<0.000000e+00> : vector<16x128xf32>
    %77 = tpu.matmul %75, %76, %cst_26 {dimension_numbers = #tpu.dot_dimension_numbers<[1], [0], [0], [1], [0, 0, 1, 1], [], []>} : vector<16x128xbf16>, vector<128x128xbf16>, vector<16x128xf32> -> vector<16x128xf32>
    %c0_27 = arith.constant 0 : index
    %c0_28 = arith.constant 0 : index
    %78 = vector.load %arg10[%c0_27, %c0_28] : memref<1x128xf32, #tpu.memory_space<vmem>>, vector<1x128xf32>
    %79 = vector.broadcast %78 : vector<1x128xf32> to vector<16x128xf32>
    %80 = arith.addf %77, %79 : vector<16x128xf32>
    %81 = arith.addf %24, %80 : vector<16x128xf32>
    %c1 = arith.constant 1 : index
    %c0_29 = arith.constant 0 : index
    %82 = vector.load %arg5[%c1, %c0_29] : memref<3x128xf32, #tpu.memory_space<vmem>>, vector<1x128xf32>
    %c1_30 = arith.constant 1 : index
    %c0_31 = arith.constant 0 : index
    %83 = vector.load %arg6[%c1_30, %c0_31] : memref<3x128xf32, #tpu.memory_space<vmem>>, vector<1x128xf32>
    %cst_32 = arith.constant dense<0.000000e+00> : vector<16xf32>
    %84 = vector.multi_reduction <add>, %81, %cst_32 [1] : vector<16x128xf32> to vector<16xf32>
    %85 = vector.shape_cast %84 : vector<16xf32> to vector<16x1xf32>
    %cst_33 = arith.constant 1.280000e+02 : f32
    %86 = vector.broadcast %cst_33 : f32 to vector<16x1xf32>
    %87 = arith.divf %85, %86 : vector<16x1xf32>
    %88 = vector.broadcast %87 : vector<16x1xf32> to vector<16x128xf32>
    %89 = arith.subf %81, %88 : vector<16x128xf32>
    %90 = arith.mulf %89, %89 : vector<16x128xf32>
    %cst_34 = arith.constant dense<0.000000e+00> : vector<16xf32>
    %91 = vector.multi_reduction <add>, %90, %cst_34 [1] : vector<16x128xf32> to vector<16xf32>
    %92 = vector.shape_cast %91 : vector<16xf32> to vector<16x1xf32>
    %cst_35 = arith.constant 1.280000e+02 : f32
    %93 = vector.broadcast %cst_35 : f32 to vector<16x1xf32>
    %94 = arith.divf %92, %93 : vector<16x1xf32>
    %95 = vector.broadcast %87 : vector<16x1xf32> to vector<16x128xf32>
    %96 = arith.subf %81, %95 : vector<16x128xf32>
    %cst_36 = arith.constant 9.99999996E-13 : f32
    %97 = vector.broadcast %cst_36 : f32 to vector<16x1xf32>
    %98 = arith.addf %94, %97 : vector<16x1xf32>
    %99 = math.rsqrt %98 : vector<16x1xf32>
    %100 = vector.broadcast %99 : vector<16x1xf32> to vector<16x128xf32>
    %101 = arith.mulf %96, %100 : vector<16x128xf32>
    %102 = vector.broadcast %82 : vector<1x128xf32> to vector<16x128xf32>
    %103 = arith.mulf %101, %102 : vector<16x128xf32>
    %104 = vector.broadcast %83 : vector<1x128xf32> to vector<16x128xf32>
    %105 = arith.addf %103, %104 : vector<16x128xf32>
    %106 = arith.truncf %105 : vector<16x128xf32> to vector<16x128xbf16>
    %c0_37 = arith.constant 0 : index
    %c0_38 = arith.constant 0 : index
    %107 = vector.load %arg11[%c0_37, %c0_38] : memref<128x512xbf16, #tpu.memory_space<vmem>>, vector<128x512xbf16>
    %cst_39 = arith.constant dense<0.000000e+00> : vector<16x512xf32>
    %108 = tpu.matmul %106, %107, %cst_39 {dimension_numbers = #tpu.dot_dimension_numbers<[1], [0], [0], [1], [0, 0, 1, 1], [], []>} : vector<16x128xbf16>, vector<128x512xbf16>, vector<16x512xf32> -> vector<16x512xf32>
    %c0_40 = arith.constant 0 : index
    %c0_41 = arith.constant 0 : index
    %109 = vector.load %arg12[%c0_40, %c0_41] : memref<1x512xf32, #tpu.memory_space<vmem>>, vector<1x512xf32>
    %110 = vector.broadcast %109 : vector<1x512xf32> to vector<16x512xf32>
    %111 = arith.addf %108, %110 : vector<16x512xf32>
    %112 = arith.mulf %111, %111 : vector<16x512xf32>
    %113 = arith.mulf %111, %112 : vector<16x512xf32>
    %cst_42 = arith.constant 4.471500e-02 : f32
    %114 = vector.broadcast %cst_42 : f32 to vector<16x512xf32>
    %115 = arith.mulf %114, %113 : vector<16x512xf32>
    %116 = arith.addf %111, %115 : vector<16x512xf32>
    %cst_43 = arith.constant 0.797884583 : f32
    %117 = vector.broadcast %cst_43 : f32 to vector<16x512xf32>
    %118 = arith.mulf %117, %116 : vector<16x512xf32>
    %119 = math.tanh %118 : vector<16x512xf32>
    %cst_44 = arith.constant 1.000000e+00 : f32
    %120 = vector.broadcast %cst_44 : f32 to vector<16x512xf32>
    %121 = arith.addf %120, %119 : vector<16x512xf32>
    %cst_45 = arith.constant 5.000000e-01 : f32
    %122 = vector.broadcast %cst_45 : f32 to vector<16x512xf32>
    %123 = arith.mulf %122, %121 : vector<16x512xf32>
    %124 = arith.mulf %111, %123 : vector<16x512xf32>
    %125 = arith.truncf %124 : vector<16x512xf32> to vector<16x512xbf16>
    %c0_46 = arith.constant 0 : index
    %c0_47 = arith.constant 0 : index
    %126 = vector.load %arg13[%c0_46, %c0_47] : memref<512x128xbf16, #tpu.memory_space<vmem>>, vector<512x128xbf16>
    %cst_48 = arith.constant dense<0.000000e+00> : vector<16x128xf32>
    %127 = tpu.matmul %125, %126, %cst_48 {dimension_numbers = #tpu.dot_dimension_numbers<[1], [0], [0], [1], [0, 0, 1, 1], [], []>} : vector<16x512xbf16>, vector<512x128xbf16>, vector<16x128xf32> -> vector<16x128xf32>
    %c0_49 = arith.constant 0 : index
    %c0_50 = arith.constant 0 : index
    %128 = vector.load %arg14[%c0_49, %c0_50] : memref<1x128xf32, #tpu.memory_space<vmem>>, vector<1x128xf32>
    %129 = vector.broadcast %128 : vector<1x128xf32> to vector<16x128xf32>
    %130 = arith.addf %127, %129 : vector<16x128xf32>
    %131 = arith.addf %105, %130 : vector<16x128xf32>
    %c2 = arith.constant 2 : index
    %c0_51 = arith.constant 0 : index
    %132 = vector.load %arg5[%c2, %c0_51] : memref<3x128xf32, #tpu.memory_space<vmem>>, vector<1x128xf32>
    %c2_52 = arith.constant 2 : index
    %c0_53 = arith.constant 0 : index
    %133 = vector.load %arg6[%c2_52, %c0_53] : memref<3x128xf32, #tpu.memory_space<vmem>>, vector<1x128xf32>
    %cst_54 = arith.constant dense<0.000000e+00> : vector<16xf32>
    %134 = vector.multi_reduction <add>, %131, %cst_54 [1] : vector<16x128xf32> to vector<16xf32>
    %135 = vector.shape_cast %134 : vector<16xf32> to vector<16x1xf32>
    %cst_55 = arith.constant 1.280000e+02 : f32
    %136 = vector.broadcast %cst_55 : f32 to vector<16x1xf32>
    %137 = arith.divf %135, %136 : vector<16x1xf32>
    %138 = vector.broadcast %137 : vector<16x1xf32> to vector<16x128xf32>
    %139 = arith.subf %131, %138 : vector<16x128xf32>
    %140 = arith.mulf %139, %139 : vector<16x128xf32>
    %cst_56 = arith.constant dense<0.000000e+00> : vector<16xf32>
    %141 = vector.multi_reduction <add>, %140, %cst_56 [1] : vector<16x128xf32> to vector<16xf32>
    %142 = vector.shape_cast %141 : vector<16xf32> to vector<16x1xf32>
    %cst_57 = arith.constant 1.280000e+02 : f32
    %143 = vector.broadcast %cst_57 : f32 to vector<16x1xf32>
    %144 = arith.divf %142, %143 : vector<16x1xf32>
    %145 = vector.broadcast %137 : vector<16x1xf32> to vector<16x128xf32>
    %146 = arith.subf %131, %145 : vector<16x128xf32>
    %cst_58 = arith.constant 9.99999996E-13 : f32
    %147 = vector.broadcast %cst_58 : f32 to vector<16x1xf32>
    %148 = arith.addf %144, %147 : vector<16x1xf32>
    %149 = math.rsqrt %148 : vector<16x1xf32>
    %150 = vector.broadcast %149 : vector<16x1xf32> to vector<16x128xf32>
    %151 = arith.mulf %146, %150 : vector<16x128xf32>
    %152 = vector.broadcast %132 : vector<1x128xf32> to vector<16x128xf32>
    %153 = arith.mulf %151, %152 : vector<16x128xf32>
    %154 = vector.broadcast %133 : vector<1x128xf32> to vector<16x128xf32>
    %155 = arith.addf %153, %154 : vector<16x128xf32>
    %156 = arith.truncf %155 : vector<16x128xf32> to vector<16x128xbf16>
    %c0_59 = arith.constant 0 : index
    %c0_60 = arith.constant 0 : index
    %157 = vector.load %arg15[%c0_59, %c0_60] : memref<128x128xbf16, #tpu.memory_space<vmem>>, vector<128x128xbf16>
    %cst_61 = arith.constant dense<0.000000e+00> : vector<16x128xf32>
    %158 = tpu.matmul %156, %157, %cst_61 {dimension_numbers = #tpu.dot_dimension_numbers<[1], [0], [0], [1], [0, 0, 1, 1], [], []>} : vector<16x128xbf16>, vector<128x128xbf16>, vector<16x128xf32> -> vector<16x128xf32>
    %c0_62 = arith.constant 0 : index
    %c0_63 = arith.constant 0 : index
    %159 = vector.load %arg16[%c0_62, %c0_63] : memref<1x128xf32, #tpu.memory_space<vmem>>, vector<1x128xf32>
    %160 = vector.broadcast %159 : vector<1x128xf32> to vector<16x128xf32>
    %161 = arith.addf %158, %160 : vector<16x128xf32>
    %c0_64 = arith.constant 0 : index
    %c0_65 = arith.constant 0 : index
    %162 = vector.load %arg17[%c0_64, %c0_65] : memref<16x128xf32, #tpu.memory_space<vmem>>, vector<16x128xf32>
    tpu.vector_store %arg17[%c0_64, %c0_65], %161 {strides = array<i32>} : memref<16x128xf32, #tpu.memory_space<vmem>>, vector<16x128xf32>,
    %cst_66 = arith.constant dense<0xFF800000> : vector<16xf32>
    %163 = vector.multi_reduction <maximumf>, %161, %cst_66 [1] : vector<16x128xf32> to vector<16xf32>
    %164 = vector.shape_cast %163 : vector<16xf32> to vector<16x1xf32>
    %165 = vector.broadcast %164 : vector<16x1xf32> to vector<16x128xf32>
    %166 = arith.subf %161, %165 : vector<16x128xf32>
    %167 = math.exp %166 : vector<16x128xf32>
    %cst_67 = arith.constant dense<0.000000e+00> : vector<16xf32>
    %168 = vector.multi_reduction <add>, %167, %cst_67 [1] : vector<16x128xf32> to vector<16xf32>
    %169 = vector.shape_cast %168 : vector<16xf32> to vector<16x1xf32>
    %170 = math.log %169 : vector<16x1xf32>
    %171 = tpu.iota {dimensions = array<i32: 1>} : vector<16x128xi32>
    %c0_68 = arith.constant 0 : index
    %c0_69 = arith.constant 0 : index
    %172 = vector.load %arg3[%c0_68, %c0_69] : memref<16x1xi32, #tpu.memory_space<vmem>>, vector<16x1xi32>
    %173 = vector.broadcast %172 : vector<16x1xi32> to vector<16x128xi32>
    %174 = arith.cmpi eq, %171, %173 : vector<16x128xi32>
    %cst_70 = arith.constant 0.000000e+00 : f32
    %175 = vector.broadcast %cst_70 : f32 to vector<16x128xf32>
    %176 = arith.select %174, %166, %175 : vector<16x128xi1>, vector<16x128xf32>
    %cst_71 = arith.constant dense<0.000000e+00> : vector<16xf32>
    %177 = vector.multi_reduction <add>, %176, %cst_71 [1] : vector<16x128xf32> to vector<16xf32>
    %178 = vector.shape_cast %177 : vector<16xf32> to vector<16x1xf32>
    %179 = arith.subf %170, %178 : vector<16x1xf32>
    %c0_72 = arith.constant 0 : index
    %c0_73 = arith.constant 0 : index
    %180 = vector.load %arg4[%c0_72, %c0_73] : memref<16x1xf32, #tpu.memory_space<vmem>>, vector<16x1xf32>
    %181 = arith.mulf %179, %180 : vector<16x1xf32>
    %182 = vector.shape_cast %181 : vector<16x1xf32> to vector<1x16x1xf32>
    %cst_74 = arith.constant dense<0.000000e+00> : vector<1xf32>
    %183 = vector.multi_reduction <add>, %182, %cst_74 [1, 2] : vector<1x16x1xf32> to vector<1xf32>
    %184 = vector.shape_cast %183 : vector<1xf32> to vector<1x1x1xf32>
    %185 = vector.extract %184[0, 0, 0] : f32 from vector<1x1x1xf32>
    %186 = vector.broadcast %185 : f32 to vector<1x1xf32>
    %187 = vector.shape_cast %180 : vector<16x1xf32> to vector<1x16x1xf32>
    %cst_75 = arith.constant dense<0.000000e+00> : vector<1xf32>
    %188 = vector.multi_reduction <add>, %187, %cst_75 [1, 2] : vector<1x16x1xf32> to vector<1xf32>
    %189 = vector.shape_cast %188 : vector<1xf32> to vector<1x1x1xf32>
    %190 = vector.extract %189[0, 0, 0] : f32 from vector<1x1x1xf32>
    %191 = vector.broadcast %190 : f32 to vector<1x1xf32>
    %192 = arith.divf %186, %191 : vector<1x1xf32>
    %c0_76 = arith.constant 0 : index
    %c0_77 = arith.constant 0 : index
    %193 = vector.load %arg18[%c0_76, %c0_77] : memref<1x1xf32, #tpu.memory_space<vmem>>, vector<1x1xf32>
    tpu.vector_store %arg18[%c0_76, %c0_77], %192 {strides = array<i32>} : memref<1x1xf32, #tpu.memory_space<vmem>>, vector<1x1xf32>,
    return
  }
  func.func @transform_0(%arg0: i32) -> (i32, i32) {
    %c0_i32 = arith.constant 0 : i32
    %c0_i32_0 = arith.constant 0 : i32
    %c0_i32_1 = arith.constant 0 : i32
    return %c0_i32, %c0_i32_0 : i32, i32
  }
  func.func @transform_1(%arg0: i32) -> (i32, i32, i32) {
    %c0_i32 = arith.constant 0 : i32
    %c0_i32_0 = arith.constant 0 : i32
    %c0_i32_1 = arith.constant 0 : i32
    %c0_i32_2 = arith.constant 0 : i32
    return %c0_i32, %c0_i32_0, %c0_i32_1 : i32, i32, i32
  }
  func.func @transform_2(%arg0: i32) -> (i32, i32) {
    %c0_i32 = arith.constant 0 : i32
    %c0_i32_0 = arith.constant 0 : i32
    %c0_i32_1 = arith.constant 0 : i32
    return %c0_i32, %c0_i32_0 : i32, i32
  }
  func.func @transform_3(%arg0: i32) -> (i32, i32) {
    %c0_i32 = arith.constant 0 : i32
    %c0_i32_0 = arith.constant 0 : i32
    %c0_i32_1 = arith.constant 0 : i32
    return %c0_i32, %c0_i32_0 : i32, i32
  }
  func.func @transform_4(%arg0: i32) -> (i32, i32) {
    %c0_i32 = arith.constant 0 : i32
    %c0_i32_0 = arith.constant 0 : i32
    %c0_i32_1 = arith.constant 0 : i32
    return %c0_i32, %c0_i32_0 : i32, i32
  }
  func.func @transform_5(%arg0: i32) -> (i32, i32) {
    %c0_i32 = arith.constant 0 : i32
    %c0_i32_0 = arith.constant 0 : i32
    %c0_i32_1 = arith.constant 0 : i32
    return %c0_i32, %c0_i32_0 : i32, i32
  }
  func.func @transform_6(%arg0: i32) -> (i32, i32) {
    %c0_i32 = arith.constant 0 : i32
    %c0_i32_0 = arith.constant 0 : i32
    %c0_i32_1 = arith.constant 0 : i32
    return %c0_i32, %c0_i32_0 : i32, i32
  }
  func.func @transform_7(%arg0: i32) -> (i32, i32) {
    %c0_i32 = arith.constant 0 : i32
    %c0_i32_0 = arith.constant 0 : i32
    %c0_i32_1 = arith.constant 0 : i32
    return %c0_i32, %c0_i32_0 : i32, i32
  }
  func.func @transform_8(%arg0: i32) -> (i32, i32) {
    %c0_i32 = arith.constant 0 : i32
    %c0_i32_0 = arith.constant 0 : i32
    %c0_i32_1 = arith.constant 0 : i32
    return %c0_i32, %c0_i32_0 : i32, i32
  }
  func.func @transform_9(%arg0: i32) -> (i32, i32) {
    %c0_i32 = arith.constant 0 : i32
    %c0_i32_0 = arith.constant 0 : i32
    %c0_i32_1 = arith.constant 0 : i32
    return %c0_i32, %c0_i32_0 : i32, i32
  }
  func.func @transform_10(%arg0: i32) -> (i32, i32) {
    %c0_i32 = arith.constant 0 : i32
    %c0_i32_0 = arith.constant 0 : i32
    %c0_i32_1 = arith.constant 0 : i32
    return %c0_i32, %c0_i32_0 : i32, i32
  }
  func.func @transform_11(%arg0: i32) -> (i32, i32) {
    %c0_i32 = arith.constant 0 : i32
    %c0_i32_0 = arith.constant 0 : i32
    %c0_i32_1 = arith.constant 0 : i32
    return %c0_i32, %c0_i32_0 : i32, i32
  }
  func.func @transform_12(%arg0: i32) -> (i32, i32) {
    %c0_i32 = arith.constant 0 : i32
    %c0_i32_0 = arith.constant 0 : i32
    %c0_i32_1 = arith.constant 0 : i32
    return %c0_i32, %c0_i32_0 : i32, i32
  }
  func.func @transform_13(%arg0: i32) -> (i32, i32) {
    %c0_i32 = arith.constant 0 : i32
    %c0_i32_0 = arith.constant 0 : i32
    %c0_i32_1 = arith.constant 0 : i32
    return %c0_i32, %c0_i32_0 : i32, i32
  }
  func.func @transform_14(%arg0: i32) -> (i32, i32) {
    %c0_i32 = arith.constant 0 : i32
    %c0_i32_0 = arith.constant 0 : i32
    %c0_i32_1 = arith.constant 0 : i32
    return %c0_i32, %c0_i32_0 : i32, i32
  }
  func.func @transform_15(%arg0: i32) -> (i32, i32) {
    %c0_i32 = arith.constant 0 : i32
    %c0_i32_0 = arith.constant 0 : i32
    %c0_i32_1 = arith.constant 0 : i32
    return %c0_i32, %c0_i32_0 : i32, i32
  }
  func.func @transform_16(%arg0: i32) -> (i32, i32) {
    %c0_i32 = arith.constant 0 : i32
    %c0_i32_0 = arith.constant 0 : i32
    %c0_i32_1 = arith.constant 0 : i32
    return %c0_i32, %c0_i32_0 : i32, i32
  }
  func.func @transform_17(%arg0: i32) -> (i32, i32) {
    %c0_i32 = arith.constant 0 : i32
    %c0_i32_0 = arith.constant 0 : i32
    %c0_i32_1 = arith.constant 0 : i32
    return %c0_i32, %c0_i32_0 : i32, i32
  }
}

</mosaic_0001>

<llo_original>
// kernel: tpu_custom_call.1
$region0: #{tpu_custom_call.1}
  #allocation0 [shape = 'u32[]', space=smem, size = 0x4, offset = 0x4, fixed_abs, tag = 'smem constant byte address 0x4 - core index']
  #allocation1 [shape = 'u32[144,128]{1,0:T(1,128)}', space=vmem, size = 0x12000, scoped, tag = 'internal scratch']
  %s0 = inlined_call_operand.hbm [shape: f32[16,128], index: 0, kind: input, shape index: {}]
  %s1 = inlined_call_operand.hbm [shape: f32[2,1,8], index: 1, kind: input, shape index: {}]
  %s2 = inlined_call_operand.vmem [shape: s32[16,1], index: 2, kind: input, shape index: {}]
  %s3 = inlined_call_operand.vmem [shape: f32[16,1], index: 3, kind: input, shape index: {}]
  %s4 = inlined_call_operand.hbm [shape: f32[3,128], index: 4, kind: input, shape index: {}]
  %s5 = inlined_call_operand.hbm [shape: f32[3,128], index: 5, kind: input, shape index: {}]
  %s6 = inlined_call_operand.hbm [shape: bf16[128,384], index: 6, kind: input, shape index: {}]
  %s7 = inlined_call_operand.hbm [shape: f32[1,384], index: 7, kind: input, shape index: {}]
  %s8 = inlined_call_operand.vmem [shape: bf16[128,128], index: 8, kind: input, shape index: {}]
  %s9 = inlined_call_operand.hbm [shape: f32[1,128], index: 9, kind: input, shape index: {}]
  %s10 = inlined_call_operand.hbm [shape: bf16[128,512], index: 10, kind: input, shape index: {}]
  %s11 = inlined_call_operand.vmem [shape: f32[1,512], index: 11, kind: input, shape index: {}]
  %s12 = inlined_call_operand.hbm [shape: bf16[512,128], index: 12, kind: input, shape index: {}]
  %s13 = inlined_call_operand.vmem [shape: f32[1,128], index: 13, kind: input, shape index: {}]
  %s14 = inlined_call_operand.hbm [shape: bf16[128,128], index: 14, kind: input, shape index: {}]
  %s15 = inlined_call_operand.vmem [shape: f32[1,128], index: 15, kind: input, shape index: {}]
  %s16 = inlined_call_operand.hbm [shape: f32[16,128], index: 16, kind: output, shape index: {0}]
  %s17 = inlined_call_operand.hbm [shape: f32[1,1], index: 17, kind: output, shape index: {1}]
  %18 = xla_tuple %s16, %s17
  %s19 = sld [smem:[#allocation0]]
  $region122: #{tpu_custom_call.1} parent=0
    _
  %s21 = ssub.s32 1, %s19
  %s22 = scalar_select 0, %s21, %s19
  $region1: #{tpu_custom_call.1} parent=0
    #allocation2 [shape = 'u8[8192]{0}', space=vmem, size = 0x2000, scoped, tag = 'input window, operand 0, single buffered']
    #allocation3 [shape = 's32[1]{0}', space=sflag, size = 0x4, scoped, tag = 'scoped memory for tpu_custom_call.1']
    #allocation4 [shape = 's32[1]{0}', space=sflag, size = 0x4, scoped, tag = 'scoped memory for tpu_custom_call.1']
    #allocation5 [shape = 'u8[1024]{0}', space=vmem, size = 0x400, scoped, tag = 'input window, operand 1, single buffered']
    #allocation6 [shape = 's32[1]{0}', space=sflag, size = 0x4, scoped, tag = 'scoped memory for tpu_custom_call.1']
    #allocation7 [shape = 'u8[2048]{0}', space=vmem, size = 0x800, scoped, tag = 'input window, operand 4, single buffered']
    #allocation8 [shape = 'u8[2048]{0}', space=vmem, size = 0x800, scoped, tag = 'input window, operand 5, single buffered']
    #allocation9 [shape = 's32[1]{0}', space=sflag, size = 0x4, scoped, tag = 'scoped memory for tpu_custom_call.1']
    #allocation10 [shape = 'u8[98304]{0}', space=vmem, size = 0x18000, scoped, tag = 'input window, operand 6, single buffered']
    #allocation11 [shape = 'u8[1536]{0}', space=vmem, size = 0x800, scoped, tag = 'input window, operand 7, single buffered']
    #allocation12 [shape = 's32[1]{0}', space=sflag, size = 0x4, scoped, tag = 'scoped memory for tpu_custom_call.1']
    #allocation13 [shape = 'u8[512]{0}', space=vmem, size = 0x400, scoped, tag = 'input window, operand 9, single buffered']
    #allocation14 [shape = 'u8[131072]{0}', space=vmem, size = 0x20000, scoped, tag = 'input window, operand 10, single buffered']
    #allocation15 [shape = 's32[1]{0}', space=sflag, size = 0x4, scoped, tag = 'scoped memory for tpu_custom_call.1']
    #allocation16 [shape = 'u8[131072]{0}', space=vmem, size = 0x20000, scoped, tag = 'input window, operand 12, single buffered']
    #allocation17 [shape = 'u8[32768]{0}', space=vmem, size = 0x8000, scoped, tag = 'input window, operand 14, single buffered']
    #allocation18 [shape = 's32[1]{0}', space=sflag, size = 0x4, scoped, tag = 'scoped memory for tpu_custom_call.1']
    #allocation19 [shape = 'u8[8192]{0}', space=vmem, size = 0x2000, scoped, tag = 'output window, operand 0, single buffered']
    #allocation20 [shape = 'u8[512]{0}', space=vmem, size = 0x400, scoped, tag = 'output window, operand 1, single buffered']
    #allocation21 [shape = 's32[1]{0}', space=sflag, size = 0x4, scoped, tag = 'scoped memory for tpu_custom_call.1']
    %23 = vsyncpa [#allocation3], 0
    %24 = vsyncpa [#allocation6], 0
    %25 = vsyncpa [#allocation9], 0
    %26 = vsyncpa [#allocation12], 0
    %27 = vsyncpa [#allocation15], 0
    %28 = vsyncpa [#allocation18], 0
    %29 = vsyncpa [#allocation4], 0
    %30 = vsyncpa [#allocation21], 0
    // Predicated region
    $region2: #{tpu_custom_call.1} parent=1 // pred_check
      _
    $region3: #{tpu_custom_call.1} parent=1 // pred_check_branch
      %32 = sbr.rel (0) target = $region5
    $region4: #{tpu_custom_call.1} parent=1 // pred_region
      %s34 = ssub.s32 256, 256
      %35 = vsyncadd [#allocation3], %s34
      %s36 = sshll.u32 [#allocation2], 4
      %s37 = int_to_ptr.vmem [resolvable:$true] %s36
      %42 = dma.hbm_to_vmem [thread:$0]  %s0, 256, %s37, [#allocation3], 128, 128, 8
    $region5: #{tpu_custom_call.1} parent=1 // pred_fallthru
      _
    // Predicated region
    $region6: #{tpu_custom_call.1} parent=1 // pred_check
      _
    $region7: #{tpu_custom_call.1} parent=1 // pred_check_branch
      %44 = sbr.rel (0) target = $region9
    $region8: #{tpu_custom_call.1} parent=1 // pred_region
      %s46 = ssub.s32 32, 32
      %47 = vsyncadd [#allocation6], %s46
      %s48 = sshll.u32 [#allocation5], 4
      %s49 = int_to_ptr.vmem [resolvable:$true] %s48
      %54 = dma.hbm_to_vmem [thread:$0]  %s1, 32, %s49, [#allocation6], 16, 16, 1
    $region9: #{tpu_custom_call.1} parent=1 // pred_fallthru
      _
    // Predicated region
    $region10: #{tpu_custom_call.1} parent=1 // pred_check
      _
    $region11: #{tpu_custom_call.1} parent=1 // pred_check_branch
      %56 = sbr.rel (0) target = $region13
    $region12: #{tpu_custom_call.1} parent=1 // pred_region
      _
    $region13: #{tpu_custom_call.1} parent=1 // pred_fallthru
      _
    // Predicated region
    $region14: #{tpu_custom_call.1} parent=1 // pred_check
      _
    $region15: #{tpu_custom_call.1} parent=1 // pred_check_branch
      %58 = sbr.rel (0) target = $region17
    $region16: #{tpu_custom_call.1} parent=1 // pred_region
      _
    $region17: #{tpu_custom_call.1} parent=1 // pred_fallthru
      _
    // Predicated region
    $region18: #{tpu_custom_call.1} parent=1 // pred_check
      _
    $region19: #{tpu_custom_call.1} parent=1 // pred_check_branch
      %60 = sbr.rel (0) target = $region21
    $region20: #{tpu_custom_call.1} parent=1 // pred_region
      %s62 = ssub.s32 64, 64
      %63 = vsyncadd [#allocation6], %s62
      %s65 = sshll.u32 [#allocation7], 4
      %s66 = int_to_ptr.vmem [resolvable:$true] %s65
      %68 = dma.hbm_to_vmem [thread:$0]  %s4, 64, %s66, [#allocation6]
    $region21: #{tpu_custom_call.1} parent=1 // pred_fallthru
      _
    // Predicated region
    $region22: #{tpu_custom_call.1} parent=1 // pred_check
      _
    $region23: #{tpu_custom_call.1} parent=1 // pred_check_branch
      %70 = sbr.rel (0) target = $region25
    $region24: #{tpu_custom_call.1} parent=1 // pred_region
      %s72 = ssub.s32 64, 64
      %73 = vsyncadd [#allocation9], %s72
      %s75 = sshll.u32 [#allocation8], 4
      %s76 = int_to_ptr.vmem [resolvable:$true] %s75
      %78 = dma.hbm_to_vmem [thread:$0]  %s5, 64, %s76, [#allocation9]
    $region25: #{tpu_custom_call.1} parent=1 // pred_fallthru
      _
    // Predicated region
    $region26: #{tpu_custom_call.1} parent=1 // pred_check
      _
    $region27: #{tpu_custom_call.1} parent=1 // pred_check_branch
      %80 = sbr.rel (0) target = $region29
    $region28: #{tpu_custom_call.1} parent=1 // pred_region
      %s82 = ssub.s32 3072, 3072
      %83 = vsyncadd [#allocation9], %s82
      %s84 = sshll.u32 [#allocation10], 4
      %s85 = int_to_ptr.vmem [resolvable:$true] %s84
      %90 = dma.hbm_to_vmem [thread:$0]  %s6, 3072, %s85, [#allocation9], 192, 192, 12
    $region29: #{tpu_custom_call.1} parent=1 // pred_fallthru
      _
    // Predicated region
    $region30: #{tpu_custom_call.1} parent=1 // pred_check
      _
    $region31: #{tpu_custom_call.1} parent=1 // pred_check_branch
      %92 = sbr.rel (0) target = $region33
    $region32: #{tpu_custom_call.1} parent=1 // pred_region
      %s94 = ssub.s32 48, 48
      %95 = vsyncadd [#allocation12], %s94
      %s97 = sshll.u32 [#allocation11], 4
      %s98 = int_to_ptr.vmem [resolvable:$true] %s97
      %100 = dma.hbm_to_vmem [thread:$0]  %s7, 48, %s98, [#allocation12]
    $region33: #{tpu_custom_call.1} parent=1 // pred_fallthru
      _
    // Predicated region
    $region34: #{tpu_custom_call.1} parent=1 // pred_check
      _
    $region35: #{tpu_custom_call.1} parent=1 // pred_check_branch
      %102 = sbr.rel (0) target = $region37
    $region36: #{tpu_custom_call.1} parent=1 // pred_region
      _
    $region37: #{tpu_custom_call.1} parent=1 // pred_fallthru
      _
    // Predicated region
    $region38: #{tpu_custom_call.1} parent=1 // pred_check
      _
    $region39: #{tpu_custom_call.1} parent=1 // pred_check_branch
      %104 = sbr.rel (0) target = $region41
    $region40: #{tpu_custom_call.1} parent=1 // pred_region
      %s106 = ssub.s32 16, 16
      %107 = vsyncadd [#allocation12], %s106
      %s109 = sshll.u32 [#allocation13], 4
      %s110 = int_to_ptr.vmem [resolvable:$true] %s109
      %112 = dma.hbm_to_vmem [thread:$0]  %s9, 16, %s110, [#allocation12]
    $region41: #{tpu_custom_call.1} parent=1 // pred_fallthru
      _
    // Predicated region
    $region42: #{tpu_custom_call.1} parent=1 // pred_check
      _
    $region43: #{tpu_custom_call.1} parent=1 // pred_check_branch
      %114 = sbr.rel (0) target = $region45
    $region44: #{tpu_custom_call.1} parent=1 // pred_region
      %s116 = ssub.s32 4096, 4096
      %117 = vsyncadd [#allocation15], %s116
      %s118 = sshll.u32 [#allocation14], 4
      %s119 = int_to_ptr.vmem [resolvable:$true] %s118
      %124 = dma.hbm_to_vmem [thread:$0]  %s10, 4096, %s119, [#allocation15], 256, 256, 16
    $region45: #{tpu_custom_call.1} parent=1 // pred_fallthru
      _
    // Predicated region
    $region46: #{tpu_custom_call.1} parent=1 // pred_check
      _
    $region47: #{tpu_custom_call.1} parent=1 // pred_check_branch
      %126 = sbr.rel (0) target = $region49
    $region48: #{tpu_custom_call.1} parent=1 // pred_region
      _
    $region49: #{tpu_custom_call.1} parent=1 // pred_fallthru
      _
    // Predicated region
    $region50: #{tpu_custom_call.1} parent=1 // pred_check
      _
    $region51: #{tpu_custom_call.1} parent=1 // pred_check_branch
      %128 = sbr.rel (0) target = $region53
    $region52: #{tpu_custom_call.1} parent=1 // pred_region
      %s130 = ssub.s32 4096, 4096
      %131 = vsyncadd [#allocation15], %s130
      %s132 = sshll.u32 [#allocation16], 4
      %s133 = int_to_ptr.vmem [resolvable:$true] %s132
      %138 = dma.hbm_to_vmem [thread:$0]  %s12, 4096, %s133, [#allocation15], 64, 64, 4
    $region53: #{tpu_custom_call.1} parent=1 // pred_fallthru
      _
    // Predicated region
    $region54: #{tpu_custom_call.1} parent=1 // pred_check
      _
    $region55: #{tpu_custom_call.1} parent=1 // pred_check_branch
      %140 = sbr.rel (0) target = $region57
    $region56: #{tpu_custom_call.1} parent=1 // pred_region
      _
    $region57: #{tpu_custom_call.1} parent=1 // pred_fallthru
      _
    // Predicated region
    $region58: #{tpu_custom_call.1} parent=1 // pred_check
      _
    $region59: #{tpu_custom_call.1} parent=1 // pred_check_branch
      %142 = sbr.rel (0) target = $region61
    $region60: #{tpu_custom_call.1} parent=1 // pred_region
      %s144 = ssub.s32 1024, 1024
      %145 = vsyncadd [#allocation18], %s144
      %s146 = sshll.u32 [#allocation17], 4
      %s147 = int_to_ptr.vmem [resolvable:$true] %s146
      %152 = dma.hbm_to_vmem [thread:$0]  %s14, 1024, %s147, [#allocation18], 64, 64, 4
    $region61: #{tpu_custom_call.1} parent=1 // pred_fallthru
      _
    // Predicated region
    $region62: #{tpu_custom_call.1} parent=1 // pred_check
      _
    $region63: #{tpu_custom_call.1} parent=1 // pred_check_branch
      %154 = sbr.rel (0) target = $region65
    $region64: #{tpu_custom_call.1} parent=1 // pred_region
      _
    $region65: #{tpu_custom_call.1} parent=1 // pred_fallthru
      _
    // Predicated region
    $region66: #{tpu_custom_call.1} parent=1 // pred_check
      _
    $region67: #{tpu_custom_call.1} parent=1 // pred_check_branch
      %156 = sbr.rel (0) target = $region69
    $region68: #{tpu_custom_call.1} parent=1 // pred_region
      %157 = dma.done [#allocation3], 256
    $region69: #{tpu_custom_call.1} parent=1 // pred_fallthru
      _
    // Predicated region
    $region70: #{tpu_custom_call.1} parent=1 // pred_check
      _
    $region71: #{tpu_custom_call.1} parent=1 // pred_check_branch
      %159 = sbr.rel (0) target = $region73
    $region72: #{tpu_custom_call.1} parent=1 // pred_region
      %160 = dma.done [#allocation6], 32
    $region73: #{tpu_custom_call.1} parent=1 // pred_fallthru
      _
    // Predicated region
    $region74: #{tpu_custom_call.1} parent=1 // pred_check
      _
    $region75: #{tpu_custom_call.1} parent=1 // pred_check_branch
      %162 = sbr.rel (0) target = $region77
    $region76: #{tpu_custom_call.1} parent=1 // pred_region
      %163 = dma.done [#allocation6], 64
    $region77: #{tpu_custom_call.1} parent=1 // pred_fallthru
      _
    // Predicated region
    $region78: #{tpu_custom_call.1} parent=1 // pred_check
      _
    $region79: #{tpu_custom_call.1} parent=1 // pred_check_branch
      %165 = sbr.rel (0) target = $region81
    $region80: #{tpu_custom_call.1} parent=1 // pred_region
      %166 = dma.done [#allocation9], 64
    $region81: #{tpu_custom_call.1} parent=1 // pred_fallthru
      _
    // Predicated region
    $region82: #{tpu_custom_call.1} parent=1 // pred_check
      _
    $region83: #{tpu_custom_call.1} parent=1 // pred_check_branch
      %168 = sbr.rel (0) target = $region85
    $region84: #{tpu_custom_call.1} parent=1 // pred_region
      %169 = dma.done [#allocation9], 3072
    $region85: #{tpu_custom_call.1} parent=1 // pred_fallthru
      _
    // Predicated region
    $region86: #{tpu_custom_call.1} parent=1 // pred_check
      _
    $region87: #{tpu_custom_call.1} parent=1 // pred_check_branch
      %171 = sbr.rel (0) target = $region89
    $region88: #{tpu_custom_call.1} parent=1 // pred_region
      %172 = dma.done [#allocation12], 48
    $region89: #{tpu_custom_call.1} parent=1 // pred_fallthru
      _
    // Predicated region
    $region90: #{tpu_custom_call.1} parent=1 // pred_check
      _
    $region91: #{tpu_custom_call.1} parent=1 // pred_check_branch
      %174 = sbr.rel (0) target = $region93
    $region92: #{tpu_custom_call.1} parent=1 // pred_region
      %175 = dma.done [#allocation12], 16
    $region93: #{tpu_custom_call.1} parent=1 // pred_fallthru
      _
    // Predicated region
    $region94: #{tpu_custom_call.1} parent=1 // pred_check
      _
    $region95: #{tpu_custom_call.1} parent=1 // pred_check_branch
      %177 = sbr.rel (0) target = $region97
    $region96: #{tpu_custom_call.1} parent=1 // pred_region
      %178 = dma.done [#allocation15], 4096
    $region97: #{tpu_custom_call.1} parent=1 // pred_fallthru
      _
    // Predicated region
    $region98: #{tpu_custom_call.1} parent=1 // pred_check
      _
    $region99: #{tpu_custom_call.1} parent=1 // pred_check_branch
      %180 = sbr.rel (0) target = $region101
    $region100: #{tpu_custom_call.1} parent=1 // pred_region
      %181 = dma.done [#allocation15], 4096
    $region101: #{tpu_custom_call.1} parent=1 // pred_fallthru
      _
    // Predicated region
    $region102: #{tpu_custom_call.1} parent=1 // pred_check
      _
    $region103: #{tpu_custom_call.1} parent=1 // pred_check_branch
      %183 = sbr.rel (0) target = $region105
    $region104: #{tpu_custom_call.1} parent=1 // pred_region
      %184 = dma.done [#allocation18], 1024
    $region105: #{tpu_custom_call.1} parent=1 // pred_fallthru
      _
    %v186 = vld [vmem:[#allocation2] sm:$0xff]
    %v187 = vld [vmem:[#allocation2 + $0x8] sm:$0xff]
    %v188 = vld [vmem:[#allocation7] sm:$0x1]
    %v189 = vld [vmem:[#allocation8] sm:$0x1]
    %190 = vadd.xlane.f32.xlu0 %v186
    %v191 = vpop.xlane.xlu0 %190
    %192 = vadd.xlane.f32.xlu0 %v187
    %v193 = vpop.xlane.xlu0 %192
    %v194 = vrcp.pop 128.0
    %v195 = vmul.f32 %v191, %v194
    %v196 = vmul.f32 %v193, %v194
    %v197 = vsub.f32 %v186, %v195
    %v198 = vsub.f32 %v187, %v196
    %v199 = vmul.f32 %v197, %v197
    %v200 = vmul.f32 %v198, %v198
    %201 = vadd.xlane.f32.xlu0 %v199
    %v202 = vpop.xlane.xlu0 %201
    %203 = vadd.xlane.f32.xlu0 %v200
    %v204 = vpop.xlane.xlu0 %203
    %v205 = vmul.f32 %v202, %v194
    %v206 = vmul.f32 %v204, %v194
    %v207 = vadd.f32 %v205, 1e-12
    %v208 = vadd.f32 %v206, 1e-12
    %v209 = vrsqrt.pop %v207
    %v210 = vrsqrt.pop %v208
    %v211 = vmul.f32 %v197, %v209
    %v212 = vmul.f32 %v198, %v210
    %v213 = vlaneseq
    %v214 = vshrl.u32 %v213, 7
    %v215 = vsub.s32 0, %v214
    %v216 = vrot.slane %v188, %v215
    %v217 = vmul.f32 %v211, %v216
    %v218 = vmul.f32 %v212, %v216
    %v219 = vlaneseq
    %v220 = vshrl.u32 %v219, 7
    %v221 = vsub.s32 0, %v220
    %v222 = vrot.slane %v189, %v221
    %v223 = vadd.f32 %v217, %v222
    %v224 = vadd.f32 %v218, %v222
    %v225 = vpack.c.bf16 %v224, %v223
    %v226 = vld [vmem:[#allocation10] sm:$0xff]
    %v227 = vld [vmem:[#allocation10 + $0x8] sm:$0xf]
    %v228 = vld [vmem:[#allocation10 + $0xc] sm:$0xff]
    %v229 = vld [vmem:[#allocation10 + $0x14] sm:$0xf]
    %v230 = vld [vmem:[#allocation10 + $0x18] sm:$0xff]
    %v231 = vld [vmem:[#allocation10 + $0x20] sm:$0xf]
    %v232 = vld [vmem:[#allocation10 + $0x24] sm:$0xff]
    %v233 = vld [vmem:[#allocation10 + $0x2c] sm:$0xf]
    %v234 = vld [vmem:[#allocation10 + $0x30] sm:$0xff]
    %v235 = vld [vmem:[#allocation10 + $0x38] sm:$0xf]
    %v236 = vld [vmem:[#allocation10 + $0x3c] sm:$0xff]
    %v237 = vld [vmem:[#allocation10 + $0x44] sm:$0xf]
    %v238 = vld [vmem:[#allocation10 + $0x48] sm:$0xff]
    %v239 = vld [vmem:[#allocation10 + $0x50] sm:$0xf]
    %v240 = vld [vmem:[#allocation10 + $0x54] sm:$0xff]
    %v241 = vld [vmem:[#allocation10 + $0x5c] sm:$0xf]
    %v242 = vld [vmem:[#allocation10 + $0x60] sm:$0xff]
    %v243 = vld [vmem:[#allocation10 + $0x68] sm:$0xf]
    %v244 = vld [vmem:[#allocation10 + $0x6c] sm:$0xff]
    %v245 = vld [vmem:[#allocation10 + $0x74] sm:$0xf]
    %v246 = vld [vmem:[#allocation10 + $0x78] sm:$0xff]
    %v247 = vld [vmem:[#allocation10 + $0x80] sm:$0xf]
    %v248 = vld [vmem:[#allocation10 + $0x84] sm:$0xff]
    %v249 = vld [vmem:[#allocation10 + $0x8c] sm:$0xf]
    %v250 = vld [vmem:[#allocation10 + $0x90] sm:$0xff]
    %v251 = vld [vmem:[#allocation10 + $0x98] sm:$0xf]
    %v252 = vld [vmem:[#allocation10 + $0x9c] sm:$0xff]
    %v253 = vld [vmem:[#allocation10 + $0xa4] sm:$0xf]
    %v254 = vld [vmem:[#allocation10 + $0xa8] sm:$0xff]
    %v255 = vld [vmem:[#allocation10 + $0xb0] sm:$0xf]
    %v256 = vld [vmem:[#allocation10 + $0xb4] sm:$0xff]
    %v257 = vld [vmem:[#allocation10 + $0xbc] sm:$0xf]
    %v258 = vld [vmem:[#allocation11] sm:$0x7]
    %v260 = vlaneseq
    %v261 = vshrl.u32 %v260, 7
    %v262 = vsub.s32 0, %v261
    %v263 = vrot.slane %v258, %v262
    %v264 = vlaneseq
    %v265 = vshrl.u32 %v264, 7
    %v266 = vsub.s32 1, %v265
    %v267 = vrot.slane %v258, %v266
    %v268 = vlaneseq
    %v269 = vshrl.u32 %v268, 7
    %v270 = vsub.s32 2, %v269
    %v271 = vrot.slane %v258, %v270
    %v307 = vunpack.c.l.b16 %v226
    %v308 = vunpack.c.h.b16 %v226
    %v309 = vunpack.c.l.b16 %v227
    %v310 = vunpack.c.l.b16 %v228
    %v311 = vunpack.c.h.b16 %v228
    %v312 = vunpack.c.l.b16 %v229
    %v313 = vunpack.c.l.b16 %v230
    %v314 = vunpack.c.h.b16 %v230
    %v315 = vunpack.c.l.b16 %v231
    %v316 = vunpack.c.l.b16 %v232
    %v317 = vunpack.c.h.b16 %v232
    %v318 = vunpack.c.l.b16 %v233
    %v319 = vunpack.c.l.b16 %v234
    %v320 = vunpack.c.h.b16 %v234
    %v321 = vunpack.c.l.b16 %v235
    %v322 = vunpack.c.l.b16 %v236
    %v323 = vunpack.c.h.b16 %v236
    %v324 = vunpack.c.l.b16 %v237
    %v325 = vunpack.c.l.b16 %v238
    %v326 = vunpack.c.h.b16 %v238
    %v327 = vunpack.c.l.b16 %v239
    %v328 = vunpack.c.l.b16 %v240
    %v329 = vunpack.c.h.b16 %v240
    %v330 = vunpack.c.l.b16 %v241
    %v331 = vunpack.c.l.b16 %v242
    %v332 = vunpack.c.h.b16 %v242
    %v333 = vunpack.c.l.b16 %v243
    %v334 = vunpack.c.l.b16 %v244
    %v335 = vunpack.c.h.b16 %v244
    %v336 = vunpack.c.l.b16 %v245
    %v337 = vunpack.c.l.b16 %v246
    %v338 = vunpack.c.h.b16 %v246
    %v339 = vunpack.c.l.b16 %v247
    %v340 = vunpack.c.l.b16 %v248
    %v341 = vunpack.c.h.b16 %v248
    %v342 = vunpack.c.l.b16 %v249
    %v343 = vunpack.c.l.b16 %v250
    %v344 = vunpack.c.h.b16 %v250
    %v345 = vunpack.c.l.b16 %v251
    %v346 = vunpack.c.l.b16 %v252
    %v347 = vunpack.c.h.b16 %v252
    %v348 = vunpack.c.l.b16 %v253
    %v349 = vunpack.c.l.b16 %v254
    %v350 = vunpack.c.h.b16 %v254
    %v351 = vunpack.c.l.b16 %v255
    %v352 = vunpack.c.l.b16 %v256
    %v353 = vunpack.c.h.b16 %v256
    %v354 = vunpack.c.l.b16 %v257
    %v355 = vpack.c.b16 %v310, %v307
    %v356 = vpack.c.b16 %v311, %v308
    %v357 = vpack.c.b16 %v312, %v309
    %v358 = vpack.c.b16 %v316, %v313
    %v359 = vpack.c.b16 %v317, %v314
    %v360 = vpack.c.b16 %v318, %v315
    %v361 = vpack.c.b16 %v322, %v319
    %v362 = vpack.c.b16 %v323, %v320
    %v363 = vpack.c.b16 %v324, %v321
    %v364 = vpack.c.b16 %v328, %v325
    %v365 = vpack.c.b16 %v329, %v326
    %v366 = vpack.c.b16 %v330, %v327
    %v367 = vpack.c.b16 %v334, %v331
    %v368 = vpack.c.b16 %v335, %v332
    %v369 = vpack.c.b16 %v336, %v333
    %v370 = vpack.c.b16 %v340, %v337
    %v371 = vpack.c.b16 %v341, %v338
    %v372 = vpack.c.b16 %v342, %v339
    %v373 = vpack.c.b16 %v346, %v343
    %v374 = vpack.c.b16 %v347, %v344
    %v375 = vpack.c.b16 %v348, %v345
    %v376 = vpack.c.b16 %v352, %v349
    %v377 = vpack.c.b16 %v353, %v350
    %v378 = vpack.c.b16 %v354, %v351
    %403 = vmatprep.subr.bf16.mxu0 %v356
    %404 = vmatpush1.bf16.msra.mxu0 %v355
    %405 = vmatprep.subr.bf16.mxu0 %v359
    %406 = vmatpush1.bf16.msra.mxu0 %v358
    %407 = vmatprep.subr.bf16.mxu0 %v362
    %408 = vmatpush1.bf16.msra.mxu0 %v361
    %409 = vmatprep.subr.bf16.mxu0 %v365
    %410 = vmatpush1.bf16.msra.mxu0 %v364
    %411 = vmatprep.subr.bf16.mxu0 %v368
    %412 = vmatpush1.bf16.msra.mxu0 %v367
    %413 = vmatprep.subr.bf16.mxu0 %v371
    %414 = vmatpush1.bf16.msra.mxu0 %v370
    %415 = vmatprep.subr.bf16.mxu0 %v374
    %416 = vmatpush1.bf16.msra.mxu0 %v373
    %417 = vmatprep.subr.bf16.mxu0 %v377
    %418 = vmatpush1.bf16.msra.mxu0 %v376
    %419 = vmatprep.subr.bf16.mxu0 0
    %420 = vmatpush1.bf16.msra.mxu0 0
    %421 = vmatprep.subr.bf16.mxu0 0
    %422 = vmatpush1.bf16.msra.mxu0 0
    %423 = vmatprep.subr.bf16.mxu0 0
    %424 = vmatpush1.bf16.msra.mxu0 0
    %425 = vmatprep.subr.bf16.mxu0 0
    %426 = vmatpush1.bf16.msra.mxu0 0
    %427 = vmatprep.subr.bf16.mxu0 0
    %428 = vmatpush1.bf16.msra.mxu0 0
    %429 = vmatprep.subr.bf16.mxu0 0
    %430 = vmatpush1.bf16.msra.mxu0 0
    %431 = vmatprep.subr.bf16.mxu0 0
    %432 = vmatpush1.bf16.msra.mxu0 0
    %433 = vmatprep.subr.bf16.mxu0 0
    %434 = vmatpush1.bf16.msra.mxu0 0
    %435 = vmatprep.mubr.bf16.mxu0 0
    %436 = vmatmul.mubr.bf16.gmra.mrb[0].mxu0 %v225
    %v437 = vpop.f32.mrb[0].mxu0
    %v438 = vadd.f32 %v263, %v437
    %v439 = vpop.f32.mrb[0].mxu0
    %v440 = vadd.f32 %v267, %v439
    %v441 = vpop.f32.mrb[0].mxu0
    %v442 = vadd.f32 %v263, %v441
    %v443 = vpop.f32.mrb[0].mxu0
    %v444 = vadd.f32 %v267, %v443
    %445 = vdwg.mxu0
    %446 = vmatprep.subr.bf16.mxu0 0
    %447 = vmatpush1.bf16.msra.mxu0 %v357
    %448 = vmatprep.subr.bf16.mxu0 0
    %449 = vmatpush1.bf16.msra.mxu0 %v360
    %450 = vmatprep.subr.bf16.mxu0 0
    %451 = vmatpush1.bf16.msra.mxu0 %v363
    %452 = vmatprep.subr.bf16.mxu0 0
    %453 = vmatpush1.bf16.msra.mxu0 %v366
    %454 = vmatprep.subr.bf16.mxu0 0
    %455 = vmatpush1.bf16.msra.mxu0 %v369
    %456 = vmatprep.subr.bf16.mxu0 0
    %457 = vmatpush1.bf16.msra.mxu0 %v372
    %458 = vmatprep.subr.bf16.mxu0 0
    %459 = vmatpush1.bf16.msra.mxu0 %v375
    %460 = vmatprep.subr.bf16.mxu0 0
    %461 = vmatpush1.bf16.msra.mxu0 %v378
    %462 = vmatprep.subr.bf16.mxu0 0
    %463 = vmatpush1.bf16.msra.mxu0 0
    %464 = vmatprep.subr.bf16.mxu0 0
    %465 = vmatpush1.bf16.msra.mxu0 0
    %466 = vmatprep.subr.bf16.mxu0 0
    %467 = vmatpush1.bf16.msra.mxu0 0
    %468 = vmatprep.subr.bf16.mxu0 0
    %469 = vmatpush1.bf16.msra.mxu0 0
    %470 = vmatprep.subr.bf16.mxu0 0
    %471 = vmatpush1.bf16.msra.mxu0 0
    %472 = vmatprep.subr.bf16.mxu0 0
    %473 = vmatpush1.bf16.msra.mxu0 0
    %474 = vmatprep.subr.bf16.mxu0 0
    %475 = vmatpush1.bf16.msra.mxu0 0
    %476 = vmatprep.subr.bf16.mxu0 0
    %477 = vmatpush1.bf16.msra.mxu0 0
    %478 = vmatprep.mubr.bf16.mxu0 0
    %479 = vmatmul.mubr.bf16.gmra.mrb[0].mxu0 %v225
    %v480 = vpop.f32.mrb[0].mxu0
    %v481 = vadd.f32 %v271, %v480
    %v482 = vpop.f32.mrb[0].mxu0
    %v483 = vpop.f32.mrb[0].mxu0
    %v484 = vadd.f32 %v271, %v483
    %v485 = vpop.f32.mrb[0].mxu0
    %486 = vdwg.mxu0
    %489 = vrot.lane.b32.xlu0 %v438, 96
    %v490 = vpop.permute.xlu0 %489
    %491 = vrot.lane.b32.xlu0 %v442, 96
    %v492 = vpop.permute.xlu0 %491
    %493 = vrot.lane.b32.xlu0 %v438, 64
    %v494 = vpop.permute.xlu0 %493
    %495 = vrot.lane.b32.xlu0 %v442, 64
    %v496 = vpop.permute.xlu0 %495
    %497 = vrot.lane.b32.xlu0 %v438, 32
    %v498 = vpop.permute.xlu0 %497
    %499 = vrot.lane.b32.xlu0 %v442, 32
    %v500 = vpop.permute.xlu0 %499
    %503 = vrot.lane.b32.xlu0 %v440, 96
    %v504 = vpop.permute.xlu0 %503
    %505 = vrot.lane.b32.xlu0 %v444, 96
    %v506 = vpop.permute.xlu0 %505
    %507 = vrot.lane.b32.xlu0 %v440, 64
    %v508 = vpop.permute.xlu0 %507
    %509 = vrot.lane.b32.xlu0 %v444, 64
    %v510 = vpop.permute.xlu0 %509
    %511 = vrot.lane.b32.xlu0 %v440, 32
    %v512 = vpop.permute.xlu0 %511
    %513 = vrot.lane.b32.xlu0 %v444, 32
    %v514 = vpop.permute.xlu0 %513
    %517 = vrot.lane.b32.xlu0 %v481, 96
    %v518 = vpop.permute.xlu0 %517
    %519 = vrot.lane.b32.xlu0 %v484, 96
    %v520 = vpop.permute.xlu0 %519
    %523 = vrot.lane.b32.xlu0 %v481, 64
    %v524 = vpop.permute.xlu0 %523
    %525 = vrot.lane.b32.xlu0 %v484, 64
    %v526 = vpop.permute.xlu0 %525
    %529 = vrot.lane.b32.xlu0 %v481, 32
    %v530 = vpop.permute.xlu0 %529
    %531 = vrot.lane.b32.xlu0 %v484, 32
    %v532 = vpop.permute.xlu0 %531
    %v535 = vld [vmem:[#allocation5] sm:$0x1]
    %v536 = vld [vmem:[#allocation5 + $0x1] sm:$0x1]
    %v537 = vsub.f32 1.0, %v535
    %v538 = vsub.f32 1.0, %v536
    %v539 = vmul.f32 %v537, -1e+09
    %v540 = vmul.f32 %v538, -1e+09
    %vm541 = vcmask 261120
    %v542 = vsel %vm541, %v438, 0
    %v544 = vsel %vm541, %v440, 0
    %546 = vmatprep.subr.mxu0 0.0
    %547 = vmatpush1.xpose.msra.mxu0 %v544
    %548 = vmatprep.subr.mxu0 0.0
    %549 = vmatpush1.xpose.msra.mxu0 0.0
    %550 = vmatprep.subr.mxu0 0.0
    %551 = vmatpush1.xpose.msra.mxu0 0.0
    %552 = vmatprep.subr.mxu0 0.0
    %553 = vmatpush1.xpose.msra.mxu0 0.0
    %554 = vmatprep.subr.mxu0 0.0
    %555 = vmatpush1.xpose.msra.mxu0 0.0
    %556 = vmatprep.subr.mxu0 0.0
    %557 = vmatpush1.xpose.msra.mxu0 0.0
    %558 = vmatprep.subr.mxu0 0.0
    %559 = vmatpush1.xpose.msra.mxu0 0.0
    %560 = vmatprep.subr.mxu0 0.0
    %561 = vmatpush1.xpose.msra.mxu0 0.0
    %562 = vmatprep.subr.mxu0 0.0
    %563 = vmatpush1.xpose.msra.mxu0 0.0
    %564 = vmatprep.subr.mxu0 0.0
    %565 = vmatpush1.xpose.msra.mxu0 0.0
    %566 = vmatprep.subr.mxu0 0.0
    %567 = vmatpush1.xpose.msra.mxu0 0.0
    %568 = vmatprep.subr.mxu0 0.0
    %569 = vmatpush1.xpose.msra.mxu0 0.0
    %570 = vmatprep.subr.mxu0 0.0
    %571 = vmatpush1.xpose.msra.mxu0 0.0
    %572 = vmatprep.subr.mxu0 0.0
    %573 = vmatpush1.xpose.msra.mxu0 0.0
    %574 = vmatprep.subr.mxu0 0.0
    %575 = vmatpush1.xpose.msra.mxu0 0.0
    %576 = vmatprep.subr.mxu0 0.0
    %577 = vmatpush1.xpose.msra.mxu0 0.0
    %578 = vmatprep.subr.mxu0 0.0
    %579 = vmatpush1.xpose.msra.mxu0 0.0
    %580 = vmatprep.subr.mxu0 0.0
    %581 = vmatpush1.xpose.msra.mxu0 0.0
    %582 = vmatprep.subr.mxu0 0.0
    %583 = vmatpush1.xpose.msra.mxu0 0.0
    %584 = vmatprep.subr.mxu0 0.0
    %585 = vmatpush1.xpose.msra.mxu0 0.0
    %586 = vmatprep.subr.mxu0 0.0
    %587 = vmatpush1.xpose.msra.mxu0 0.0
    %588 = vmatprep.subr.mxu0 0.0
    %589 = vmatpush1.xpose.msra.mxu0 0.0
    %590 = vmatprep.subr.mxu0 0.0
    %591 = vmatpush1.xpose.msra.mxu0 0.0
    %592 = vmatprep.subr.mxu0 0.0
    %593 = vmatpush1.xpose.msra.mxu0 0.0
    %594 = vmatprep.subr.mxu0 0.0
    %595 = vmatpush1.xpose.msra.mxu0 0.0
    %596 = vmatprep.subr.mxu0 0.0
    %597 = vmatpush1.xpose.msra.mxu0 0.0
    %598 = vmatprep.subr.mxu0 0.0
    %599 = vmatpush1.xpose.msra.mxu0 0.0
    %600 = vmatprep.subr.mxu0 0.0
    %601 = vmatpush1.xpose.msra.mxu0 0.0
    %602 = vmatprep.subr.mxu0 0.0
    %603 = vmatpush1.xpose.msra.mxu0 0.0
    %604 = vmatprep.subr.mxu0 0.0
    %605 = vmatpush1.xpose.msra.mxu0 0.0
    %606 = vmatprep.subr.mxu0 0.0
    %607 = vmatpush1.xpose.msra.mxu0 0.0
    %608 = vmatprep.subr.mxu0 0.0
    %609 = vmatpush1.xpose.msra.mxu0 0.0
    %610 = vmatprep.mubr.f32.mxu0 0.0
    %611 = vmatmul.mubr.f32.gmra.mrb[0].mxu0 %v542
    %v612 = vpop.f32.mrb[0].mxu0
    %v613 = vadd.f32 0.0, %v612
    %v614 = vpop.f32.mrb[0].mxu0
    %615 = vdwg.mxu0
    %v616 = vsel %vm541, %v442, 0
    %v618 = vsel %vm541, %v444, 0
    %620 = vmatprep.subr.mxu0 0.0
    %621 = vmatpush1.xpose.msra.mxu0 %v618
    %622 = vmatprep.subr.mxu0 0.0
    %623 = vmatpush1.xpose.msra.mxu0 0.0
    %624 = vmatprep.subr.mxu0 0.0
    %625 = vmatpush1.xpose.msra.mxu0 0.0
    %626 = vmatprep.subr.mxu0 0.0
    %627 = vmatpush1.xpose.msra.mxu0 0.0
    %628 = vmatprep.subr.mxu0 0.0
    %629 = vmatpush1.xpose.msra.mxu0 0.0
    %630 = vmatprep.subr.mxu0 0.0
    %631 = vmatpush1.xpose.msra.mxu0 0.0
    %632 = vmatprep.subr.mxu0 0.0
    %633 = vmatpush1.xpose.msra.mxu0 0.0
    %634 = vmatprep.subr.mxu0 0.0
    %635 = vmatpush1.xpose.msra.mxu0 0.0
    %636 = vmatprep.subr.mxu0 0.0
    %637 = vmatpush1.xpose.msra.mxu0 0.0
    %638 = vmatprep.subr.mxu0 0.0
    %639 = vmatpush1.xpose.msra.mxu0 0.0
    %640 = vmatprep.subr.mxu0 0.0
    %641 = vmatpush1.xpose.msra.mxu0 0.0
    %642 = vmatprep.subr.mxu0 0.0
    %643 = vmatpush1.xpose.msra.mxu0 0.0
    %644 = vmatprep.subr.mxu0 0.0
    %645 = vmatpush1.xpose.msra.mxu0 0.0
    %646 = vmatprep.subr.mxu0 0.0
    %647 = vmatpush1.xpose.msra.mxu0 0.0
    %648 = vmatprep.subr.mxu0 0.0
    %649 = vmatpush1.xpose.msra.mxu0 0.0
    %650 = vmatprep.subr.mxu0 0.0
    %651 = vmatpush1.xpose.msra.mxu0 0.0
    %652 = vmatprep.subr.mxu0 0.0
    %653 = vmatpush1.xpose.msra.mxu0 0.0
    %654 = vmatprep.subr.mxu0 0.0
    %655 = vmatpush1.xpose.msra.mxu0 0.0
    %656 = vmatprep.subr.mxu0 0.0
    %657 = vmatpush1.xpose.msra.mxu0 0.0
    %658 = vmatprep.subr.mxu0 0.0
    %659 = vmatpush1.xpose.msra.mxu0 0.0
    %660 = vmatprep.subr.mxu0 0.0
    %661 = vmatpush1.xpose.msra.mxu0 0.0
    %662 = vmatprep.subr.mxu0 0.0
    %663 = vmatpush1.xpose.msra.mxu0 0.0
    %664 = vmatprep.subr.mxu0 0.0
    %665 = vmatpush1.xpose.msra.mxu0 0.0
    %666 = vmatprep.subr.mxu0 0.0
    %667 = vmatpush1.xpose.msra.mxu0 0.0
    %668 = vmatprep.subr.mxu0 0.0
    %669 = vmatpush1.xpose.msra.mxu0 0.0
    %670 = vmatprep.subr.mxu0 0.0
    %671 = vmatpush1.xpose.msra.mxu0 0.0
    %672 = vmatprep.subr.mxu0 0.0
    %673 = vmatpush1.xpose.msra.mxu0 0.0
    %674 = vmatprep.subr.mxu0 0.0
    %675 = vmatpush1.xpose.msra.mxu0 0.0
    %676 = vmatprep.subr.mxu0 0.0
    %677 = vmatpush1.xpose.msra.mxu0 0.0
    %678 = vmatprep.subr.mxu0 0.0
    %679 = vmatpush1.xpose.msra.mxu0 0.0
    %680 = vmatprep.subr.mxu0 0.0
    %681 = vmatpush1.xpose.msra.mxu0 0.0
    %682 = vmatprep.subr.mxu0 0.0
    %683 = vmatpush1.xpose.msra.mxu0 0.0
    %684 = vmatprep.mubr.f32.mxu0 0.0
    %685 = vmatmul.mubr.f32.gmra.mrb[0].mxu0 %v616
    %v686 = vpop.f32.mrb[0].mxu0
    %v687 = vadd.f32 0.0, %v686
    %v688 = vpop.f32.mrb[0].mxu0
    %689 = vdwg.mxu0
    %v690 = vsel %vm541, %v490, 0
    %v692 = vsel %vm541, %v504, 0
    %694 = vmatprep.subr.mxu0 0.0
    %695 = vmatpush1.xpose.msra.mxu0 %v692
    %696 = vmatprep.subr.mxu0 0.0
    %697 = vmatpush1.xpose.msra.mxu0 0.0
    %698 = vmatprep.subr.mxu0 0.0
    %699 = vmatpush1.xpose.msra.mxu0 0.0
    %700 = vmatprep.subr.mxu0 0.0
    %701 = vmatpush1.xpose.msra.mxu0 0.0
    %702 = vmatprep.subr.mxu0 0.0
    %703 = vmatpush1.xpose.msra.mxu0 0.0
    %704 = vmatprep.subr.mxu0 0.0
    %705 = vmatpush1.xpose.msra.mxu0 0.0
    %706 = vmatprep.subr.mxu0 0.0
    %707 = vmatpush1.xpose.msra.mxu0 0.0
    %708 = vmatprep.subr.mxu0 0.0
    %709 = vmatpush1.xpose.msra.mxu0 0.0
    %710 = vmatprep.subr.mxu0 0.0
    %711 = vmatpush1.xpose.msra.mxu0 0.0
    %712 = vmatprep.subr.mxu0 0.0
    %713 = vmatpush1.xpose.msra.mxu0 0.0
    %714 = vmatprep.subr.mxu0 0.0
    %715 = vmatpush1.xpose.msra.mxu0 0.0
    %716 = vmatprep.subr.mxu0 0.0
    %717 = vmatpush1.xpose.msra.mxu0 0.0
    %718 = vmatprep.subr.mxu0 0.0
    %719 = vmatpush1.xpose.msra.mxu0 0.0
    %720 = vmatprep.subr.mxu0 0.0
    %721 = vmatpush1.xpose.msra.mxu0 0.0
    %722 = vmatprep.subr.mxu0 0.0
    %723 = vmatpush1.xpose.msra.mxu0 0.0
    %724 = vmatprep.subr.mxu0 0.0
    %725 = vmatpush1.xpose.msra.mxu0 0.0
    %726 = vmatprep.subr.mxu0 0.0
    %727 = vmatpush1.xpose.msra.mxu0 0.0
    %728 = vmatprep.subr.mxu0 0.0
    %729 = vmatpush1.xpose.msra.mxu0 0.0
    %730 = vmatprep.subr.mxu0 0.0
    %731 = vmatpush1.xpose.msra.mxu0 0.0
    %732 = vmatprep.subr.mxu0 0.0
    %733 = vmatpush1.xpose.msra.mxu0 0.0
    %734 = vmatprep.subr.mxu0 0.0
    %735 = vmatpush1.xpose.msra.mxu0 0.0
    %736 = vmatprep.subr.mxu0 0.0
    %737 = vmatpush1.xpose.msra.mxu0 0.0
    %738 = vmatprep.subr.mxu0 0.0
    %739 = vmatpush1.xpose.msra.mxu0 0.0
    %740 = vmatprep.subr.mxu0 0.0
    %741 = vmatpush1.xpose.msra.mxu0 0.0
    %742 = vmatprep.subr.mxu0 0.0
    %743 = vmatpush1.xpose.msra.mxu0 0.0
    %744 = vmatprep.subr.mxu0 0.0
    %745 = vmatpush1.xpose.msra.mxu0 0.0
    %746 = vmatprep.subr.mxu0 0.0
    %747 = vmatpush1.xpose.msra.mxu0 0.0
    %748 = vmatprep.subr.mxu0 0.0
    %749 = vmatpush1.xpose.msra.mxu0 0.0
    %750 = vmatprep.subr.mxu0 0.0
    %751 = vmatpush1.xpose.msra.mxu0 0.0
    %752 = vmatprep.subr.mxu0 0.0
    %753 = vmatpush1.xpose.msra.mxu0 0.0
    %754 = vmatprep.subr.mxu0 0.0
    %755 = vmatpush1.xpose.msra.mxu0 0.0
    %756 = vmatprep.subr.mxu0 0.0
    %757 = vmatpush1.xpose.msra.mxu0 0.0
    %758 = vmatprep.mubr.f32.mxu0 0.0
    %759 = vmatmul.mubr.f32.gmra.mrb[0].mxu0 %v690
    %v760 = vpop.f32.mrb[0].mxu0
    %v761 = vadd.f32 0.0, %v760
    %v762 = vpop.f32.mrb[0].mxu0
    %763 = vdwg.mxu0
    %v764 = vsel %vm541, %v492, 0
    %v766 = vsel %vm541, %v506, 0
    %768 = vmatprep.subr.mxu0 0.0
    %769 = vmatpush1.xpose.msra.mxu0 %v766
    %770 = vmatprep.subr.mxu0 0.0
    %771 = vmatpush1.xpose.msra.mxu0 0.0
    %772 = vmatprep.subr.mxu0 0.0
    %773 = vmatpush1.xpose.msra.mxu0 0.0
    %774 = vmatprep.subr.mxu0 0.0
    %775 = vmatpush1.xpose.msra.mxu0 0.0
    %776 = vmatprep.subr.mxu0 0.0
    %777 = vmatpush1.xpose.msra.mxu0 0.0
    %778 = vmatprep.subr.mxu0 0.0
    %779 = vmatpush1.xpose.msra.mxu0 0.0
    %780 = vmatprep.subr.mxu0 0.0
    %781 = vmatpush1.xpose.msra.mxu0 0.0
    %782 = vmatprep.subr.mxu0 0.0
    %783 = vmatpush1.xpose.msra.mxu0 0.0
    %784 = vmatprep.subr.mxu0 0.0
    %785 = vmatpush1.xpose.msra.mxu0 0.0
    %786 = vmatprep.subr.mxu0 0.0
    %787 = vmatpush1.xpose.msra.mxu0 0.0
    %788 = vmatprep.subr.mxu0 0.0
    %789 = vmatpush1.xpose.msra.mxu0 0.0
    %790 = vmatprep.subr.mxu0 0.0
    %791 = vmatpush1.xpose.msra.mxu0 0.0
    %792 = vmatprep.subr.mxu0 0.0
    %793 = vmatpush1.xpose.msra.mxu0 0.0
    %794 = vmatprep.subr.mxu0 0.0
    %795 = vmatpush1.xpose.msra.mxu0 0.0
    %796 = vmatprep.subr.mxu0 0.0
    %797 = vmatpush1.xpose.msra.mxu0 0.0
    %798 = vmatprep.subr.mxu0 0.0
    %799 = vmatpush1.xpose.msra.mxu0 0.0
    %800 = vmatprep.subr.mxu0 0.0
    %801 = vmatpush1.xpose.msra.mxu0 0.0
    %802 = vmatprep.subr.mxu0 0.0
    %803 = vmatpush1.xpose.msra.mxu0 0.0
    %804 = vmatprep.subr.mxu0 0.0
    %805 = vmatpush1.xpose.msra.mxu0 0.0
    %806 = vmatprep.subr.mxu0 0.0
    %807 = vmatpush1.xpose.msra.mxu0 0.0
    %808 = vmatprep.subr.mxu0 0.0
    %809 = vmatpush1.xpose.msra.mxu0 0.0
    %810 = vmatprep.subr.mxu0 0.0
    %811 = vmatpush1.xpose.msra.mxu0 0.0
    %812 = vmatprep.subr.mxu0 0.0
    %813 = vmatpush1.xpose.msra.mxu0 0.0
    %814 = vmatprep.subr.mxu0 0.0
    %815 = vmatpush1.xpose.msra.mxu0 0.0
    %816 = vmatprep.subr.mxu0 0.0
    %817 = vmatpush1.xpose.msra.mxu0 0.0
    %818 = vmatprep.subr.mxu0 0.0
    %819 = vmatpush1.xpose.msra.mxu0 0.0
    %820 = vmatprep.subr.mxu0 0.0
    %821 = vmatpush1.xpose.msra.mxu0 0.0
    %822 = vmatprep.subr.mxu0 0.0
    %823 = vmatpush1.xpose.msra.mxu0 0.0
    %824 = vmatprep.subr.mxu0 0.0
    %825 = vmatpush1.xpose.msra.mxu0 0.0
    %826 = vmatprep.subr.mxu0 0.0
    %827 = vmatpush1.xpose.msra.mxu0 0.0
    %828 = vmatprep.subr.mxu0 0.0
    %829 = vmatpush1.xpose.msra.mxu0 0.0
    %830 = vmatprep.subr.mxu0 0.0
    %831 = vmatpush1.xpose.msra.mxu0 0.0
    %832 = vmatprep.mubr.f32.mxu0 0.0
    %833 = vmatmul.mubr.f32.gmra.mrb[0].mxu0 %v764
    %v834 = vpop.f32.mrb[0].mxu0
    %v835 = vadd.f32 0.0, %v834
    %v836 = vpop.f32.mrb[0].mxu0
    %837 = vdwg.mxu0
    %v838 = vsel %vm541, %v494, 0
    %v840 = vsel %vm541, %v508, 0
    %842 = vmatprep.subr.mxu0 0.0
    %843 = vmatpush1.xpose.msra.mxu0 %v840
    %844 = vmatprep.subr.mxu0 0.0
    %845 = vmatpush1.xpose.msra.mxu0 0.0
    %846 = vmatprep.subr.mxu0 0.0
    %847 = vmatpush1.xpose.msra.mxu0 0.0
    %848 = vmatprep.subr.mxu0 0.0
    %849 = vmatpush1.xpose.msra.mxu0 0.0
    %850 = vmatprep.subr.mxu0 0.0
    %851 = vmatpush1.xpose.msra.mxu0 0.0
    %852 = vmatprep.subr.mxu0 0.0
    %853 = vmatpush1.xpose.msra.mxu0 0.0
    %854 = vmatprep.subr.mxu0 0.0
    %855 = vmatpush1.xpose.msra.mxu0 0.0
    %856 = vmatprep.subr.mxu0 0.0
    %857 = vmatpush1.xpose.msra.mxu0 0.0
    %858 = vmatprep.subr.mxu0 0.0
    %859 = vmatpush1.xpose.msra.mxu0 0.0
    %860 = vmatprep.subr.mxu0 0.0
    %861 = vmatpush1.xpose.msra.mxu0 0.0
    %862 = vmatprep.subr.mxu0 0.0
    %863 = vmatpush1.xpose.msra.mxu0 0.0
    %864 = vmatprep.subr.mxu0 0.0
    %865 = vmatpush1.xpose.msra.mxu0 0.0
    %866 = vmatprep.subr.mxu0 0.0
    %867 = vmatpush1.xpose.msra.mxu0 0.0
    %868 = vmatprep.subr.mxu0 0.0
    %869 = vmatpush1.xpose.msra.mxu0 0.0
    %870 = vmatprep.subr.mxu0 0.0
    %871 = vmatpush1.xpose.msra.mxu0 0.0
    %872 = vmatprep.subr.mxu0 0.0
    %873 = vmatpush1.xpose.msra.mxu0 0.0
    %874 = vmatprep.subr.mxu0 0.0
    %875 = vmatpush1.xpose.msra.mxu0 0.0
    %876 = vmatprep.subr.mxu0 0.0
    %877 = vmatpush1.xpose.msra.mxu0 0.0
    %878 = vmatprep.subr.mxu0 0.0
    %879 = vmatpush1.xpose.msra.mxu0 0.0
    %880 = vmatprep.subr.mxu0 0.0
    %881 = vmatpush1.xpose.msra.mxu0 0.0
    %882 = vmatprep.subr.mxu0 0.0
    %883 = vmatpush1.xpose.msra.mxu0 0.0
    %884 = vmatprep.subr.mxu0 0.0
    %885 = vmatpush1.xpose.msra.mxu0 0.0
    %886 = vmatprep.subr.mxu0 0.0
    %887 = vmatpush1.xpose.msra.mxu0 0.0
    %888 = vmatprep.subr.mxu0 0.0
    %889 = vmatpush1.xpose.msra.mxu0 0.0
    %890 = vmatprep.subr.mxu0 0.0
    %891 = vmatpush1.xpose.msra.mxu0 0.0
    %892 = vmatprep.subr.mxu0 0.0
    %893 = vmatpush1.xpose.msra.mxu0 0.0
    %894 = vmatprep.subr.mxu0 0.0
    %895 = vmatpush1.xpose.msra.mxu0 0.0
    %896 = vmatprep.subr.mxu0 0.0
    %897 = vmatpush1.xpose.msra.mxu0 0.0
    %898 = vmatprep.subr.mxu0 0.0
    %899 = vmatpush1.xpose.msra.mxu0 0.0
    %900 = vmatprep.subr.mxu0 0.0
    %901 = vmatpush1.xpose.msra.mxu0 0.0
    %902 = vmatprep.subr.mxu0 0.0
    %903 = vmatpush1.xpose.msra.mxu0 0.0
    %904 = vmatprep.subr.mxu0 0.0
    %905 = vmatpush1.xpose.msra.mxu0 0.0
    %906 = vmatprep.mubr.f32.mxu0 0.0
    %907 = vmatmul.mubr.f32.gmra.mrb[0].mxu0 %v838
    %v908 = vpop.f32.mrb[0].mxu0
    %v909 = vadd.f32 0.0, %v908
    %v910 = vpop.f32.mrb[0].mxu0
    %911 = vdwg.mxu0
    %v912 = vsel %vm541, %v496, 0
    %v914 = vsel %vm541, %v510, 0
    %916 = vmatprep.subr.mxu0 0.0
    %917 = vmatpush1.xpose.msra.mxu0 %v914
    %918 = vmatprep.subr.mxu0 0.0
    %919 = vmatpush1.xpose.msra.mxu0 0.0
    %920 = vmatprep.subr.mxu0 0.0
    %921 = vmatpush1.xpose.msra.mxu0 0.0
    %922 = vmatprep.subr.mxu0 0.0
    %923 = vmatpush1.xpose.msra.mxu0 0.0
    %924 = vmatprep.subr.mxu0 0.0
    %925 = vmatpush1.xpose.msra.mxu0 0.0
    %926 = vmatprep.subr.mxu0 0.0
    %927 = vmatpush1.xpose.msra.mxu0 0.0
    %928 = vmatprep.subr.mxu0 0.0
    %929 = vmatpush1.xpose.msra.mxu0 0.0
    %930 = vmatprep.subr.mxu0 0.0
    %931 = vmatpush1.xpose.msra.mxu0 0.0
    %932 = vmatprep.subr.mxu0 0.0
    %933 = vmatpush1.xpose.msra.mxu0 0.0
    %934 = vmatprep.subr.mxu0 0.0
    %935 = vmatpush1.xpose.msra.mxu0 0.0
    %936 = vmatprep.subr.mxu0 0.0
    %937 = vmatpush1.xpose.msra.mxu0 0.0
    %938 = vmatprep.subr.mxu0 0.0
    %939 = vmatpush1.xpose.msra.mxu0 0.0
    %940 = vmatprep.subr.mxu0 0.0
    %941 = vmatpush1.xpose.msra.mxu0 0.0
    %942 = vmatprep.subr.mxu0 0.0
    %943 = vmatpush1.xpose.msra.mxu0 0.0
    %944 = vmatprep.subr.mxu0 0.0
    %945 = vmatpush1.xpose.msra.mxu0 0.0
    %946 = vmatprep.subr.mxu0 0.0
    %947 = vmatpush1.xpose.msra.mxu0 0.0
    %948 = vmatprep.subr.mxu0 0.0
    %949 = vmatpush1.xpose.msra.mxu0 0.0
    %950 = vmatprep.subr.mxu0 0.0
    %951 = vmatpush1.xpose.msra.mxu0 0.0
    %952 = vmatprep.subr.mxu0 0.0
    %953 = vmatpush1.xpose.msra.mxu0 0.0
    %954 = vmatprep.subr.mxu0 0.0
    %955 = vmatpush1.xpose.msra.mxu0 0.0
    %956 = vmatprep.subr.mxu0 0.0
    %957 = vmatpush1.xpose.msra.mxu0 0.0
    %958 = vmatprep.subr.mxu0 0.0
    %959 = vmatpush1.xpose.msra.mxu0 0.0
    %960 = vmatprep.subr.mxu0 0.0
    %961 = vmatpush1.xpose.msra.mxu0 0.0
    %962 = vmatprep.subr.mxu0 0.0
    %963 = vmatpush1.xpose.msra.mxu0 0.0
    %964 = vmatprep.subr.mxu0 0.0
    %965 = vmatpush1.xpose.msra.mxu0 0.0
    %966 = vmatprep.subr.mxu0 0.0
    %967 = vmatpush1.xpose.msra.mxu0 0.0
    %968 = vmatprep.subr.mxu0 0.0
    %969 = vmatpush1.xpose.msra.mxu0 0.0
    %970 = vmatprep.subr.mxu0 0.0
    %971 = vmatpush1.xpose.msra.mxu0 0.0
    %972 = vmatprep.subr.mxu0 0.0
    %973 = vmatpush1.xpose.msra.mxu0 0.0
    %974 = vmatprep.subr.mxu0 0.0
    %975 = vmatpush1.xpose.msra.mxu0 0.0
    %976 = vmatprep.subr.mxu0 0.0
    %977 = vmatpush1.xpose.msra.mxu0 0.0
    %978 = vmatprep.subr.mxu0 0.0
    %979 = vmatpush1.xpose.msra.mxu0 0.0
    %980 = vmatprep.mubr.f32.mxu0 0.0
    %981 = vmatmul.mubr.f32.gmra.mrb[0].mxu0 %v912
    %v982 = vpop.f32.mrb[0].mxu0
    %v983 = vadd.f32 0.0, %v982
    %v984 = vpop.f32.mrb[0].mxu0
    %985 = vdwg.mxu0
    %v986 = vsel %vm541, %v498, 0
    %v988 = vsel %vm541, %v512, 0
    %990 = vmatprep.subr.mxu0 0.0
    %991 = vmatpush1.xpose.msra.mxu0 %v988
    %992 = vmatprep.subr.mxu0 0.0
    %993 = vmatpush1.xpose.msra.mxu0 0.0
    %994 = vmatprep.subr.mxu0 0.0
    %995 = vmatpush1.xpose.msra.mxu0 0.0
    %996 = vmatprep.subr.mxu0 0.0
    %997 = vmatpush1.xpose.msra.mxu0 0.0
    %998 = vmatprep.subr.mxu0 0.0
    %999 = vmatpush1.xpose.msra.mxu0 0.0
    %1000 = vmatprep.subr.mxu0 0.0
    %1001 = vmatpush1.xpose.msra.mxu0 0.0
    %1002 = vmatprep.subr.mxu0 0.0
    %1003 = vmatpush1.xpose.msra.mxu0 0.0
    %1004 = vmatprep.subr.mxu0 0.0
    %1005 = vmatpush1.xpose.msra.mxu0 0.0
    %1006 = vmatprep.subr.mxu0 0.0
    %1007 = vmatpush1.xpose.msra.mxu0 0.0
    %1008 = vmatprep.subr.mxu0 0.0
    %1009 = vmatpush1.xpose.msra.mxu0 0.0
    %1010 = vmatprep.subr.mxu0 0.0
    %1011 = vmatpush1.xpose.msra.mxu0 0.0
    %1012 = vmatprep.subr.mxu0 0.0
    %1013 = vmatpush1.xpose.msra.mxu0 0.0
    %1014 = vmatprep.subr.mxu0 0.0
    %1015 = vmatpush1.xpose.msra.mxu0 0.0
    %1016 = vmatprep.subr.mxu0 0.0
    %1017 = vmatpush1.xpose.msra.mxu0 0.0
    %1018 = vmatprep.subr.mxu0 0.0
    %1019 = vmatpush1.xpose.msra.mxu0 0.0
    %1020 = vmatprep.subr.mxu0 0.0
    %1021 = vmatpush1.xpose.msra.mxu0 0.0
    %1022 = vmatprep.subr.mxu0 0.0
    %1023 = vmatpush1.xpose.msra.mxu0 0.0
    %1024 = vmatprep.subr.mxu0 0.0
    %1025 = vmatpush1.xpose.msra.mxu0 0.0
    %1026 = vmatprep.subr.mxu0 0.0
    %1027 = vmatpush1.xpose.msra.mxu0 0.0
    %1028 = vmatprep.subr.mxu0 0.0
    %1029 = vmatpush1.xpose.msra.mxu0 0.0
    %1030 = vmatprep.subr.mxu0 0.0
    %1031 = vmatpush1.xpose.msra.mxu0 0.0
    %1032 = vmatprep.subr.mxu0 0.0
    %1033 = vmatpush1.xpose.msra.mxu0 0.0
    %1034 = vmatprep.subr.mxu0 0.0
    %1035 = vmatpush1.xpose.msra.mxu0 0.0
    %1036 = vmatprep.subr.mxu0 0.0
    %1037 = vmatpush1.xpose.msra.mxu0 0.0
    %1038 = vmatprep.subr.mxu0 0.0
    %1039 = vmatpush1.xpose.msra.mxu0 0.0
    %1040 = vmatprep.subr.mxu0 0.0
    %1041 = vmatpush1.xpose.msra.mxu0 0.0
    %1042 = vmatprep.subr.mxu0 0.0
    %1043 = vmatpush1.xpose.msra.mxu0 0.0
    %1044 = vmatprep.subr.mxu0 0.0
    %1045 = vmatpush1.xpose.msra.mxu0 0.0
    %1046 = vmatprep.subr.mxu0 0.0
    %1047 = vmatpush1.xpose.msra.mxu0 0.0
    %1048 = vmatprep.subr.mxu0 0.0
    %1049 = vmatpush1.xpose.msra.mxu0 0.0
    %1050 = vmatprep.subr.mxu0 0.0
    %1051 = vmatpush1.xpose.msra.mxu0 0.0
    %1052 = vmatprep.subr.mxu0 0.0
    %1053 = vmatpush1.xpose.msra.mxu0 0.0
    %1054 = vmatprep.mubr.f32.mxu0 0.0
    %1055 = vmatmul.mubr.f32.gmra.mrb[0].mxu0 %v986
    %v1056 = vpop.f32.mrb[0].mxu0
    %v1057 = vadd.f32 0.0, %v1056
    %v1058 = vpop.f32.mrb[0].mxu0
    %1059 = vdwg.mxu0
    %v1060 = vsel %vm541, %v500, 0
    %v1062 = vsel %vm541, %v514, 0
    %1064 = vmatprep.subr.mxu0 0.0
    %1065 = vmatpush1.xpose.msra.mxu0 %v1062
    %1066 = vmatprep.subr.mxu0 0.0
    %1067 = vmatpush1.xpose.msra.mxu0 0.0
    %1068 = vmatprep.subr.mxu0 0.0
    %1069 = vmatpush1.xpose.msra.mxu0 0.0
    %1070 = vmatprep.subr.mxu0 0.0
    %1071 = vmatpush1.xpose.msra.mxu0 0.0
    %1072 = vmatprep.subr.mxu0 0.0
    %1073 = vmatpush1.xpose.msra.mxu0 0.0
    %1074 = vmatprep.subr.mxu0 0.0
    %1075 = vmatpush1.xpose.msra.mxu0 0.0
    %1076 = vmatprep.subr.mxu0 0.0
    %1077 = vmatpush1.xpose.msra.mxu0 0.0
    %1078 = vmatprep.subr.mxu0 0.0
    %1079 = vmatpush1.xpose.msra.mxu0 0.0
    %1080 = vmatprep.subr.mxu0 0.0
    %1081 = vmatpush1.xpose.msra.mxu0 0.0
    %1082 = vmatprep.subr.mxu0 0.0
    %1083 = vmatpush1.xpose.msra.mxu0 0.0
    %1084 = vmatprep.subr.mxu0 0.0
    %1085 = vmatpush1.xpose.msra.mxu0 0.0
    %1086 = vmatprep.subr.mxu0 0.0
    %1087 = vmatpush1.xpose.msra.mxu0 0.0
    %1088 = vmatprep.subr.mxu0 0.0
    %1089 = vmatpush1.xpose.msra.mxu0 0.0
    %1090 = vmatprep.subr.mxu0 0.0
    %1091 = vmatpush1.xpose.msra.mxu0 0.0
    %1092 = vmatprep.subr.mxu0 0.0
    %1093 = vmatpush1.xpose.msra.mxu0 0.0
    %1094 = vmatprep.subr.mxu0 0.0
    %1095 = vmatpush1.xpose.msra.mxu0 0.0
    %1096 = vmatprep.subr.mxu0 0.0
    %1097 = vmatpush1.xpose.msra.mxu0 0.0
    %1098 = vmatprep.subr.mxu0 0.0
    %1099 = vmatpush1.xpose.msra.mxu0 0.0
    %1100 = vmatprep.subr.mxu0 0.0
    %1101 = vmatpush1.xpose.msra.mxu0 0.0
    %1102 = vmatprep.subr.mxu0 0.0
    %1103 = vmatpush1.xpose.msra.mxu0 0.0
    %1104 = vmatprep.subr.mxu0 0.0
    %1105 = vmatpush1.xpose.msra.mxu0 0.0
    %1106 = vmatprep.subr.mxu0 0.0
    %1107 = vmatpush1.xpose.msra.mxu0 0.0
    %1108 = vmatprep.subr.mxu0 0.0
    %1109 = vmatpush1.xpose.msra.mxu0 0.0
    %1110 = vmatprep.subr.mxu0 0.0
    %1111 = vmatpush1.xpose.msra.mxu0 0.0
    %1112 = vmatprep.subr.mxu0 0.0
    %1113 = vmatpush1.xpose.msra.mxu0 0.0
    %1114 = vmatprep.subr.mxu0 0.0
    %1115 = vmatpush1.xpose.msra.mxu0 0.0
    %1116 = vmatprep.subr.mxu0 0.0
    %1117 = vmatpush1.xpose.msra.mxu0 0.0
    %1118 = vmatprep.subr.mxu0 0.0
    %1119 = vmatpush1.xpose.msra.mxu0 0.0
    %1120 = vmatprep.subr.mxu0 0.0
    %1121 = vmatpush1.xpose.msra.mxu0 0.0
    %1122 = vmatprep.subr.mxu0 0.0
    %1123 = vmatpush1.xpose.msra.mxu0 0.0
    %1124 = vmatprep.subr.mxu0 0.0
    %1125 = vmatpush1.xpose.msra.mxu0 0.0
    %1126 = vmatprep.subr.mxu0 0.0
    %1127 = vmatpush1.xpose.msra.mxu0 0.0
    %1128 = vmatprep.mubr.f32.mxu0 0.0
    %1129 = vmatmul.mubr.f32.gmra.mrb[0].mxu0 %v1060
    %v1130 = vpop.f32.mrb[0].mxu0
    %v1131 = vadd.f32 0.0, %v1130
    %v1132 = vpop.f32.mrb[0].mxu0
    %1133 = vdwg.mxu0
    %v1134 = vmul.f32 %v613, 0.17677669
    %v1135 = vmul.f32 %v687, 0.17677669
    %v1136 = vmul.f32 %v761, 0.17677669
    %v1137 = vmul.f32 %v835, 0.17677669
    %v1138 = vmul.f32 %v909, 0.17677669
    %v1139 = vmul.f32 %v983, 0.17677669
    %v1140 = vmul.f32 %v1057, 0.17677669
    %v1141 = vmul.f32 %v1131, 0.17677669
    %v1144 = vlaneseq
    %v1145 = vshrl.u32 %v1144, 7
    %v1146 = vsub.s32 0, %v1145
    %v1147 = vrot.slane %v539, %v1146
    %v1148 = vlaneseq
    %v1149 = vshrl.u32 %v1148, 7
    %v1150 = vsub.s32 0, %v1149
    %v1151 = vrot.slane %v540, %v1150
    %v1154 = vadd.f32 %v1134, %v1147
    %v1155 = vadd.f32 %v1135, %v1151
    %v1156 = vadd.f32 %v1136, %v1147
    %v1157 = vadd.f32 %v1137, %v1151
    %v1158 = vadd.f32 %v1138, %v1147
    %v1159 = vadd.f32 %v1139, %v1151
    %v1160 = vadd.f32 %v1140, %v1147
    %v1161 = vadd.f32 %v1141, %v1151
    %vm1162 = vcmask 64512
    %v1163 = vsel %vm1162, %v1154, -inf
    %1164 = vmax.xlane.f32.xlu0 %v1163
    %v1165 = vpop.xlane.xlu0 %1164
    %v1166 = vsel %vm1162, %v1155, -inf
    %1167 = vmax.xlane.f32.xlu0 %v1166
    %v1168 = vpop.xlane.xlu0 %1167
    %v1169 = vsel %vm1162, %v1156, -inf
    %1170 = vmax.xlane.f32.xlu0 %v1169
    %v1171 = vpop.xlane.xlu0 %1170
    %v1172 = vsel %vm1162, %v1157, -inf
    %1173 = vmax.xlane.f32.xlu0 %v1172
    %v1174 = vpop.xlane.xlu0 %1173
    %v1175 = vsel %vm1162, %v1158, -inf
    %1176 = vmax.xlane.f32.xlu0 %v1175
    %v1177 = vpop.xlane.xlu0 %1176
    %v1178 = vsel %vm1162, %v1159, -inf
    %1179 = vmax.xlane.f32.xlu0 %v1178
    %v1180 = vpop.xlane.xlu0 %1179
    %v1181 = vsel %vm1162, %v1160, -inf
    %1182 = vmax.xlane.f32.xlu0 %v1181
    %v1183 = vpop.xlane.xlu0 %1182
    %v1184 = vsel %vm1162, %v1161, -inf
    %1185 = vmax.xlane.f32.xlu0 %v1184
    %v1186 = vpop.xlane.xlu0 %1185
    %v1187 = vsub.f32 %v1154, %v1165
    %v1188 = vsub.f32 %v1155, %v1168
    %v1189 = vsub.f32 %v1156, %v1171
    %v1190 = vsub.f32 %v1157, %v1174
    %v1191 = vsub.f32 %v1158, %v1177
    %v1192 = vsub.f32 %v1159, %v1180
    %v1193 = vsub.f32 %v1160, %v1183
    %v1194 = vsub.f32 %v1161, %v1186
    %v1195 = vmul.f32 %v1187, 1.442695
    %v1196 = vpow.pop %v1195
    %v1197 = vmul.f32 %v1188, 1.442695
    %v1198 = vpow.pop %v1197
    %v1199 = vmul.f32 %v1189, 1.442695
    %v1200 = vpow.pop %v1199
    %v1201 = vmul.f32 %v1190, 1.442695
    %v1202 = vpow.pop %v1201
    %v1203 = vmul.f32 %v1191, 1.442695
    %v1204 = vpow.pop %v1203
    %v1205 = vmul.f32 %v1192, 1.442695
    %v1206 = vpow.pop %v1205
    %v1207 = vmul.f32 %v1193, 1.442695
    %v1208 = vpow.pop %v1207
    %v1209 = vmul.f32 %v1194, 1.442695
    %v1210 = vpow.pop %v1209
    %v1211 = vsel %vm1162, %v1196, 0.0
    %1212 = vadd.xlane.f32.xlu0 %v1211
    %v1213 = vpop.xlane.xlu0 %1212
    %v1214 = vsel %vm1162, %v1198, 0.0
    %1215 = vadd.xlane.f32.xlu0 %v1214
    %v1216 = vpop.xlane.xlu0 %1215
    %v1217 = vsel %vm1162, %v1200, 0.0
    %1218 = vadd.xlane.f32.xlu0 %v1217
    %v1219 = vpop.xlane.xlu0 %1218
    %v1220 = vsel %vm1162, %v1202, 0.0
    %1221 = vadd.xlane.f32.xlu0 %v1220
    %v1222 = vpop.xlane.xlu0 %1221
    %v1223 = vsel %vm1162, %v1204, 0.0
    %1224 = vadd.xlane.f32.xlu0 %v1223
    %v1225 = vpop.xlane.xlu0 %1224
    %v1226 = vsel %vm1162, %v1206, 0.0
    %1227 = vadd.xlane.f32.xlu0 %v1226
    %v1228 = vpop.xlane.xlu0 %1227
    %v1229 = vsel %vm1162, %v1208, 0.0
    %1230 = vadd.xlane.f32.xlu0 %v1229
    %v1231 = vpop.xlane.xlu0 %1230
    %v1232 = vsel %vm1162, %v1210, 0.0
    %1233 = vadd.xlane.f32.xlu0 %v1232
    %v1234 = vpop.xlane.xlu0 %1233
    %v1235 = vrcp.pop %v1213
    %v1236 = vrcp.pop %v1216
    %v1237 = vrcp.pop %v1219
    %v1238 = vrcp.pop %v1222
    %v1239 = vrcp.pop %v1225
    %v1240 = vrcp.pop %v1228
    %v1241 = vrcp.pop %v1231
    %v1242 = vrcp.pop %v1234
    %v1243 = vmul.f32 %v1196, %v1235
    %v1244 = vmul.f32 %v1198, %v1236
    %v1245 = vmul.f32 %v1200, %v1237
    %v1246 = vmul.f32 %v1202, %v1238
    %v1247 = vmul.f32 %v1204, %v1239
    %v1248 = vmul.f32 %v1206, %v1240
    %v1249 = vmul.f32 %v1208, %v1241
    %v1250 = vmul.f32 %v1210, %v1242
    %v1252 = vsel %vm1162, %v1243, 0
    %1254 = vmatprep.subr.mxu0 0.0
    %1255 = vmatpush1.msra.mxu0 %v481
    %1256 = vmatprep.subr.mxu0 0.0
    %1257 = vmatpush1.msra.mxu0 0.0
    %1258 = vmatprep.subr.mxu0 0.0
    %1259 = vmatpush1.msra.mxu0 0.0
    %1260 = vmatprep.subr.mxu0 0.0
    %1261 = vmatpush1.msra.mxu0 0.0
    %1262 = vmatprep.subr.mxu0 0.0
    %1263 = vmatpush1.msra.mxu0 0.0
    %1264 = vmatprep.subr.mxu0 0.0
    %1265 = vmatpush1.msra.mxu0 0.0
    %1266 = vmatprep.subr.mxu0 0.0
    %1267 = vmatpush1.msra.mxu0 0.0
    %1268 = vmatprep.subr.mxu0 0.0
    %1269 = vmatpush1.msra.mxu0 0.0
    %1270 = vmatprep.subr.mxu0 0.0
    %1271 = vmatpush1.msra.mxu0 0.0
    %1272 = vmatprep.subr.mxu0 0.0
    %1273 = vmatpush1.msra.mxu0 0.0
    %1274 = vmatprep.subr.mxu0 0.0
    %1275 = vmatpush1.msra.mxu0 0.0
    %1276 = vmatprep.subr.mxu0 0.0
    %1277 = vmatpush1.msra.mxu0 0.0
    %1278 = vmatprep.subr.mxu0 0.0
    %1279 = vmatpush1.msra.mxu0 0.0
    %1280 = vmatprep.subr.mxu0 0.0
    %1281 = vmatpush1.msra.mxu0 0.0
    %1282 = vmatprep.subr.mxu0 0.0
    %1283 = vmatpush1.msra.mxu0 0.0
    %1284 = vmatprep.subr.mxu0 0.0
    %1285 = vmatpush1.msra.mxu0 0.0
    %1286 = vmatprep.subr.mxu0 0.0
    %1287 = vmatpush1.msra.mxu0 0.0
    %1288 = vmatprep.subr.mxu0 0.0
    %1289 = vmatpush1.msra.mxu0 0.0
    %1290 = vmatprep.subr.mxu0 0.0
    %1291 = vmatpush1.msra.mxu0 0.0
    %1292 = vmatprep.subr.mxu0 0.0
    %1293 = vmatpush1.msra.mxu0 0.0
    %1294 = vmatprep.subr.mxu0 0.0
    %1295 = vmatpush1.msra.mxu0 0.0
    %1296 = vmatprep.subr.mxu0 0.0
    %1297 = vmatpush1.msra.mxu0 0.0
    %1298 = vmatprep.subr.mxu0 0.0
    %1299 = vmatpush1.msra.mxu0 0.0
    %1300 = vmatprep.subr.mxu0 0.0
    %1301 = vmatpush1.msra.mxu0 0.0
    %1302 = vmatprep.subr.mxu0 0.0
    %1303 = vmatpush1.msra.mxu0 0.0
    %1304 = vmatprep.subr.mxu0 0.0
    %1305 = vmatpush1.msra.mxu0 0.0
    %1306 = vmatprep.subr.mxu0 0.0
    %1307 = vmatpush1.msra.mxu0 0.0
    %1308 = vmatprep.subr.mxu0 0.0
    %1309 = vmatpush1.msra.mxu0 0.0
    %1310 = vmatprep.subr.mxu0 0.0
    %1311 = vmatpush1.msra.mxu0 0.0
    %1312 = vmatprep.subr.mxu0 0.0
    %1313 = vmatpush1.msra.mxu0 0.0
    %1314 = vmatprep.subr.mxu0 0.0
    %1315 = vmatpush1.msra.mxu0 0.0
    %1316 = vmatprep.subr.mxu0 0.0
    %1317 = vmatpush1.msra.mxu0 0.0
    %1318 = vmatprep.mubr.f32.mxu0 0.0
    %1319 = vmatmul.mubr.f32.gmra.mrb[0].mxu0 %v1252
    %v1320 = vpop.f32.mrb[0].mxu0
    %v1321 = vadd.f32 0.0, %v1320
    %v1322 = vpop.f32.mrb[0].mxu0
    %1323 = vdwg.mxu0
    %v1325 = vsel %vm1162, %v1244, 0
    %1327 = vmatprep.subr.mxu0 0.0
    %1328 = vmatpush1.msra.mxu0 %v484
    %1329 = vmatprep.subr.mxu0 0.0
    %1330 = vmatpush1.msra.mxu0 0.0
    %1331 = vmatprep.subr.mxu0 0.0
    %1332 = vmatpush1.msra.mxu0 0.0
    %1333 = vmatprep.subr.mxu0 0.0
    %1334 = vmatpush1.msra.mxu0 0.0
    %1335 = vmatprep.subr.mxu0 0.0
    %1336 = vmatpush1.msra.mxu0 0.0
    %1337 = vmatprep.subr.mxu0 0.0
    %1338 = vmatpush1.msra.mxu0 0.0
    %1339 = vmatprep.subr.mxu0 0.0
    %1340 = vmatpush1.msra.mxu0 0.0
    %1341 = vmatprep.subr.mxu0 0.0
    %1342 = vmatpush1.msra.mxu0 0.0
    %1343 = vmatprep.subr.mxu0 0.0
    %1344 = vmatpush1.msra.mxu0 0.0
    %1345 = vmatprep.subr.mxu0 0.0
    %1346 = vmatpush1.msra.mxu0 0.0
    %1347 = vmatprep.subr.mxu0 0.0
    %1348 = vmatpush1.msra.mxu0 0.0
    %1349 = vmatprep.subr.mxu0 0.0
    %1350 = vmatpush1.msra.mxu0 0.0
    %1351 = vmatprep.subr.mxu0 0.0
    %1352 = vmatpush1.msra.mxu0 0.0
    %1353 = vmatprep.subr.mxu0 0.0
    %1354 = vmatpush1.msra.mxu0 0.0
    %1355 = vmatprep.subr.mxu0 0.0
    %1356 = vmatpush1.msra.mxu0 0.0
    %1357 = vmatprep.subr.mxu0 0.0
    %1358 = vmatpush1.msra.mxu0 0.0
    %1359 = vmatprep.subr.mxu0 0.0
    %1360 = vmatpush1.msra.mxu0 0.0
    %1361 = vmatprep.subr.mxu0 0.0
    %1362 = vmatpush1.msra.mxu0 0.0
    %1363 = vmatprep.subr.mxu0 0.0
    %1364 = vmatpush1.msra.mxu0 0.0
    %1365 = vmatprep.subr.mxu0 0.0
    %1366 = vmatpush1.msra.mxu0 0.0
    %1367 = vmatprep.subr.mxu0 0.0
    %1368 = vmatpush1.msra.mxu0 0.0
    %1369 = vmatprep.subr.mxu0 0.0
    %1370 = vmatpush1.msra.mxu0 0.0
    %1371 = vmatprep.subr.mxu0 0.0
    %1372 = vmatpush1.msra.mxu0 0.0
    %1373 = vmatprep.subr.mxu0 0.0
    %1374 = vmatpush1.msra.mxu0 0.0
    %1375 = vmatprep.subr.mxu0 0.0
    %1376 = vmatpush1.msra.mxu0 0.0
    %1377 = vmatprep.subr.mxu0 0.0
    %1378 = vmatpush1.msra.mxu0 0.0
    %1379 = vmatprep.subr.mxu0 0.0
    %1380 = vmatpush1.msra.mxu0 0.0
    %1381 = vmatprep.subr.mxu0 0.0
    %1382 = vmatpush1.msra.mxu0 0.0
    %1383 = vmatprep.subr.mxu0 0.0
    %1384 = vmatpush1.msra.mxu0 0.0
    %1385 = vmatprep.subr.mxu0 0.0
    %1386 = vmatpush1.msra.mxu0 0.0
    %1387 = vmatprep.subr.mxu0 0.0
    %1388 = vmatpush1.msra.mxu0 0.0
    %1389 = vmatprep.subr.mxu0 0.0
    %1390 = vmatpush1.msra.mxu0 0.0
    %1391 = vmatprep.mubr.f32.mxu0 0.0
    %1392 = vmatmul.mubr.f32.gmra.mrb[0].mxu0 %v1325
    %v1393 = vpop.f32.mrb[0].mxu0
    %v1394 = vadd.f32 0.0, %v1393
    %v1395 = vpop.f32.mrb[0].mxu0
    %1396 = vdwg.mxu0
    %v1398 = vsel %vm1162, %v1245, 0
    %1400 = vmatprep.subr.mxu0 0.0
    %1401 = vmatpush1.msra.mxu0 %v518
    %1402 = vmatprep.subr.mxu0 0.0
    %1403 = vmatpush1.msra.mxu0 0.0
    %1404 = vmatprep.subr.mxu0 0.0
    %1405 = vmatpush1.msra.mxu0 0.0
    %1406 = vmatprep.subr.mxu0 0.0
    %1407 = vmatpush1.msra.mxu0 0.0
    %1408 = vmatprep.subr.mxu0 0.0
    %1409 = vmatpush1.msra.mxu0 0.0
    %1410 = vmatprep.subr.mxu0 0.0
    %1411 = vmatpush1.msra.mxu0 0.0
    %1412 = vmatprep.subr.mxu0 0.0
    %1413 = vmatpush1.msra.mxu0 0.0
    %1414 = vmatprep.subr.mxu0 0.0
    %1415 = vmatpush1.msra.mxu0 0.0
    %1416 = vmatprep.subr.mxu0 0.0
    %1417 = vmatpush1.msra.mxu0 0.0
    %1418 = vmatprep.subr.mxu0 0.0
    %1419 = vmatpush1.msra.mxu0 0.0
    %1420 = vmatprep.subr.mxu0 0.0
    %1421 = vmatpush1.msra.mxu0 0.0
    %1422 = vmatprep.subr.mxu0 0.0
    %1423 = vmatpush1.msra.mxu0 0.0
    %1424 = vmatprep.subr.mxu0 0.0
    %1425 = vmatpush1.msra.mxu0 0.0
    %1426 = vmatprep.subr.mxu0 0.0
    %1427 = vmatpush1.msra.mxu0 0.0
    %1428 = vmatprep.subr.mxu0 0.0
    %1429 = vmatpush1.msra.mxu0 0.0
    %1430 = vmatprep.subr.mxu0 0.0
    %1431 = vmatpush1.msra.mxu0 0.0
    %1432 = vmatprep.subr.mxu0 0.0
    %1433 = vmatpush1.msra.mxu0 0.0
    %1434 = vmatprep.subr.mxu0 0.0
    %1435 = vmatpush1.msra.mxu0 0.0
    %1436 = vmatprep.subr.mxu0 0.0
    %1437 = vmatpush1.msra.mxu0 0.0
    %1438 = vmatprep.subr.mxu0 0.0
    %1439 = vmatpush1.msra.mxu0 0.0
    %1440 = vmatprep.subr.mxu0 0.0
    %1441 = vmatpush1.msra.mxu0 0.0
    %1442 = vmatprep.subr.mxu0 0.0
    %1443 = vmatpush1.msra.mxu0 0.0
    %1444 = vmatprep.subr.mxu0 0.0
    %1445 = vmatpush1.msra.mxu0 0.0
    %1446 = vmatprep.subr.mxu0 0.0
    %1447 = vmatpush1.msra.mxu0 0.0
    %1448 = vmatprep.subr.mxu0 0.0
    %1449 = vmatpush1.msra.mxu0 0.0
    %1450 = vmatprep.subr.mxu0 0.0
    %1451 = vmatpush1.msra.mxu0 0.0
    %1452 = vmatprep.subr.mxu0 0.0
    %1453 = vmatpush1.msra.mxu0 0.0
    %1454 = vmatprep.subr.mxu0 0.0
    %1455 = vmatpush1.msra.mxu0 0.0
    %1456 = vmatprep.subr.mxu0 0.0
    %1457 = vmatpush1.msra.mxu0 0.0
    %1458 = vmatprep.subr.mxu0 0.0
    %1459 = vmatpush1.msra.mxu0 0.0
    %1460 = vmatprep.subr.mxu0 0.0
    %1461 = vmatpush1.msra.mxu0 0.0
    %1462 = vmatprep.subr.mxu0 0.0
    %1463 = vmatpush1.msra.mxu0 0.0
    %1464 = vmatprep.mubr.f32.mxu0 0.0
    %1465 = vmatmul.mubr.f32.gmra.mrb[0].mxu0 %v1398
    %v1466 = vpop.f32.mrb[0].mxu0
    %v1467 = vadd.f32 0.0, %v1466
    %v1468 = vpop.f32.mrb[0].mxu0
    %1469 = vdwg.mxu0
    %v1471 = vsel %vm1162, %v1246, 0
    %1473 = vmatprep.subr.mxu0 0.0
    %1474 = vmatpush1.msra.mxu0 %v520
    %1475 = vmatprep.subr.mxu0 0.0
    %1476 = vmatpush1.msra.mxu0 0.0
    %1477 = vmatprep.subr.mxu0 0.0
    %1478 = vmatpush1.msra.mxu0 0.0
    %1479 = vmatprep.subr.mxu0 0.0
    %1480 = vmatpush1.msra.mxu0 0.0
    %1481 = vmatprep.subr.mxu0 0.0
    %1482 = vmatpush1.msra.mxu0 0.0
    %1483 = vmatprep.subr.mxu0 0.0
    %1484 = vmatpush1.msra.mxu0 0.0
    %1485 = vmatprep.subr.mxu0 0.0
    %1486 = vmatpush1.msra.mxu0 0.0
    %1487 = vmatprep.subr.mxu0 0.0
    %1488 = vmatpush1.msra.mxu0 0.0
    %1489 = vmatprep.subr.mxu0 0.0
    %1490 = vmatpush1.msra.mxu0 0.0
    %1491 = vmatprep.subr.mxu0 0.0
    %1492 = vmatpush1.msra.mxu0 0.0
    %1493 = vmatprep.subr.mxu0 0.0
    %1494 = vmatpush1.msra.mxu0 0.0
    %1495 = vmatprep.subr.mxu0 0.0
    %1496 = vmatpush1.msra.mxu0 0.0
    %1497 = vmatprep.subr.mxu0 0.0
    %1498 = vmatpush1.msra.mxu0 0.0
    %1499 = vmatprep.subr.mxu0 0.0
    %1500 = vmatpush1.msra.mxu0 0.0
    %1501 = vmatprep.subr.mxu0 0.0
    %1502 = vmatpush1.msra.mxu0 0.0
    %1503 = vmatprep.subr.mxu0 0.0
    %1504 = vmatpush1.msra.mxu0 0.0
    %1505 = vmatprep.subr.mxu0 0.0
    %1506 = vmatpush1.msra.mxu0 0.0
    %1507 = vmatprep.subr.mxu0 0.0
    %1508 = vmatpush1.msra.mxu0 0.0
    %1509 = vmatprep.subr.mxu0 0.0
    %1510 = vmatpush1.msra.mxu0 0.0
    %1511 = vmatprep.subr.mxu0 0.0
    %1512 = vmatpush1.msra.mxu0 0.0
    %1513 = vmatprep.subr.mxu0 0.0
    %1514 = vmatpush1.msra.mxu0 0.0
    %1515 = vmatprep.subr.mxu0 0.0
    %1516 = vmatpush1.msra.mxu0 0.0
    %1517 = vmatprep.subr.mxu0 0.0
    %1518 = vmatpush1.msra.mxu0 0.0
    %1519 = vmatprep.subr.mxu0 0.0
    %1520 = vmatpush1.msra.mxu0 0.0
    %1521 = vmatprep.subr.mxu0 0.0
    %1522 = vmatpush1.msra.mxu0 0.0
    %1523 = vmatprep.subr.mxu0 0.0
    %1524 = vmatpush1.msra.mxu0 0.0
    %1525 = vmatprep.subr.mxu0 0.0
    %1526 = vmatpush1.msra.mxu0 0.0
    %1527 = vmatprep.subr.mxu0 0.0
    %1528 = vmatpush1.msra.mxu0 0.0
    %1529 = vmatprep.subr.mxu0 0.0
    %1530 = vmatpush1.msra.mxu0 0.0
    %1531 = vmatprep.subr.mxu0 0.0
    %1532 = vmatpush1.msra.mxu0 0.0
    %1533 = vmatprep.subr.mxu0 0.0
    %1534 = vmatpush1.msra.mxu0 0.0
    %1535 = vmatprep.subr.mxu0 0.0
    %1536 = vmatpush1.msra.mxu0 0.0
    %1537 = vmatprep.mubr.f32.mxu0 0.0
    %1538 = vmatmul.mubr.f32.gmra.mrb[0].mxu0 %v1471
    %v1539 = vpop.f32.mrb[0].mxu0
    %v1540 = vadd.f32 0.0, %v1539
    %v1541 = vpop.f32.mrb[0].mxu0
    %1542 = vdwg.mxu0
    %v1544 = vsel %vm1162, %v1247, 0
    %1546 = vmatprep.subr.mxu0 0.0
    %1547 = vmatpush1.msra.mxu0 %v524
    %1548 = vmatprep.subr.mxu0 0.0
    %1549 = vmatpush1.msra.mxu0 0.0
    %1550 = vmatprep.subr.mxu0 0.0
    %1551 = vmatpush1.msra.mxu0 0.0
    %1552 = vmatprep.subr.mxu0 0.0
    %1553 = vmatpush1.msra.mxu0 0.0
    %1554 = vmatprep.subr.mxu0 0.0
    %1555 = vmatpush1.msra.mxu0 0.0
    %1556 = vmatprep.subr.mxu0 0.0
    %1557 = vmatpush1.msra.mxu0 0.0
    %1558 = vmatprep.subr.mxu0 0.0
    %1559 = vmatpush1.msra.mxu0 0.0
    %1560 = vmatprep.subr.mxu0 0.0
    %1561 = vmatpush1.msra.mxu0 0.0
    %1562 = vmatprep.subr.mxu0 0.0
    %1563 = vmatpush1.msra.mxu0 0.0
    %1564 = vmatprep.subr.mxu0 0.0
    %1565 = vmatpush1.msra.mxu0 0.0
    %1566 = vmatprep.subr.mxu0 0.0
    %1567 = vmatpush1.msra.mxu0 0.0
    %1568 = vmatprep.subr.mxu0 0.0
    %1569 = vmatpush1.msra.mxu0 0.0
    %1570 = vmatprep.subr.mxu0 0.0
    %1571 = vmatpush1.msra.mxu0 0.0
    %1572 = vmatprep.subr.mxu0 0.0
    %1573 = vmatpush1.msra.mxu0 0.0
    %1574 = vmatprep.subr.mxu0 0.0
    %1575 = vmatpush1.msra.mxu0 0.0
    %1576 = vmatprep.subr.mxu0 0.0
    %1577 = vmatpush1.msra.mxu0 0.0
    %1578 = vmatprep.subr.mxu0 0.0
    %1579 = vmatpush1.msra.mxu0 0.0
    %1580 = vmatprep.subr.mxu0 0.0
    %1581 = vmatpush1.msra.mxu0 0.0
    %1582 = vmatprep.subr.mxu0 0.0
    %1583 = vmatpush1.msra.mxu0 0.0
    %1584 = vmatprep.subr.mxu0 0.0
    %1585 = vmatpush1.msra.mxu0 0.0
    %1586 = vmatprep.subr.mxu0 0.0
    %1587 = vmatpush1.msra.mxu0 0.0
    %1588 = vmatprep.subr.mxu0 0.0
    %1589 = vmatpush1.msra.mxu0 0.0
    %1590 = vmatprep.subr.mxu0 0.0
    %1591 = vmatpush1.msra.mxu0 0.0
    %1592 = vmatprep.subr.mxu0 0.0
    %1593 = vmatpush1.msra.mxu0 0.0
    %1594 = vmatprep.subr.mxu0 0.0
    %1595 = vmatpush1.msra.mxu0 0.0
    %1596 = vmatprep.subr.mxu0 0.0
    %1597 = vmatpush1.msra.mxu0 0.0
    %1598 = vmatprep.subr.mxu0 0.0
    %1599 = vmatpush1.msra.mxu0 0.0
    %1600 = vmatprep.subr.mxu0 0.0
    %1601 = vmatpush1.msra.mxu0 0.0
    %1602 = vmatprep.subr.mxu0 0.0
    %1603 = vmatpush1.msra.mxu0 0.0
    %1604 = vmatprep.subr.mxu0 0.0
    %1605 = vmatpush1.msra.mxu0 0.0
    %1606 = vmatprep.subr.mxu0 0.0
    %1607 = vmatpush1.msra.mxu0 0.0
    %1608 = vmatprep.subr.mxu0 0.0
    %1609 = vmatpush1.msra.mxu0 0.0
    %1610 = vmatprep.mubr.f32.mxu0 0.0
    %1611 = vmatmul.mubr.f32.gmra.mrb[0].mxu0 %v1544
    %v1612 = vpop.f32.mrb[0].mxu0
    %v1613 = vadd.f32 0.0, %v1612
    %v1614 = vpop.f32.mrb[0].mxu0
    %1615 = vdwg.mxu0
    %v1617 = vsel %vm1162, %v1248, 0
    %1619 = vmatprep.subr.mxu0 0.0
    %1620 = vmatpush1.msra.mxu0 %v526
    %1621 = vmatprep.subr.mxu0 0.0
    %1622 = vmatpush1.msra.mxu0 0.0
    %1623 = vmatprep.subr.mxu0 0.0
    %1624 = vmatpush1.msra.mxu0 0.0
    %1625 = vmatprep.subr.mxu0 0.0
    %1626 = vmatpush1.msra.mxu0 0.0
    %1627 = vmatprep.subr.mxu0 0.0
    %1628 = vmatpush1.msra.mxu0 0.0
    %1629 = vmatprep.subr.mxu0 0.0
    %1630 = vmatpush1.msra.mxu0 0.0
    %1631 = vmatprep.subr.mxu0 0.0
    %1632 = vmatpush1.msra.mxu0 0.0
    %1633 = vmatprep.subr.mxu0 0.0
    %1634 = vmatpush1.msra.mxu0 0.0
    %1635 = vmatprep.subr.mxu0 0.0
    %1636 = vmatpush1.msra.mxu0 0.0
    %1637 = vmatprep.subr.mxu0 0.0
    %1638 = vmatpush1.msra.mxu0 0.0
    %1639 = vmatprep.subr.mxu0 0.0
    %1640 = vmatpush1.msra.mxu0 0.0
    %1641 = vmatprep.subr.mxu0 0.0
    %1642 = vmatpush1.msra.mxu0 0.0
    %1643 = vmatprep.subr.mxu0 0.0
    %1644 = vmatpush1.msra.mxu0 0.0
    %1645 = vmatprep.subr.mxu0 0.0
    %1646 = vmatpush1.msra.mxu0 0.0
    %1647 = vmatprep.subr.mxu0 0.0
    %1648 = vmatpush1.msra.mxu0 0.0
    %1649 = vmatprep.subr.mxu0 0.0
    %1650 = vmatpush1.msra.mxu0 0.0
    %1651 = vmatprep.subr.mxu0 0.0
    %1652 = vmatpush1.msra.mxu0 0.0
    %1653 = vmatprep.subr.mxu0 0.0
    %1654 = vmatpush1.msra.mxu0 0.0
    %1655 = vmatprep.subr.mxu0 0.0
    %1656 = vmatpush1.msra.mxu0 0.0
    %1657 = vmatprep.subr.mxu0 0.0
    %1658 = vmatpush1.msra.mxu0 0.0
    %1659 = vmatprep.subr.mxu0 0.0
    %1660 = vmatpush1.msra.mxu0 0.0
    %1661 = vmatprep.subr.mxu0 0.0
    %1662 = vmatpush1.msra.mxu0 0.0
    %1663 = vmatprep.subr.mxu0 0.0
    %1664 = vmatpush1.msra.mxu0 0.0
    %1665 = vmatprep.subr.mxu0 0.0
    %1666 = vmatpush1.msra.mxu0 0.0
    %1667 = vmatprep.subr.mxu0 0.0
    %1668 = vmatpush1.msra.mxu0 0.0
    %1669 = vmatprep.subr.mxu0 0.0
    %1670 = vmatpush1.msra.mxu0 0.0
    %1671 = vmatprep.subr.mxu0 0.0
    %1672 = vmatpush1.msra.mxu0 0.0
    %1673 = vmatprep.subr.mxu0 0.0
    %1674 = vmatpush1.msra.mxu0 0.0
    %1675 = vmatprep.subr.mxu0 0.0
    %1676 = vmatpush1.msra.mxu0 0.0
    %1677 = vmatprep.subr.mxu0 0.0
    %1678 = vmatpush1.msra.mxu0 0.0
    %1679 = vmatprep.subr.mxu0 0.0
    %1680 = vmatpush1.msra.mxu0 0.0
    %1681 = vmatprep.subr.mxu0 0.0
    %1682 = vmatpush1.msra.mxu0 0.0
    %1683 = vmatprep.mubr.f32.mxu0 0.0
    %1684 = vmatmul.mubr.f32.gmra.mrb[0].mxu0 %v1617
    %v1685 = vpop.f32.mrb[0].mxu0
    %v1686 = vadd.f32 0.0, %v1685
    %v1687 = vpop.f32.mrb[0].mxu0
    %1688 = vdwg.mxu0
    %v1690 = vsel %vm1162, %v1249, 0
    %1692 = vmatprep.subr.mxu0 0.0
    %1693 = vmatpush1.msra.mxu0 %v530
    %1694 = vmatprep.subr.mxu0 0.0
    %1695 = vmatpush1.msra.mxu0 0.0
    %1696 = vmatprep.subr.mxu0 0.0
    %1697 = vmatpush1.msra.mxu0 0.0
    %1698 = vmatprep.subr.mxu0 0.0
    %1699 = vmatpush1.msra.mxu0 0.0
    %1700 = vmatprep.subr.mxu0 0.0
    %1701 = vmatpush1.msra.mxu0 0.0
    %1702 = vmatprep.subr.mxu0 0.0
    %1703 = vmatpush1.msra.mxu0 0.0
    %1704 = vmatprep.subr.mxu0 0.0
    %1705 = vmatpush1.msra.mxu0 0.0
    %1706 = vmatprep.subr.mxu0 0.0
    %1707 = vmatpush1.msra.mxu0 0.0
    %1708 = vmatprep.subr.mxu0 0.0
    %1709 = vmatpush1.msra.mxu0 0.0
    %1710 = vmatprep.subr.mxu0 0.0
    %1711 = vmatpush1.msra.mxu0 0.0
    %1712 = vmatprep.subr.mxu0 0.0
    %1713 = vmatpush1.msra.mxu0 0.0
    %1714 = vmatprep.subr.mxu0 0.0
    %1715 = vmatpush1.msra.mxu0 0.0
    %1716 = vmatprep.subr.mxu0 0.0
    %1717 = vmatpush1.msra.mxu0 0.0
    %1718 = vmatprep.subr.mxu0 0.0
    %1719 = vmatpush1.msra.mxu0 0.0
    %1720 = vmatprep.subr.mxu0 0.0
    %1721 = vmatpush1.msra.mxu0 0.0
    %1722 = vmatprep.subr.mxu0 0.0
    %1723 = vmatpush1.msra.mxu0 0.0
    %1724 = vmatprep.subr.mxu0 0.0
    %1725 = vmatpush1.msra.mxu0 0.0
    %1726 = vmatprep.subr.mxu0 0.0
    %1727 = vmatpush1.msra.mxu0 0.0
    %1728 = vmatprep.subr.mxu0 0.0
    %1729 = vmatpush1.msra.mxu0 0.0
    %1730 = vmatprep.subr.mxu0 0.0
    %1731 = vmatpush1.msra.mxu0 0.0
    %1732 = vmatprep.subr.mxu0 0.0
    %1733 = vmatpush1.msra.mxu0 0.0
    %1734 = vmatprep.subr.mxu0 0.0
    %1735 = vmatpush1.msra.mxu0 0.0
    %1736 = vmatprep.subr.mxu0 0.0
    %1737 = vmatpush1.msra.mxu0 0.0
    %1738 = vmatprep.subr.mxu0 0.0
    %1739 = vmatpush1.msra.mxu0 0.0
    %1740 = vmatprep.subr.mxu0 0.0
    %1741 = vmatpush1.msra.mxu0 0.0
    %1742 = vmatprep.subr.mxu0 0.0
    %1743 = vmatpush1.msra.mxu0 0.0
    %1744 = vmatprep.subr.mxu0 0.0
    %1745 = vmatpush1.msra.mxu0 0.0
    %1746 = vmatprep.subr.mxu0 0.0
    %1747 = vmatpush1.msra.mxu0 0.0
    %1748 = vmatprep.subr.mxu0 0.0
    %1749 = vmatpush1.msra.mxu0 0.0
    %1750 = vmatprep.subr.mxu0 0.0
    %1751 = vmatpush1.msra.mxu0 0.0
    %1752 = vmatprep.subr.mxu0 0.0
    %1753 = vmatpush1.msra.mxu0 0.0
    %1754 = vmatprep.subr.mxu0 0.0
    %1755 = vmatpush1.msra.mxu0 0.0
    %1756 = vmatprep.mubr.f32.mxu0 0.0
    %1757 = vmatmul.mubr.f32.gmra.mrb[0].mxu0 %v1690
    %v1758 = vpop.f32.mrb[0].mxu0
    %v1759 = vadd.f32 0.0, %v1758
    %v1760 = vpop.f32.mrb[0].mxu0
    %1761 = vdwg.mxu0
    %v1763 = vsel %vm1162, %v1250, 0
    %1765 = vmatprep.subr.mxu0 0.0
    %1766 = vmatpush1.msra.mxu0 %v532
    %1767 = vmatprep.subr.mxu0 0.0
    %1768 = vmatpush1.msra.mxu0 0.0
    %1769 = vmatprep.subr.mxu0 0.0
    %1770 = vmatpush1.msra.mxu0 0.0
    %1771 = vmatprep.subr.mxu0 0.0
    %1772 = vmatpush1.msra.mxu0 0.0
    %1773 = vmatprep.subr.mxu0 0.0
    %1774 = vmatpush1.msra.mxu0 0.0
    %1775 = vmatprep.subr.mxu0 0.0
    %1776 = vmatpush1.msra.mxu0 0.0
    %1777 = vmatprep.subr.mxu0 0.0
    %1778 = vmatpush1.msra.mxu0 0.0
    %1779 = vmatprep.subr.mxu0 0.0
    %1780 = vmatpush1.msra.mxu0 0.0
    %1781 = vmatprep.subr.mxu0 0.0
    %1782 = vmatpush1.msra.mxu0 0.0
    %1783 = vmatprep.subr.mxu0 0.0
    %1784 = vmatpush1.msra.mxu0 0.0
    %1785 = vmatprep.subr.mxu0 0.0
    %1786 = vmatpush1.msra.mxu0 0.0
    %1787 = vmatprep.subr.mxu0 0.0
    %1788 = vmatpush1.msra.mxu0 0.0
    %1789 = vmatprep.subr.mxu0 0.0
    %1790 = vmatpush1.msra.mxu0 0.0
    %1791 = vmatprep.subr.mxu0 0.0
    %1792 = vmatpush1.msra.mxu0 0.0
    %1793 = vmatprep.subr.mxu0 0.0
    %1794 = vmatpush1.msra.mxu0 0.0
    %1795 = vmatprep.subr.mxu0 0.0
    %1796 = vmatpush1.msra.mxu0 0.0
    %1797 = vmatprep.subr.mxu0 0.0
    %1798 = vmatpush1.msra.mxu0 0.0
    %1799 = vmatprep.subr.mxu0 0.0
    %1800 = vmatpush1.msra.mxu0 0.0
    %1801 = vmatprep.subr.mxu0 0.0
    %1802 = vmatpush1.msra.mxu0 0.0
    %1803 = vmatprep.subr.mxu0 0.0
    %1804 = vmatpush1.msra.mxu0 0.0
    %1805 = vmatprep.subr.mxu0 0.0
    %1806 = vmatpush1.msra.mxu0 0.0
    %1807 = vmatprep.subr.mxu0 0.0
    %1808 = vmatpush1.msra.mxu0 0.0
    %1809 = vmatprep.subr.mxu0 0.0
    %1810 = vmatpush1.msra.mxu0 0.0
    %1811 = vmatprep.subr.mxu0 0.0
    %1812 = vmatpush1.msra.mxu0 0.0
    %1813 = vmatprep.subr.mxu0 0.0
    %1814 = vmatpush1.msra.mxu0 0.0
    %1815 = vmatprep.subr.mxu0 0.0
    %1816 = vmatpush1.msra.mxu0 0.0
    %1817 = vmatprep.subr.mxu0 0.0
    %1818 = vmatpush1.msra.mxu0 0.0
    %1819 = vmatprep.subr.mxu0 0.0
    %1820 = vmatpush1.msra.mxu0 0.0
    %1821 = vmatprep.subr.mxu0 0.0
    %1822 = vmatpush1.msra.mxu0 0.0
    %1823 = vmatprep.subr.mxu0 0.0
    %1824 = vmatpush1.msra.mxu0 0.0
    %1825 = vmatprep.subr.mxu0 0.0
    %1826 = vmatpush1.msra.mxu0 0.0
    %1827 = vmatprep.subr.mxu0 0.0
    %1828 = vmatpush1.msra.mxu0 0.0
    %1829 = vmatprep.mubr.f32.mxu0 0.0
    %1830 = vmatmul.mubr.f32.gmra.mrb[0].mxu0 %v1763
    %v1831 = vpop.f32.mrb[0].mxu0
    %v1832 = vadd.f32 0.0, %v1831
    %v1833 = vpop.f32.mrb[0].mxu0
    %1834 = vdwg.mxu0
    %1837 = vrot.lane.b32.xlu0 %v1467, 32
    %v1838 = vpop.permute.xlu0 %1837
    %1839 = vrot.lane.b32.xlu0 %v1540, 32
    %v1840 = vpop.permute.xlu0 %1839
    %1845 = vrot.lane.b32.xlu0 %v1613, 64
    %v1846 = vpop.permute.xlu0 %1845
    %1847 = vrot.lane.b32.xlu0 %v1686, 64
    %v1848 = vpop.permute.xlu0 %1847
    %1853 = vrot.lane.b32.xlu0 %v1759, 96
    %v1854 = vpop.permute.xlu0 %1853
    %1855 = vrot.lane.b32.xlu0 %v1832, 96
    %v1856 = vpop.permute.xlu0 %1855
    %v1859 = vsel %vm541, %v1321, %v1838
    %v1860 = vsel %vm541, %v1394, %v1840
    %vm1861 = vcmask 523264
    %v1862 = vsel %vm1861, %v1859, %v1846
    %v1863 = vsel %vm1861, %v1860, %v1848
    %vm1864 = vcmask 785408
    %v1865 = vsel %vm1864, %v1862, %v1854
    %v1866 = vsel %vm1864, %v1863, %v1856
    %v1867 = vpack.c.bf16 %v1866, %v1865
    %v1868 = vld [vmem:[%s8] sm:$0xf]
    %v1869 = vld [vmem:[%s8 + $0x4] sm:$0xf]
    %v1870 = vld [vmem:[%s8 + $0x8] sm:$0xf]
    %v1871 = vld [vmem:[%s8 + $0xc] sm:$0xf]
    %v1872 = vld [vmem:[%s8 + $0x10] sm:$0xf]
    %v1873 = vld [vmem:[%s8 + $0x14] sm:$0xf]
    %v1874 = vld [vmem:[%s8 + $0x18] sm:$0xf]
    %v1875 = vld [vmem:[%s8 + $0x1c] sm:$0xf]
    %v1876 = vld [vmem:[%s8 + $0x20] sm:$0xf]
    %v1877 = vld [vmem:[%s8 + $0x24] sm:$0xf]
    %v1878 = vld [vmem:[%s8 + $0x28] sm:$0xf]
    %v1879 = vld [vmem:[%s8 + $0x2c] sm:$0xf]
    %v1880 = vld [vmem:[%s8 + $0x30] sm:$0xf]
    %v1881 = vld [vmem:[%s8 + $0x34] sm:$0xf]
    %v1882 = vld [vmem:[%s8 + $0x38] sm:$0xf]
    %v1883 = vld [vmem:[%s8 + $0x3c] sm:$0xf]
    %v1884 = vld [vmem:[#allocation13] sm:$0x1]
    %v1886 = vlaneseq
    %v1887 = vshrl.u32 %v1886, 7
    %v1888 = vsub.s32 0, %v1887
    %v1889 = vrot.slane %v1884, %v1888
    %v1907 = vunpack.c.l.b16 %v1868
    %v1908 = vunpack.c.l.b16 %v1869
    %v1909 = vunpack.c.l.b16 %v1870
    %v1910 = vunpack.c.l.b16 %v1871
    %v1911 = vunpack.c.l.b16 %v1872
    %v1912 = vunpack.c.l.b16 %v1873
    %v1913 = vunpack.c.l.b16 %v1874
    %v1914 = vunpack.c.l.b16 %v1875
    %v1915 = vunpack.c.l.b16 %v1876
    %v1916 = vunpack.c.l.b16 %v1877
    %v1917 = vunpack.c.l.b16 %v1878
    %v1918 = vunpack.c.l.b16 %v1879
    %v1919 = vunpack.c.l.b16 %v1880
    %v1920 = vunpack.c.l.b16 %v1881
    %v1921 = vunpack.c.l.b16 %v1882
    %v1922 = vunpack.c.l.b16 %v1883
    %v1923 = vpack.c.b16 %v1908, %v1907
    %v1924 = vpack.c.b16 %v1910, %v1909
    %v1925 = vpack.c.b16 %v1912, %v1911
    %v1926 = vpack.c.b16 %v1914, %v1913
    %v1927 = vpack.c.b16 %v1916, %v1915
    %v1928 = vpack.c.b16 %v1918, %v1917
    %v1929 = vpack.c.b16 %v1920, %v1919
    %v1930 = vpack.c.b16 %v1922, %v1921
    %1939 = vmatprep.subr.bf16.mxu0 0
    %1940 = vmatpush1.bf16.msra.mxu0 %v1923
    %1941 = vmatprep.subr.bf16.mxu0 0
    %1942 = vmatpush1.bf16.msra.mxu0 %v1924
    %1943 = vmatprep.subr.bf16.mxu0 0
    %1944 = vmatpush1.bf16.msra.mxu0 %v1925
    %1945 = vmatprep.subr.bf16.mxu0 0
    %1946 = vmatpush1.bf16.msra.mxu0 %v1926
    %1947 = vmatprep.subr.bf16.mxu0 0
    %1948 = vmatpush1.bf16.msra.mxu0 %v1927
    %1949 = vmatprep.subr.bf16.mxu0 0
    %1950 = vmatpush1.bf16.msra.mxu0 %v1928
    %1951 = vmatprep.subr.bf16.mxu0 0
    %1952 = vmatpush1.bf16.msra.mxu0 %v1929
    %1953 = vmatprep.subr.bf16.mxu0 0
    %1954 = vmatpush1.bf16.msra.mxu0 %v1930
    %1955 = vmatprep.subr.bf16.mxu0 0
    %1956 = vmatpush1.bf16.msra.mxu0 0
    %1957 = vmatprep.subr.bf16.mxu0 0
    %1958 = vmatpush1.bf16.msra.mxu0 0
    %1959 = vmatprep.subr.bf16.mxu0 0
    %1960 = vmatpush1.bf16.msra.mxu0 0
    %1961 = vmatprep.subr.bf16.mxu0 0
    %1962 = vmatpush1.bf16.msra.mxu0 0
    %1963 = vmatprep.subr.bf16.mxu0 0
    %1964 = vmatpush1.bf16.msra.mxu0 0
    %1965 = vmatprep.subr.bf16.mxu0 0
    %1966 = vmatpush1.bf16.msra.mxu0 0
    %1967 = vmatprep.subr.bf16.mxu0 0
    %1968 = vmatpush1.bf16.msra.mxu0 0
    %1969 = vmatprep.subr.bf16.mxu0 0
    %1970 = vmatpush1.bf16.msra.mxu0 0
    %1971 = vmatprep.mubr.bf16.mxu0 0
    %1972 = vmatmul.mubr.bf16.gmra.mrb[0].mxu0 %v1867
    %v1973 = vpop.f32.mrb[0].mxu0
    %v1974 = vadd.f32 %v1889, %v1973
    %v1975 = vpop.f32.mrb[0].mxu0
    %v1976 = vpop.f32.mrb[0].mxu0
    %v1977 = vadd.f32 %v1889, %v1976
    %v1978 = vpop.f32.mrb[0].mxu0
    %1979 = vdwg.mxu0
    %v1980 = vadd.f32 %v223, %v1974
    %v1981 = vadd.f32 %v224, %v1977
    %v1982 = vld [vmem:[#allocation7 + $0x1] sm:$0x1]
    %v1983 = vld [vmem:[#allocation8 + $0x1] sm:$0x1]
    %1984 = vadd.xlane.f32.xlu0 %v1980
    %v1985 = vpop.xlane.xlu0 %1984
    %1986 = vadd.xlane.f32.xlu0 %v1981
    %v1987 = vpop.xlane.xlu0 %1986
    %v1988 = vmul.f32 %v1985, %v194
    %v1989 = vmul.f32 %v1987, %v194
    %v1990 = vsub.f32 %v1980, %v1988
    %v1991 = vsub.f32 %v1981, %v1989
    %v1992 = vmul.f32 %v1990, %v1990
    %v1993 = vmul.f32 %v1991, %v1991
    %1994 = vadd.xlane.f32.xlu0 %v1992
    %v1995 = vpop.xlane.xlu0 %1994
    %1996 = vadd.xlane.f32.xlu0 %v1993
    %v1997 = vpop.xlane.xlu0 %1996
    %v1998 = vmul.f32 %v1995, %v194
    %v1999 = vmul.f32 %v1997, %v194
    %v2000 = vadd.f32 %v1998, 1e-12
    %v2001 = vadd.f32 %v1999, 1e-12
    %v2002 = vrsqrt.pop %v2000
    %v2003 = vrsqrt.pop %v2001
    %v2004 = vmul.f32 %v1990, %v2002
    %v2005 = vmul.f32 %v1991, %v2003
    %v2006 = vlaneseq
    %v2007 = vshrl.u32 %v2006, 7
    %v2008 = vsub.s32 0, %v2007
    %v2009 = vrot.slane %v1982, %v2008
    %v2010 = vmul.f32 %v2004, %v2009
    %v2011 = vmul.f32 %v2005, %v2009
    %v2012 = vlaneseq
    %v2013 = vshrl.u32 %v2012, 7
    %v2014 = vsub.s32 0, %v2013
    %v2015 = vrot.slane %v1983, %v2014
    %v2016 = vadd.f32 %v2010, %v2015
    %v2017 = vadd.f32 %v2011, %v2015
    %v2018 = vpack.c.bf16 %v2017, %v2016
    %v2019 = vld [vmem:[#allocation14] sm:$0xff]
    %v2020 = vld [vmem:[#allocation14 + $0x8] sm:$0xff]
    %v2021 = vld [vmem:[#allocation14 + $0x10] sm:$0xff]
    %v2022 = vld [vmem:[#allocation14 + $0x18] sm:$0xff]
    %v2023 = vld [vmem:[#allocation14 + $0x20] sm:$0xff]
    %v2024 = vld [vmem:[#allocation14 + $0x28] sm:$0xff]
    %v2025 = vld [vmem:[#allocation14 + $0x30] sm:$0xff]
    %v2026 = vld [vmem:[#allocation14 + $0x38] sm:$0xff]
    %v2027 = vld [vmem:[#allocation14 + $0x40] sm:$0xff]
    %v2028 = vld [vmem:[#allocation14 + $0x48] sm:$0xff]
    %v2029 = vld [vmem:[#allocation14 + $0x50] sm:$0xff]
    %v2030 = vld [vmem:[#allocation14 + $0x58] sm:$0xff]
    %v2031 = vld [vmem:[#allocation14 + $0x60] sm:$0xff]
    %v2032 = vld [vmem:[#allocation14 + $0x68] sm:$0xff]
    %v2033 = vld [vmem:[#allocation14 + $0x70] sm:$0xff]
    %v2034 = vld [vmem:[#allocation14 + $0x78] sm:$0xff]
    %v2035 = vld [vmem:[#allocation14 + $0x80] sm:$0xff]
    %v2036 = vld [vmem:[#allocation14 + $0x88] sm:$0xff]
    %v2037 = vld [vmem:[#allocation14 + $0x90] sm:$0xff]
    %v2038 = vld [vmem:[#allocation14 + $0x98] sm:$0xff]
    %v2039 = vld [vmem:[#allocation14 + $0xa0] sm:$0xff]
    %v2040 = vld [vmem:[#allocation14 + $0xa8] sm:$0xff]
    %v2041 = vld [vmem:[#allocation14 + $0xb0] sm:$0xff]
    %v2042 = vld [vmem:[#allocation14 + $0xb8] sm:$0xff]
    %v2043 = vld [vmem:[#allocation14 + $0xc0] sm:$0xff]
    %v2044 = vld [vmem:[#allocation14 + $0xc8] sm:$0xff]
    %v2045 = vld [vmem:[#allocation14 + $0xd0] sm:$0xff]
    %v2046 = vld [vmem:[#allocation14 + $0xd8] sm:$0xff]
    %v2047 = vld [vmem:[#allocation14 + $0xe0] sm:$0xff]
    %v2048 = vld [vmem:[#allocation14 + $0xe8] sm:$0xff]
    %v2049 = vld [vmem:[#allocation14 + $0xf0] sm:$0xff]
    %v2050 = vld [vmem:[#allocation14 + $0xf8] sm:$0xff]
    %v2051 = vld [vmem:[%s11] sm:$0xf]
    %v2053 = vlaneseq
    %v2054 = vshrl.u32 %v2053, 7
    %v2055 = vsub.s32 0, %v2054
    %v2056 = vrot.slane %v2051, %v2055
    %v2057 = vlaneseq
    %v2058 = vshrl.u32 %v2057, 7
    %v2059 = vsub.s32 1, %v2058
    %v2060 = vrot.slane %v2051, %v2059
    %v2061 = vlaneseq
    %v2062 = vshrl.u32 %v2061, 7
    %v2063 = vsub.s32 2, %v2062
    %v2064 = vrot.slane %v2051, %v2063
    %v2065 = vlaneseq
    %v2066 = vshrl.u32 %v2065, 7
    %v2067 = vsub.s32 3, %v2066
    %v2068 = vrot.slane %v2051, %v2067
    %v2105 = vunpack.c.l.b16 %v2019
    %v2106 = vunpack.c.h.b16 %v2019
    %v2107 = vunpack.c.l.b16 %v2020
    %v2108 = vunpack.c.h.b16 %v2020
    %v2109 = vunpack.c.l.b16 %v2021
    %v2110 = vunpack.c.h.b16 %v2021
    %v2111 = vunpack.c.l.b16 %v2022
    %v2112 = vunpack.c.h.b16 %v2022
    %v2113 = vunpack.c.l.b16 %v2023
    %v2114 = vunpack.c.h.b16 %v2023
    %v2115 = vunpack.c.l.b16 %v2024
    %v2116 = vunpack.c.h.b16 %v2024
    %v2117 = vunpack.c.l.b16 %v2025
    %v2118 = vunpack.c.h.b16 %v2025
    %v2119 = vunpack.c.l.b16 %v2026
    %v2120 = vunpack.c.h.b16 %v2026
    %v2121 = vunpack.c.l.b16 %v2027
    %v2122 = vunpack.c.h.b16 %v2027
    %v2123 = vunpack.c.l.b16 %v2028
    %v2124 = vunpack.c.h.b16 %v2028
    %v2125 = vunpack.c.l.b16 %v2029
    %v2126 = vunpack.c.h.b16 %v2029
    %v2127 = vunpack.c.l.b16 %v2030
    %v2128 = vunpack.c.h.b16 %v2030
    %v2129 = vunpack.c.l.b16 %v2031
    %v2130 = vunpack.c.h.b16 %v2031
    %v2131 = vunpack.c.l.b16 %v2032
    %v2132 = vunpack.c.h.b16 %v2032
    %v2133 = vunpack.c.l.b16 %v2033
    %v2134 = vunpack.c.h.b16 %v2033
    %v2135 = vunpack.c.l.b16 %v2034
    %v2136 = vunpack.c.h.b16 %v2034
    %v2137 = vunpack.c.l.b16 %v2035
    %v2138 = vunpack.c.h.b16 %v2035
    %v2139 = vunpack.c.l.b16 %v2036
    %v2140 = vunpack.c.h.b16 %v2036
    %v2141 = vunpack.c.l.b16 %v2037
    %v2142 = vunpack.c.h.b16 %v2037
    %v2143 = vunpack.c.l.b16 %v2038
    %v2144 = vunpack.c.h.b16 %v2038
    %v2145 = vunpack.c.l.b16 %v2039
    %v2146 = vunpack.c.h.b16 %v2039
    %v2147 = vunpack.c.l.b16 %v2040
    %v2148 = vunpack.c.h.b16 %v2040
    %v2149 = vunpack.c.l.b16 %v2041
    %v2150 = vunpack.c.h.b16 %v2041
    %v2151 = vunpack.c.l.b16 %v2042
    %v2152 = vunpack.c.h.b16 %v2042
    %v2153 = vunpack.c.l.b16 %v2043
    %v2154 = vunpack.c.h.b16 %v2043
    %v2155 = vunpack.c.l.b16 %v2044
    %v2156 = vunpack.c.h.b16 %v2044
    %v2157 = vunpack.c.l.b16 %v2045
    %v2158 = vunpack.c.h.b16 %v2045
    %v2159 = vunpack.c.l.b16 %v2046
    %v2160 = vunpack.c.h.b16 %v2046
    %v2161 = vunpack.c.l.b16 %v2047
    %v2162 = vunpack.c.h.b16 %v2047
    %v2163 = vunpack.c.l.b16 %v2048
    %v2164 = vunpack.c.h.b16 %v2048
    %v2165 = vunpack.c.l.b16 %v2049
    %v2166 = vunpack.c.h.b16 %v2049
    %v2167 = vunpack.c.l.b16 %v2050
    %v2168 = vunpack.c.h.b16 %v2050
    %v2169 = vpack.c.b16 %v2109, %v2105
    %v2170 = vpack.c.b16 %v2110, %v2106
    %v2171 = vpack.c.b16 %v2111, %v2107
    %v2172 = vpack.c.b16 %v2112, %v2108
    %v2173 = vpack.c.b16 %v2117, %v2113
    %v2174 = vpack.c.b16 %v2118, %v2114
    %v2175 = vpack.c.b16 %v2119, %v2115
    %v2176 = vpack.c.b16 %v2120, %v2116
    %v2177 = vpack.c.b16 %v2125, %v2121
    %v2178 = vpack.c.b16 %v2126, %v2122
    %v2179 = vpack.c.b16 %v2127, %v2123
    %v2180 = vpack.c.b16 %v2128, %v2124
    %v2181 = vpack.c.b16 %v2133, %v2129
    %v2182 = vpack.c.b16 %v2134, %v2130
    %v2183 = vpack.c.b16 %v2135, %v2131
    %v2184 = vpack.c.b16 %v2136, %v2132
    %v2185 = vpack.c.b16 %v2141, %v2137
    %v2186 = vpack.c.b16 %v2142, %v2138
    %v2187 = vpack.c.b16 %v2143, %v2139
    %v2188 = vpack.c.b16 %v2144, %v2140
    %v2189 = vpack.c.b16 %v2149, %v2145
    %v2190 = vpack.c.b16 %v2150, %v2146
    %v2191 = vpack.c.b16 %v2151, %v2147
    %v2192 = vpack.c.b16 %v2152, %v2148
    %v2193 = vpack.c.b16 %v2157, %v2153
    %v2194 = vpack.c.b16 %v2158, %v2154
    %v2195 = vpack.c.b16 %v2159, %v2155
    %v2196 = vpack.c.b16 %v2160, %v2156
    %v2197 = vpack.c.b16 %v2165, %v2161
    %v2198 = vpack.c.b16 %v2166, %v2162
    %v2199 = vpack.c.b16 %v2167, %v2163
    %v2200 = vpack.c.b16 %v2168, %v2164
    %2233 = vmatprep.subr.bf16.mxu0 %v2170
    %2234 = vmatpush1.bf16.msra.mxu0 %v2169
    %2235 = vmatprep.subr.bf16.mxu0 %v2174
    %2236 = vmatpush1.bf16.msra.mxu0 %v2173
    %2237 = vmatprep.subr.bf16.mxu0 %v2178
    %2238 = vmatpush1.bf16.msra.mxu0 %v2177
    %2239 = vmatprep.subr.bf16.mxu0 %v2182
    %2240 = vmatpush1.bf16.msra.mxu0 %v2181
    %2241 = vmatprep.subr.bf16.mxu0 %v2186
    %2242 = vmatpush1.bf16.msra.mxu0 %v2185
    %2243 = vmatprep.subr.bf16.mxu0 %v2190
    %2244 = vmatpush1.bf16.msra.mxu0 %v2189
    %2245 = vmatprep.subr.bf16.mxu0 %v2194
    %2246 = vmatpush1.bf16.msra.mxu0 %v2193
    %2247 = vmatprep.subr.bf16.mxu0 %v2198
    %2248 = vmatpush1.bf16.msra.mxu0 %v2197
    %2249 = vmatprep.subr.bf16.mxu0 0
    %2250 = vmatpush1.bf16.msra.mxu0 0
    %2251 = vmatprep.subr.bf16.mxu0 0
    %2252 = vmatpush1.bf16.msra.mxu0 0
    %2253 = vmatprep.subr.bf16.mxu0 0
    %2254 = vmatpush1.bf16.msra.mxu0 0
    %2255 = vmatprep.subr.bf16.mxu0 0
    %2256 = vmatpush1.bf16.msra.mxu0 0
    %2257 = vmatprep.subr.bf16.mxu0 0
    %2258 = vmatpush1.bf16.msra.mxu0 0
    %2259 = vmatprep.subr.bf16.mxu0 0
    %2260 = vmatpush1.bf16.msra.mxu0 0
    %2261 = vmatprep.subr.bf16.mxu0 0
    %2262 = vmatpush1.bf16.msra.mxu0 0
    %2263 = vmatprep.subr.bf16.mxu0 0
    %2264 = vmatpush1.bf16.msra.mxu0 0
    %2265 = vmatprep.mubr.bf16.mxu0 0
    %2266 = vmatmul.mubr.bf16.gmra.mrb[0].mxu0 %v2018
    %v2267 = vpop.f32.mrb[0].mxu0
    %v2268 = vadd.f32 %v2056, %v2267
    %v2269 = vpop.f32.mrb[0].mxu0
    %v2270 = vadd.f32 %v2060, %v2269
    %v2271 = vpop.f32.mrb[0].mxu0
    %v2272 = vadd.f32 %v2056, %v2271
    %v2273 = vpop.f32.mrb[0].mxu0
    %v2274 = vadd.f32 %v2060, %v2273
    %2275 = vdwg.mxu0
    %2276 = vmatprep.subr.bf16.mxu0 %v2172
    %2277 = vmatpush1.bf16.msra.mxu0 %v2171
    %2278 = vmatprep.subr.bf16.mxu0 %v2176
    %2279 = vmatpush1.bf16.msra.mxu0 %v2175
    %2280 = vmatprep.subr.bf16.mxu0 %v2180
    %2281 = vmatpush1.bf16.msra.mxu0 %v2179
    %2282 = vmatprep.subr.bf16.mxu0 %v2184
    %2283 = vmatpush1.bf16.msra.mxu0 %v2183
    %2284 = vmatprep.subr.bf16.mxu0 %v2188
    %2285 = vmatpush1.bf16.msra.mxu0 %v2187
    %2286 = vmatprep.subr.bf16.mxu0 %v2192
    %2287 = vmatpush1.bf16.msra.mxu0 %v2191
    %2288 = vmatprep.subr.bf16.mxu0 %v2196
    %2289 = vmatpush1.bf16.msra.mxu0 %v2195
    %2290 = vmatprep.subr.bf16.mxu0 %v2200
    %2291 = vmatpush1.bf16.msra.mxu0 %v2199
    %2292 = vmatprep.subr.bf16.mxu0 0
    %2293 = vmatpush1.bf16.msra.mxu0 0
    %2294 = vmatprep.subr.bf16.mxu0 0
    %2295 = vmatpush1.bf16.msra.mxu0 0
    %2296 = vmatprep.subr.bf16.mxu0 0
    %2297 = vmatpush1.bf16.msra.mxu0 0
    %2298 = vmatprep.subr.bf16.mxu0 0
    %2299 = vmatpush1.bf16.msra.mxu0 0
    %2300 = vmatprep.subr.bf16.mxu0 0
    %2301 = vmatpush1.bf16.msra.mxu0 0
    %2302 = vmatprep.subr.bf16.mxu0 0
    %2303 = vmatpush1.bf16.msra.mxu0 0
    %2304 = vmatprep.subr.bf16.mxu0 0
    %2305 = vmatpush1.bf16.msra.mxu0 0
    %2306 = vmatprep.subr.bf16.mxu0 0
    %2307 = vmatpush1.bf16.msra.mxu0 0
    %2308 = vmatprep.mubr.bf16.mxu0 0
    %2309 = vmatmul.mubr.bf16.gmra.mrb[0].mxu0 %v2018
    %v2310 = vpop.f32.mrb[0].mxu0
    %v2311 = vadd.f32 %v2064, %v2310
    %v2312 = vpop.f32.mrb[0].mxu0
    %v2313 = vadd.f32 %v2068, %v2312
    %v2314 = vpop.f32.mrb[0].mxu0
    %v2315 = vadd.f32 %v2064, %v2314
    %v2316 = vpop.f32.mrb[0].mxu0
    %v2317 = vadd.f32 %v2068, %v2316
    %2318 = vdwg.mxu0
    %v2319 = vmul.f32 %v2268, %v2268
    %v2320 = vmul.f32 %v2270, %v2270
    %v2321 = vmul.f32 %v2311, %v2311
    %v2322 = vmul.f32 %v2313, %v2313
    %v2323 = vmul.f32 %v2272, %v2272
    %v2324 = vmul.f32 %v2274, %v2274
    %v2325 = vmul.f32 %v2315, %v2315
    %v2326 = vmul.f32 %v2317, %v2317
    %v2327 = vmul.f32 %v2268, %v2319
    %v2328 = vmul.f32 %v2270, %v2320
    %v2329 = vmul.f32 %v2311, %v2321
    %v2330 = vmul.f32 %v2313, %v2322
    %v2331 = vmul.f32 %v2272, %v2323
    %v2332 = vmul.f32 %v2274, %v2324
    %v2333 = vmul.f32 %v2315, %v2325
    %v2334 = vmul.f32 %v2317, %v2326
    %v2335 = vmul.f32 %v2327, 0.044715
    %v2336 = vmul.f32 %v2328, 0.044715
    %v2337 = vmul.f32 %v2329, 0.044715
    %v2338 = vmul.f32 %v2330, 0.044715
    %v2339 = vmul.f32 %v2331, 0.044715
    %v2340 = vmul.f32 %v2332, 0.044715
    %v2341 = vmul.f32 %v2333, 0.044715
    %v2342 = vmul.f32 %v2334, 0.044715
    %v2343 = vadd.f32 %v2268, %v2335
    %v2344 = vadd.f32 %v2270, %v2336
    %v2345 = vadd.f32 %v2311, %v2337
    %v2346 = vadd.f32 %v2313, %v2338
    %v2347 = vadd.f32 %v2272, %v2339
    %v2348 = vadd.f32 %v2274, %v2340
    %v2349 = vadd.f32 %v2315, %v2341
    %v2350 = vadd.f32 %v2317, %v2342
    %v2351 = vmul.f32 %v2343, 0.7978846
    %v2352 = vmul.f32 %v2344, 0.7978846
    %v2353 = vmul.f32 %v2345, 0.7978846
    %v2354 = vmul.f32 %v2346, 0.7978846
    %v2355 = vmul.f32 %v2347, 0.7978846
    %v2356 = vmul.f32 %v2348, 0.7978846
    %v2357 = vmul.f32 %v2349, 0.7978846
    %v2358 = vmul.f32 %v2350, 0.7978846
    %v2359 = vtanh.pop %v2351
    %v2360 = vtanh.pop %v2352
    %v2361 = vtanh.pop %v2353
    %v2362 = vtanh.pop %v2354
    %v2363 = vtanh.pop %v2355
    %v2364 = vtanh.pop %v2356
    %v2365 = vtanh.pop %v2357
    %v2366 = vtanh.pop %v2358
    %v2367 = vadd.f32 %v2359, 1.0
    %v2368 = vadd.f32 %v2360, 1.0
    %v2369 = vadd.f32 %v2361, 1.0
    %v2370 = vadd.f32 %v2362, 1.0
    %v2371 = vadd.f32 %v2363, 1.0
    %v2372 = vadd.f32 %v2364, 1.0
    %v2373 = vadd.f32 %v2365, 1.0
    %v2374 = vadd.f32 %v2366, 1.0
    %v2375 = vmul.f32 %v2367, 0.5
    %v2376 = vmul.f32 %v2368, 0.5
    %v2377 = vmul.f32 %v2369, 0.5
    %v2378 = vmul.f32 %v2370, 0.5
    %v2379 = vmul.f32 %v2371, 0.5
    %v2380 = vmul.f32 %v2372, 0.5
    %v2381 = vmul.f32 %v2373, 0.5
    %v2382 = vmul.f32 %v2374, 0.5
    %v2383 = vmul.f32 %v2268, %v2375
    %v2384 = vmul.f32 %v2270, %v2376
    %v2385 = vmul.f32 %v2311, %v2377
    %v2386 = vmul.f32 %v2313, %v2378
    %v2387 = vmul.f32 %v2272, %v2379
    %v2388 = vmul.f32 %v2274, %v2380
    %v2389 = vmul.f32 %v2315, %v2381
    %v2390 = vmul.f32 %v2317, %v2382
    %v2391 = vpack.c.bf16 %v2387, %v2383
    %v2392 = vpack.c.bf16 %v2388, %v2384
    %v2393 = vpack.c.bf16 %v2389, %v2385
    %v2394 = vpack.c.bf16 %v2390, %v2386
    %v2395 = vld [vmem:[#allocation16] sm:$0xf]
    %v2396 = vld [vmem:[#allocation16 + $0x4] sm:$0xf]
    %v2397 = vld [vmem:[#allocation16 + $0x8] sm:$0xf]
    %v2398 = vld [vmem:[#allocation16 + $0xc] sm:$0xf]
    %v2399 = vld [vmem:[#allocation16 + $0x10] sm:$0xf]
    %v2400 = vld [vmem:[#allocation16 + $0x14] sm:$0xf]
    %v2401 = vld [vmem:[#allocation16 + $0x18] sm:$0xf]
    %v2402 = vld [vmem:[#allocation16 + $0x1c] sm:$0xf]
    %v2403 = vld [vmem:[#allocation16 + $0x20] sm:$0xf]
    %v2404 = vld [vmem:[#allocation16 + $0x24] sm:$0xf]
    %v2405 = vld [vmem:[#allocation16 + $0x28] sm:$0xf]
    %v2406 = vld [vmem:[#allocation16 + $0x2c] sm:$0xf]
    %v2407 = vld [vmem:[#allocation16 + $0x30] sm:$0xf]
    %v2408 = vld [vmem:[#allocation16 + $0x34] sm:$0xf]
    %v2409 = vld [vmem:[#allocation16 + $0x38] sm:$0xf]
    %v2410 = vld [vmem:[#allocation16 + $0x3c] sm:$0xf]
    %v2411 = vld [vmem:[#allocation16 + $0x40] sm:$0xf]
    %v2412 = vld [vmem:[#allocation16 + $0x44] sm:$0xf]
    %v2413 = vld [vmem:[#allocation16 + $0x48] sm:$0xf]
    %v2414 = vld [vmem:[#allocation16 + $0x4c] sm:$0xf]
    %v2415 = vld [vmem:[#allocation16 + $0x50] sm:$0xf]
    %v2416 = vld [vmem:[#allocation16 + $0x54] sm:$0xf]
    %v2417 = vld [vmem:[#allocation16 + $0x58] sm:$0xf]
    %v2418 = vld [vmem:[#allocation16 + $0x5c] sm:$0xf]
    %v2419 = vld [vmem:[#allocation16 + $0x60] sm:$0xf]
    %v2420 = vld [vmem:[#allocation16 + $0x64] sm:$0xf]
    %v2421 = vld [vmem:[#allocation16 + $0x68] sm:$0xf]
    %v2422 = vld [vmem:[#allocation16 + $0x6c] sm:$0xf]
    %v2423 = vld [vmem:[#allocation16 + $0x70] sm:$0xf]
    %v2424 = vld [vmem:[#allocation16 + $0x74] sm:$0xf]
    %v2425 = vld [vmem:[#allocation16 + $0x78] sm:$0xf]
    %v2426 = vld [vmem:[#allocation16 + $0x7c] sm:$0xf]
    %v2427 = vld [vmem:[#allocation16 + $0x80] sm:$0xf]
    %v2428 = vld [vmem:[#allocation16 + $0x84] sm:$0xf]
    %v2429 = vld [vmem:[#allocation16 + $0x88] sm:$0xf]
    %v2430 = vld [vmem:[#allocation16 + $0x8c] sm:$0xf]
    %v2431 = vld [vmem:[#allocation16 + $0x90] sm:$0xf]
    %v2432 = vld [vmem:[#allocation16 + $0x94] sm:$0xf]
    %v2433 = vld [vmem:[#allocation16 + $0x98] sm:$0xf]
    %v2434 = vld [vmem:[#allocation16 + $0x9c] sm:$0xf]
    %v2435 = vld [vmem:[#allocation16 + $0xa0] sm:$0xf]
    %v2436 = vld [vmem:[#allocation16 + $0xa4] sm:$0xf]
    %v2437 = vld [vmem:[#allocation16 + $0xa8] sm:$0xf]
    %v2438 = vld [vmem:[#allocation16 + $0xac] sm:$0xf]
    %v2439 = vld [vmem:[#allocation16 + $0xb0] sm:$0xf]
    %v2440 = vld [vmem:[#allocation16 + $0xb4] sm:$0xf]
    %v2441 = vld [vmem:[#allocation16 + $0xb8] sm:$0xf]
    %v2442 = vld [vmem:[#allocation16 + $0xbc] sm:$0xf]
    %v2443 = vld [vmem:[#allocation16 + $0xc0] sm:$0xf]
    %v2444 = vld [vmem:[#allocation16 + $0xc4] sm:$0xf]
    %v2445 = vld [vmem:[#allocation16 + $0xc8] sm:$0xf]
    %v2446 = vld [vmem:[#allocation16 + $0xcc] sm:$0xf]
    %v2447 = vld [vmem:[#allocation16 + $0xd0] sm:$0xf]
    %v2448 = vld [vmem:[#allocation16 + $0xd4] sm:$0xf]
    %v2449 = vld [vmem:[#allocation16 + $0xd8] sm:$0xf]
    %v2450 = vld [vmem:[#allocation16 + $0xdc] sm:$0xf]
    %v2451 = vld [vmem:[#allocation16 + $0xe0] sm:$0xf]
    %v2452 = vld [vmem:[#allocation16 + $0xe4] sm:$0xf]
    %v2453 = vld [vmem:[#allocation16 + $0xe8] sm:$0xf]
    %v2454 = vld [vmem:[#allocation16 + $0xec] sm:$0xf]
    %v2455 = vld [vmem:[#allocation16 + $0xf0] sm:$0xf]
    %v2456 = vld [vmem:[#allocation16 + $0xf4] sm:$0xf]
    %v2457 = vld [vmem:[#allocation16 + $0xf8] sm:$0xf]
    %v2458 = vld [vmem:[#allocation16 + $0xfc] sm:$0xf]
    %v2459 = vld [vmem:[%s13] sm:$0x1]
    %v2461 = vlaneseq
    %v2462 = vshrl.u32 %v2461, 7
    %v2463 = vsub.s32 0, %v2462
    %v2464 = vrot.slane %v2459, %v2463
    %v2530 = vunpack.c.l.b16 %v2395
    %v2531 = vunpack.c.l.b16 %v2396
    %v2532 = vunpack.c.l.b16 %v2397
    %v2533 = vunpack.c.l.b16 %v2398
    %v2534 = vunpack.c.l.b16 %v2399
    %v2535 = vunpack.c.l.b16 %v2400
    %v2536 = vunpack.c.l.b16 %v2401
    %v2537 = vunpack.c.l.b16 %v2402
    %v2538 = vunpack.c.l.b16 %v2403
    %v2539 = vunpack.c.l.b16 %v2404
    %v2540 = vunpack.c.l.b16 %v2405
    %v2541 = vunpack.c.l.b16 %v2406
    %v2542 = vunpack.c.l.b16 %v2407
    %v2543 = vunpack.c.l.b16 %v2408
    %v2544 = vunpack.c.l.b16 %v2409
    %v2545 = vunpack.c.l.b16 %v2410
    %v2546 = vunpack.c.l.b16 %v2411
    %v2547 = vunpack.c.l.b16 %v2412
    %v2548 = vunpack.c.l.b16 %v2413
    %v2549 = vunpack.c.l.b16 %v2414
    %v2550 = vunpack.c.l.b16 %v2415
    %v2551 = vunpack.c.l.b16 %v2416
    %v2552 = vunpack.c.l.b16 %v2417
    %v2553 = vunpack.c.l.b16 %v2418
    %v2554 = vunpack.c.l.b16 %v2419
    %v2555 = vunpack.c.l.b16 %v2420
    %v2556 = vunpack.c.l.b16 %v2421
    %v2557 = vunpack.c.l.b16 %v2422
    %v2558 = vunpack.c.l.b16 %v2423
    %v2559 = vunpack.c.l.b16 %v2424
    %v2560 = vunpack.c.l.b16 %v2425
    %v2561 = vunpack.c.l.b16 %v2426
    %v2562 = vunpack.c.l.b16 %v2427
    %v2563 = vunpack.c.l.b16 %v2428
    %v2564 = vunpack.c.l.b16 %v2429
    %v2565 = vunpack.c.l.b16 %v2430
    %v2566 = vunpack.c.l.b16 %v2431
    %v2567 = vunpack.c.l.b16 %v2432
    %v2568 = vunpack.c.l.b16 %v2433
    %v2569 = vunpack.c.l.b16 %v2434
    %v2570 = vunpack.c.l.b16 %v2435
    %v2571 = vunpack.c.l.b16 %v2436
    %v2572 = vunpack.c.l.b16 %v2437
    %v2573 = vunpack.c.l.b16 %v2438
    %v2574 = vunpack.c.l.b16 %v2439
    %v2575 = vunpack.c.l.b16 %v2440
    %v2576 = vunpack.c.l.b16 %v2441
    %v2577 = vunpack.c.l.b16 %v2442
    %v2578 = vunpack.c.l.b16 %v2443
    %v2579 = vunpack.c.l.b16 %v2444
    %v2580 = vunpack.c.l.b16 %v2445
    %v2581 = vunpack.c.l.b16 %v2446
    %v2582 = vunpack.c.l.b16 %v2447
    %v2583 = vunpack.c.l.b16 %v2448
    %v2584 = vunpack.c.l.b16 %v2449
    %v2585 = vunpack.c.l.b16 %v2450
    %v2586 = vunpack.c.l.b16 %v2451
    %v2587 = vunpack.c.l.b16 %v2452
    %v2588 = vunpack.c.l.b16 %v2453
    %v2589 = vunpack.c.l.b16 %v2454
    %v2590 = vunpack.c.l.b16 %v2455
    %v2591 = vunpack.c.l.b16 %v2456
    %v2592 = vunpack.c.l.b16 %v2457
    %v2593 = vunpack.c.l.b16 %v2458
    %v2594 = vpack.c.b16 %v2531, %v2530
    %v2595 = vpack.c.b16 %v2533, %v2532
    %v2596 = vpack.c.b16 %v2535, %v2534
    %v2597 = vpack.c.b16 %v2537, %v2536
    %v2598 = vpack.c.b16 %v2539, %v2538
    %v2599 = vpack.c.b16 %v2541, %v2540
    %v2600 = vpack.c.b16 %v2543, %v2542
    %v2601 = vpack.c.b16 %v2545, %v2544
    %v2602 = vpack.c.b16 %v2547, %v2546
    %v2603 = vpack.c.b16 %v2549, %v2548
    %v2604 = vpack.c.b16 %v2551, %v2550
    %v2605 = vpack.c.b16 %v2553, %v2552
    %v2606 = vpack.c.b16 %v2555, %v2554
    %v2607 = vpack.c.b16 %v2557, %v2556
    %v2608 = vpack.c.b16 %v2559, %v2558
    %v2609 = vpack.c.b16 %v2561, %v2560
    %v2610 = vpack.c.b16 %v2563, %v2562
    %v2611 = vpack.c.b16 %v2565, %v2564
    %v2612 = vpack.c.b16 %v2567, %v2566
    %v2613 = vpack.c.b16 %v2569, %v2568
    %v2614 = vpack.c.b16 %v2571, %v2570
    %v2615 = vpack.c.b16 %v2573, %v2572
    %v2616 = vpack.c.b16 %v2575, %v2574
    %v2617 = vpack.c.b16 %v2577, %v2576
    %v2618 = vpack.c.b16 %v2579, %v2578
    %v2619 = vpack.c.b16 %v2581, %v2580
    %v2620 = vpack.c.b16 %v2583, %v2582
    %v2621 = vpack.c.b16 %v2585, %v2584
    %v2622 = vpack.c.b16 %v2587, %v2586
    %v2623 = vpack.c.b16 %v2589, %v2588
    %v2624 = vpack.c.b16 %v2591, %v2590
    %v2625 = vpack.c.b16 %v2593, %v2592
    %2658 = vmatprep.subr.bf16.mxu0 0
    %2659 = vmatpush1.bf16.msra.mxu0 %v2594
    %2660 = vmatprep.subr.bf16.mxu0 0
    %2661 = vmatpush1.bf16.msra.mxu0 %v2595
    %2662 = vmatprep.subr.bf16.mxu0 0
    %2663 = vmatpush1.bf16.msra.mxu0 %v2596
    %2664 = vmatprep.subr.bf16.mxu0 0
    %2665 = vmatpush1.bf16.msra.mxu0 %v2597
    %2666 = vmatprep.subr.bf16.mxu0 0
    %2667 = vmatpush1.bf16.msra.mxu0 %v2598
    %2668 = vmatprep.subr.bf16.mxu0 0
    %2669 = vmatpush1.bf16.msra.mxu0 %v2599
    %2670 = vmatprep.subr.bf16.mxu0 0
    %2671 = vmatpush1.bf16.msra.mxu0 %v2600
    %2672 = vmatprep.subr.bf16.mxu0 0
    %2673 = vmatpush1.bf16.msra.mxu0 %v2601
    %2674 = vmatprep.subr.bf16.mxu0 0
    %2675 = vmatpush1.bf16.msra.mxu0 %v2602
    %2676 = vmatprep.subr.bf16.mxu0 0
    %2677 = vmatpush1.bf16.msra.mxu0 %v2603
    %2678 = vmatprep.subr.bf16.mxu0 0
    %2679 = vmatpush1.bf16.msra.mxu0 %v2604
    %2680 = vmatprep.subr.bf16.mxu0 0
    %2681 = vmatpush1.bf16.msra.mxu0 %v2605
    %2682 = vmatprep.subr.bf16.mxu0 0
    %2683 = vmatpush1.bf16.msra.mxu0 %v2606
    %2684 = vmatprep.subr.bf16.mxu0 0
    %2685 = vmatpush1.bf16.msra.mxu0 %v2607
    %2686 = vmatprep.subr.bf16.mxu0 0
    %2687 = vmatpush1.bf16.msra.mxu0 %v2608
    %2688 = vmatprep.subr.bf16.mxu0 0
    %2689 = vmatpush1.bf16.msra.mxu0 %v2609
    %2690 = vmatprep.mubr.bf16.mxu0 %v2392
    %2691 = vmatmul.mubr.bf16.gmra.mrb[0].mxu0 %v2391
    %v2692 = vpop.f32.mrb[0].mxu0
    %v2693 = vadd.f32 %v2464, %v2692
    %v2694 = vpop.f32.mrb[0].mxu0
    %v2695 = vpop.f32.mrb[0].mxu0
    %v2696 = vadd.f32 %v2464, %v2695
    %v2697 = vpop.f32.mrb[0].mxu0
    %2698 = vdwg.mxu0
    %2699 = vmatprep.subr.bf16.mxu0 0
    %2700 = vmatpush1.bf16.msra.mxu0 %v2610
    %2701 = vmatprep.subr.bf16.mxu0 0
    %2702 = vmatpush1.bf16.msra.mxu0 %v2611
    %2703 = vmatprep.subr.bf16.mxu0 0
    %2704 = vmatpush1.bf16.msra.mxu0 %v2612
    %2705 = vmatprep.subr.bf16.mxu0 0
    %2706 = vmatpush1.bf16.msra.mxu0 %v2613
    %2707 = vmatprep.subr.bf16.mxu0 0
    %2708 = vmatpush1.bf16.msra.mxu0 %v2614
    %2709 = vmatprep.subr.bf16.mxu0 0
    %2710 = vmatpush1.bf16.msra.mxu0 %v2615
    %2711 = vmatprep.subr.bf16.mxu0 0
    %2712 = vmatpush1.bf16.msra.mxu0 %v2616
    %2713 = vmatprep.subr.bf16.mxu0 0
    %2714 = vmatpush1.bf16.msra.mxu0 %v2617
    %2715 = vmatprep.subr.bf16.mxu0 0
    %2716 = vmatpush1.bf16.msra.mxu0 %v2618
    %2717 = vmatprep.subr.bf16.mxu0 0
    %2718 = vmatpush1.bf16.msra.mxu0 %v2619
    %2719 = vmatprep.subr.bf16.mxu0 0
    %2720 = vmatpush1.bf16.msra.mxu0 %v2620
    %2721 = vmatprep.subr.bf16.mxu0 0
    %2722 = vmatpush1.bf16.msra.mxu0 %v2621
    %2723 = vmatprep.subr.bf16.mxu0 0
    %2724 = vmatpush1.bf16.msra.mxu0 %v2622
    %2725 = vmatprep.subr.bf16.mxu0 0
    %2726 = vmatpush1.bf16.msra.mxu0 %v2623
    %2727 = vmatprep.subr.bf16.mxu0 0
    %2728 = vmatpush1.bf16.msra.mxu0 %v2624
    %2729 = vmatprep.subr.bf16.mxu0 0
    %2730 = vmatpush1.bf16.msra.mxu0 %v2625
    %2731 = vmatprep.mubr.bf16.mxu0 %v2394
    %2732 = vmatmul.mubr.bf16.gmra.mrb[0].mxu0 %v2393
    %v2733 = vpop.f32.mrb[0].mxu0
    %v2734 = vadd.f32 %v2693, %v2733
    %v2735 = vpop.f32.mrb[0].mxu0
    %v2736 = vpop.f32.mrb[0].mxu0
    %v2737 = vadd.f32 %v2696, %v2736
    %v2738 = vpop.f32.mrb[0].mxu0
    %2739 = vdwg.mxu0
    %v2740 = vadd.f32 %v2016, %v2734
    %v2741 = vadd.f32 %v2017, %v2737
    %v2742 = vld [vmem:[#allocation7 + $0x2] sm:$0x1]
    %v2743 = vld [vmem:[#allocation8 + $0x2] sm:$0x1]
    %2744 = vadd.xlane.f32.xlu0 %v2740
    %v2745 = vpop.xlane.xlu0 %2744
    %2746 = vadd.xlane.f32.xlu0 %v2741
    %v2747 = vpop.xlane.xlu0 %2746
    %v2748 = vmul.f32 %v2745, %v194
    %v2749 = vmul.f32 %v2747, %v194
    %v2750 = vsub.f32 %v2740, %v2748
    %v2751 = vsub.f32 %v2741, %v2749
    %v2752 = vmul.f32 %v2750, %v2750
    %v2753 = vmul.f32 %v2751, %v2751
    %2754 = vadd.xlane.f32.xlu0 %v2752
    %v2755 = vpop.xlane.xlu0 %2754
    %2756 = vadd.xlane.f32.xlu0 %v2753
    %v2757 = vpop.xlane.xlu0 %2756
    %v2758 = vmul.f32 %v2755, %v194
    %v2759 = vmul.f32 %v2757, %v194
    %v2760 = vadd.f32 %v2758, 1e-12
    %v2761 = vadd.f32 %v2759, 1e-12
    %v2762 = vrsqrt.pop %v2760
    %v2763 = vrsqrt.pop %v2761
    %v2764 = vmul.f32 %v2750, %v2762
    %v2765 = vmul.f32 %v2751, %v2763
    %v2766 = vlaneseq
    %v2767 = vshrl.u32 %v2766, 7
    %v2768 = vsub.s32 0, %v2767
    %v2769 = vrot.slane %v2742, %v2768
    %v2770 = vmul.f32 %v2764, %v2769
    %v2771 = vmul.f32 %v2765, %v2769
    %v2772 = vlaneseq
    %v2773 = vshrl.u32 %v2772, 7
    %v2774 = vsub.s32 0, %v2773
    %v2775 = vrot.slane %v2743, %v2774
    %v2776 = vadd.f32 %v2770, %v2775
    %v2777 = vadd.f32 %v2771, %v2775
    %v2778 = vpack.c.bf16 %v2777, %v2776
    %v2779 = vld [vmem:[#allocation17] sm:$0xf]
    %v2780 = vld [vmem:[#allocation17 + $0x4] sm:$0xf]
    %v2781 = vld [vmem:[#allocation17 + $0x8] sm:$0xf]
    %v2782 = vld [vmem:[#allocation17 + $0xc] sm:$0xf]
    %v2783 = vld [vmem:[#allocation17 + $0x10] sm:$0xf]
    %v2784 = vld [vmem:[#allocation17 + $0x14] sm:$0xf]
    %v2785 = vld [vmem:[#allocation17 + $0x18] sm:$0xf]
    %v2786 = vld [vmem:[#allocation17 + $0x1c] sm:$0xf]
    %v2787 = vld [vmem:[#allocation17 + $0x20] sm:$0xf]
    %v2788 = vld [vmem:[#allocation17 + $0x24] sm:$0xf]
    %v2789 = vld [vmem:[#allocation17 + $0x28] sm:$0xf]
    %v2790 = vld [vmem:[#allocation17 + $0x2c] sm:$0xf]
    %v2791 = vld [vmem:[#allocation17 + $0x30] sm:$0xf]
    %v2792 = vld [vmem:[#allocation17 + $0x34] sm:$0xf]
    %v2793 = vld [vmem:[#allocation17 + $0x38] sm:$0xf]
    %v2794 = vld [vmem:[#allocation17 + $0x3c] sm:$0xf]
    %v2795 = vld [vmem:[%s15] sm:$0x1]
    %v2797 = vlaneseq
    %v2798 = vshrl.u32 %v2797, 7
    %v2799 = vsub.s32 0, %v2798
    %v2800 = vrot.slane %v2795, %v2799
    %v2818 = vunpack.c.l.b16 %v2779
    %v2819 = vunpack.c.l.b16 %v2780
    %v2820 = vunpack.c.l.b16 %v2781
    %v2821 = vunpack.c.l.b16 %v2782
    %v2822 = vunpack.c.l.b16 %v2783
    %v2823 = vunpack.c.l.b16 %v2784
    %v2824 = vunpack.c.l.b16 %v2785
    %v2825 = vunpack.c.l.b16 %v2786
    %v2826 = vunpack.c.l.b16 %v2787
    %v2827 = vunpack.c.l.b16 %v2788
    %v2828 = vunpack.c.l.b16 %v2789
    %v2829 = vunpack.c.l.b16 %v2790
    %v2830 = vunpack.c.l.b16 %v2791
    %v2831 = vunpack.c.l.b16 %v2792
    %v2832 = vunpack.c.l.b16 %v2793
    %v2833 = vunpack.c.l.b16 %v2794
    %v2834 = vpack.c.b16 %v2819, %v2818
    %v2835 = vpack.c.b16 %v2821, %v2820
    %v2836 = vpack.c.b16 %v2823, %v2822
    %v2837 = vpack.c.b16 %v2825, %v2824
    %v2838 = vpack.c.b16 %v2827, %v2826
    %v2839 = vpack.c.b16 %v2829, %v2828
    %v2840 = vpack.c.b16 %v2831, %v2830
    %v2841 = vpack.c.b16 %v2833, %v2832
    %2850 = vmatprep.subr.bf16.mxu0 0
    %2851 = vmatpush1.bf16.msra.mxu0 %v2834
    %2852 = vmatprep.subr.bf16.mxu0 0
    %2853 = vmatpush1.bf16.msra.mxu0 %v2835
    %2854 = vmatprep.subr.bf16.mxu0 0
    %2855 = vmatpush1.bf16.msra.mxu0 %v2836
    %2856 = vmatprep.subr.bf16.mxu0 0
    %2857 = vmatpush1.bf16.msra.mxu0 %v2837
    %2858 = vmatprep.subr.bf16.mxu0 0
    %2859 = vmatpush1.bf16.msra.mxu0 %v2838
    %2860 = vmatprep.subr.bf16.mxu0 0
    %2861 = vmatpush1.bf16.msra.mxu0 %v2839
    %2862 = vmatprep.subr.bf16.mxu0 0
    %2863 = vmatpush1.bf16.msra.mxu0 %v2840
    %2864 = vmatprep.subr.bf16.mxu0 0
    %2865 = vmatpush1.bf16.msra.mxu0 %v2841
    %2866 = vmatprep.subr.bf16.mxu0 0
    %2867 = vmatpush1.bf16.msra.mxu0 0
    %2868 = vmatprep.subr.bf16.mxu0 0
    %2869 = vmatpush1.bf16.msra.mxu0 0
    %2870 = vmatprep.subr.bf16.mxu0 0
    %2871 = vmatpush1.bf16.msra.mxu0 0
    %2872 = vmatprep.subr.bf16.mxu0 0
    %2873 = vmatpush1.bf16.msra.mxu0 0
    %2874 = vmatprep.subr.bf16.mxu0 0
    %2875 = vmatpush1.bf16.msra.mxu0 0
    %2876 = vmatprep.subr.bf16.mxu0 0
    %2877 = vmatpush1.bf16.msra.mxu0 0
    %2878 = vmatprep.subr.bf16.mxu0 0
    %2879 = vmatpush1.bf16.msra.mxu0 0
    %2880 = vmatprep.subr.bf16.mxu0 0
    %2881 = vmatpush1.bf16.msra.mxu0 0
    %2882 = vmatprep.mubr.bf16.mxu0 0
    %2883 = vmatmul.mubr.bf16.gmra.mrb[0].mxu0 %v2778
    %v2884 = vpop.f32.mrb[0].mxu0
    %v2885 = vadd.f32 %v2800, %v2884
    %v2886 = vpop.f32.mrb[0].mxu0
    %v2887 = vpop.f32.mrb[0].mxu0
    %v2888 = vadd.f32 %v2800, %v2887
    %v2889 = vpop.f32.mrb[0].mxu0
    %2890 = vdwg.mxu0
    %2891 = vst [vmem:[#allocation19] sm:$0xff] %v2885
    %2892 = vst [vmem:[#allocation19 + $0x8] sm:$0xff] %v2888
    %2893 = vmax.xlane.f32.xlu0 %v2885
    %v2894 = vpop.xlane.xlu0 %2893
    %2895 = vmax.xlane.f32.xlu0 %v2888
    %v2896 = vpop.xlane.xlu0 %2895
    %v2897 = vsub.f32 %v2885, %v2894
    %v2898 = vsub.f32 %v2888, %v2896
    %v2899 = vmul.f32 %v2897, 1.442695
    %v2900 = vpow.pop %v2899
    %v2901 = vmul.f32 %v2898, 1.442695
    %v2902 = vpow.pop %v2901
    %2903 = vadd.xlane.f32.xlu0 %v2900
    %v2904 = vpop.xlane.xlu0 %2903
    %2905 = vadd.xlane.f32.xlu0 %v2902
    %v2906 = vpop.xlane.xlu0 %2905
    %v2907 = vlog2.pop %v2904
    %v2908 = vmul.f32 %v2907, 0.6931472
    %v2909 = vlog2.pop %v2906
    %v2910 = vmul.f32 %v2909, 0.6931472
    %v2911 = vlaneseq
    %v2912 = vand.u32 %v2911, 127
    %v2913 = vld [vmem:[%s2] sm:$0xff]
    %v2914 = vld [vmem:[%s2 + $0x8] sm:$0xff]
    %2915 = vset.pattern.permute.xlu0 0
    %2916 = vperm.xlu0 %2915, %v2913
    %v2917 = vpop.permute.xlu0 %2916
    %2918 = vset.pattern.permute.xlu0 0
    %2919 = vperm.xlu0 %2918, %v2914
    %v2920 = vpop.permute.xlu0 %2919
    %vm2921 = vcmp.eq.s32.totalorder %v2912, %v2917
    %vm2922 = vcmp.eq.s32.totalorder %v2912, %v2920
    %v2923 = vsel %vm2921, %v2897, 0.0
    %v2924 = vsel %vm2922, %v2898, 0.0
    %2925 = vadd.xlane.f32.xlu0 %v2923
    %v2926 = vpop.xlane.xlu0 %2925
    %2927 = vadd.xlane.f32.xlu0 %v2924
    %v2928 = vpop.xlane.xlu0 %2927
    %v2929 = vsub.f32 %v2908, %v2926
    %v2930 = vsub.f32 %v2910, %v2928
    %v2931 = vld [vmem:[%s3] sm:$0xff]
    %v2932 = vld [vmem:[%s3 + $0x8] sm:$0xff]
    %v2933 = vmul.f32 %v2929, %v2931
    %v2934 = vmul.f32 %v2930, %v2932
    %vm2935 = vcmask 7168
    %v2936 = vsel %vm2935, %v2933, 0.0
    %v2937 = vsel %vm2935, %v2934, 0.0
    %v2938 = vadd.f32 %v2936, %v2937
    %2939 = vadd.xlane.f32.xlu0 %v2938
    %v2940 = vpop.xlane.xlu0 %2939
    %v2941 = vrot.slane %v2940, 4
    %v2942 = vadd.f32 %v2940, %v2941
    %v2943 = vrot.slane %v2942, 2
    %v2944 = vadd.f32 %v2942, %v2943
    %v2945 = vrot.slane %v2944, 1
    %v2946 = vadd.f32 %v2944, %v2945
    %s2947 = vtos %v2946
    %v2948 = vstv %s2947
    %v2949 = vsel %vm2935, %v2931, 0.0
    %v2950 = vsel %vm2935, %v2932, 0.0
    %v2951 = vadd.f32 %v2949, %v2950
    %2952 = vadd.xlane.f32.xlu0 %v2951
    %v2953 = vpop.xlane.xlu0 %2952
    %v2954 = vrot.slane %v2953, 4
    %v2955 = vadd.f32 %v2953, %v2954
    %v2956 = vrot.slane %v2955, 2
    %v2957 = vadd.f32 %v2955, %v2956
    %v2958 = vrot.slane %v2957, 1
    %v2959 = vadd.f32 %v2957, %v2958
    %s2960 = vtos %v2959
    %v2961 = vstv %s2960
    %v2962 = vrcp.pop %v2961
    %v2963 = vmul.f32 %v2948, %v2962
    %vm2964 = vcmask 0
    %2965 = vst.msk [vmem:[#allocation20] sm:$0x1] %vm2964, %v2963
    // Predicated region
    $region106: #{tpu_custom_call.1} parent=1 // pred_check
      _
    $region107: #{tpu_custom_call.1} parent=1 // pred_check_branch
      %2967 = sbr.rel (0) target = $region109
    $region108: #{tpu_custom_call.1} parent=1 // pred_region
      %s2969 = ssub.s32 256, 256
      %2970 = vsyncadd [#allocation4], %s2969
      %s2971 = sshll.u32 [#allocation19], 4
      %s2972 = int_to_ptr.vmem [resolvable:$true] %s2971
      %2977 = dma.vmem_to_hbm [thread:$0]  %s2972, 256, %s16, [#allocation4], 128, 128, 8
    $region109: #{tpu_custom_call.1} parent=1 // pred_fallthru
      _
    // Predicated region
    $region110: #{tpu_custom_call.1} parent=1 // pred_check
      _
    $region111: #{tpu_custom_call.1} parent=1 // pred_check_branch
      %2979 = sbr.rel (0) target = $region113
    $region112: #{tpu_custom_call.1} parent=1 // pred_region
      %s2981 = ssub.s32 16, 16
      %2982 = vsyncadd [#allocation21], %s2981
      %s2984 = sshll.u32 [#allocation20], 4
      %s2985 = int_to_ptr.vmem [resolvable:$true] %s2984
      %2987 = dma.vmem_to_hbm [thread:$0]  %s2985, 16, %s17, [#allocation21]
    $region113: #{tpu_custom_call.1} parent=1 // pred_fallthru
      _
    // Predicated region
    $region114: #{tpu_custom_call.1} parent=1 // pred_check
      _
    $region115: #{tpu_custom_call.1} parent=1 // pred_check_branch
      %2989 = sbr.rel (0) target = $region117
    $region116: #{tpu_custom_call.1} parent=1 // pred_region
      %2990 = dma.done [#allocation4], 256
    $region117: #{tpu_custom_call.1} parent=1 // pred_fallthru
      _
    // Predicated region
    $region118: #{tpu_custom_call.1} parent=1 // pred_check
      _
    $region119: #{tpu_custom_call.1} parent=1 // pred_check_branch
      %2992 = sbr.rel (0) target = $region121
    $region120: #{tpu_custom_call.1} parent=1 // pred_region
      %2993 = dma.done [#allocation21], 16
    $region121: #{tpu_custom_call.1} parent=1 // pred_fallthru
      _
    %2994 = vsyncpa [#allocation3], 1
    %2995 = vsyncpa [#allocation6], 1
    %2996 = vsyncpa [#allocation9], 1
    %2997 = vsyncpa [#allocation12], 1
    %2998 = vsyncpa [#allocation15], 1
    %2999 = vsyncpa [#allocation18], 1
    %3000 = vsyncpa [#allocation4], 1
    %3001 = vsyncpa [#allocation21], 1

</llo_original>
